<compile_context>
chip_gen: v7x
topology: tpu7x:2x2x1
jax: 0.10.0
libtpu: 0.0.40
codegen_flags: <defaults>
</compile_context>

<pallas_src>
import functools

import jax
import jax.numpy as jnp
from jax.experimental import pallas as pl
from jax.experimental.pallas import tpu as pltpu

# ----------------------------- model sizes ---------------------------------
VOCAB_IN = 24     # encoder (source) vocab
VOCAB_OUT = 24    # decoder.dim_output (target vocab)
EMBED = 16
HIDDEN = 32
NUM_LAYERS = 1    # decoder.num_layers
SRC_LEN = 8
TGT_LEN = 6
BATCH = 4
TEACHER_FORCING_RATIO = 0.5  # cfg.teacher_forcing_ratio

_VMEM = pl.BlockSpec(memory_space=pltpu.MemorySpace.VMEM)


# ------------------------------ fused kernel --------------------------------
def _seq2seq_kernel(teacher_mask,
                    src_emb_ref, tgt_oh_ref, w96_ref, wout_ref, bias_ref,
                    out_ref, enc_scr):
    f32 = jnp.float32
    bf16 = jnp.bfloat16
    S, B, E = src_emb_ref.shape
    T, _, V = tgt_oh_ref.shape
    H3 = w96_ref.shape[1]
    H = H3 // 3
    H2 = 2 * H

    # ---- unpack weights (bf16, static 16-aligned row slices of one slab) ----
    w96 = w96_ref[...]
    e_wih = w96[0:E, :]                    # (E, 3H)  encoder input weight
    e_whh = w96[E:E + H, :]                # (H, 3H)  encoder hidden weight
    d_whh = w96[E + H:E + 2 * H, :]        # (H, 3H)  decoder hidden weight
    d_win = w96[E + 2 * H:, :]             # (V+H,3H) [emb-folded | ctx] input weight
    w_out = wout_ref[...]                  # (2H, V)  [hidden | ctx] projection

    # ---- biases: hoisted broadcasts, r/z hidden-bias already pre-summed ----
    b = bias_ref[...]                      # (5, 128) f32
    e_bi = jnp.broadcast_to(b[0:1, 0:H3], (B, H3))
    e_bhn = jnp.broadcast_to(b[1:2, 0:H], (B, H))
    d_bi = jnp.broadcast_to(b[2:3, 0:H3], (B, H3))
    d_bhn = jnp.broadcast_to(b[3:4, 0:H], (B, H))
    b_out = jnp.broadcast_to(b[4:5, 0:V], (B, V))

    def gru_step(x_b16, h_b16, h_f32, wih, whh, bi_b, bhn_b):
        """PyTorch-semantics GRU cell, gates lane-packed as r|z|n."""
        gi = jnp.dot(x_b16, wih, preferred_element_type=f32) + bi_b   # (B, 3H)
        gh = jnp.dot(h_b16, whh, preferred_element_type=f32)          # (B, 3H)
        rz = jax.nn.sigmoid(gi[:, :H2] + gh[:, :H2])                  # one sigmoid
        r = rz[:, :H]
        z = rz[:, H:]
        n = jnp.tanh(gi[:, H2:] + r * (gh[:, H2:] + bhn_b))
        return (1.0 - z) * n + z * h_f32

    # ------------------------------ encoder ---------------------------------
    # TODO(synk): src_len masking (pack_padded_sequence equivalent) is not
    #             applied; padded positions are encoded and attended over.
    h = jnp.zeros((B, H), f32)
    for t in range(S):                               # static unroll (serial)
        h = gru_step(src_emb_ref[t], h.astype(bf16), h, e_wih, e_whh, e_bi, e_bhn)
        enc_scr[t * B:(t + 1) * B, :] = h            # per-step store, row = t*B + b

    enc_flat_f32 = enc_scr[...]                      # (S*B, H)
    enc_flat = enc_flat_f32.astype(bf16)             # matmul operand (ctx)
    enc_flat_t = jnp.transpose(enc_flat_f32).astype(bf16)   # (H, S*B), scores operand

    # block-diagonal mask: flat column c holds the encoder state of batch c % B
    col_b = jax.lax.broadcasted_iota(jnp.int32, (B, S * B), 1) % B
    row_b = jax.lax.broadcasted_iota(jnp.int32, (B, S * B), 0)
    attn_mask = col_b == row_b
    iota_v = jax.lax.broadcasted_iota(jnp.int32, (B, V), 1)

    # ------------------------------ decoder ---------------------------------
    out_ref[0] = jnp.zeros((B, V), f32)              # outputs[0] stays zero
    onehot = tgt_oh_ref[0]                           # first decoder input = tgt[0]
    hidden = h                                       # (B, H) f32; NUM_LAYERS == 1

    for t in range(1, T):                            # static unroll
        h_b16 = hidden.astype(bf16)

        # Luong dot attention (flattened, block-masked, exact softmax)
        scores = jnp.dot(h_b16, enc_flat_t, preferred_element_type=f32)   # (B, S*B)
        scores = jnp.where(attn_mask, scores, jnp.float32(-1e30))
        m = jnp.max(scores, axis=-1, keepdims=True)
        e = jnp.exp(scores - m)
        attn = e / jnp.sum(e, axis=-1, keepdims=True)
        ctx = jnp.dot(attn.astype(bf16), enc_flat, preferred_element_type=f32)  # (B, H)
        ctx_b16 = ctx.astype(bf16)

        # GRU on [emb(onehot) ; ctx]; embedding is folded into d_win
        x_cat = jnp.concatenate([onehot, ctx_b16], axis=1)               # (B, V+H)
        hidden = gru_step(x_cat, h_b16, hidden, d_win, d_whh, d_bi, d_bhn)

        # output projection on [hidden ; ctx]
        hc = jnp.concatenate([hidden.astype(bf16), ctx_b16], axis=1)     # (B, 2H)
        logits = jnp.dot(hc, w_out, preferred_element_type=f32) + b_out  # (B, V)

        # next-step input: teacher forcing (static) or argmax of logits
        if teacher_mask[t]:
            onehot = tgt_oh_ref[t]
        else:
            first_max = jnp.min(
                jnp.where(logits == jnp.max(logits, axis=-1, keepdims=True),
                          iota_v, V),
                axis=-1, keepdims=True)
            onehot = (iota_v == first_max).astype(bf16)

        # log_softmax off the feedback chain; per-step store
        mx = jnp.max(logits, axis=-1, keepdims=True)
        lse = mx + jnp.log(jnp.sum(jnp.exp(logits - mx), axis=-1, keepdims=True))
        out_ref[t] = logits - lse


# ------------------------------- wrapper -------------------------------------
def make_seq2seq_forward(teacher_mask):
    """teacher_mask: length-TGT_LEN sequence of python bools (index 0 unused)."""
    teacher_mask = tuple(bool(x) for x in teacher_mask)
    assert len(teacher_mask) == TGT_LEN
    kernel = functools.partial(_seq2seq_kernel, teacher_mask)

    @jax.jit
    def forward(enc_embedding, w96, wout, biases, src, src_len, tgt, tgt_len):
        # TODO(synk): src_len / tgt_len (variable-length packing) not used.
        del src_len, tgt_len
        src_emb = enc_embedding[src].astype(jnp.bfloat16)                 # (S, B, E)
        tgt_oh = jax.nn.one_hot(tgt, VOCAB_OUT, dtype=jnp.bfloat16)       # (T, B, V)
        out_shape = jax.ShapeDtypeStruct(
            (tgt.shape[0], tgt.shape[1], VOCAB_OUT), jnp.float32)
        return pl.pallas_call(
            kernel,
            out_shape=out_shape,
            in_specs=[_VMEM] * 5,
            out_specs=_VMEM,
            scratch_shapes=[pltpu.VMEM((SRC_LEN * BATCH, HIDDEN), jnp.float32)],
        )(src_emb, tgt_oh, w96, wout, biases)

    return forward


# --------------------------- parameter init / pack ---------------------------
def _init_params(key):
    ks = jax.random.split(key, 14)
    s = 0.1

    def n(k, shape):
        return s * jax.random.normal(k, shape, jnp.float32)

    enc = {
        'embedding': n(ks[0], (VOCAB_IN, EMBED)),
        'wih': n(ks[1], (EMBED, 3 * HIDDEN)),     # lanes ordered r|z|n
        'whh': n(ks[2], (HIDDEN, 3 * HIDDEN)),
        'bih': n(ks[3], (3 * HIDDEN,)),
        'bhh': n(ks[4], (3 * HIDDEN,)),
    }
    dec = {
        'embedding': n(ks[5], (VOCAB_OUT, EMBED)),
        'wih_e': n(ks[6], (EMBED, 3 * HIDDEN)),   # input-weight, embedding part
        'wih_c': n(ks[7], (HIDDEN, 3 * HIDDEN)),  # input-weight, context part
        'whh': n(ks[8], (HIDDEN, 3 * HIDDEN)),
        'bih': n(ks[9], (3 * HIDDEN,)),
        'bhh': n(ks[10], (3 * HIDDEN,)),
        'w_out_h': n(ks[11], (HIDDEN, VOCAB_OUT)),
        'w_out_c': n(ks[12], (HIDDEN, VOCAB_OUT)),
        'b_out': n(ks[13], (VOCAB_OUT,)),
    }
    return enc, dec


def _pack_params(enc, dec):
    """Pack 13 weight/bias tensors into 3 slabs (done once, off the hot path)."""
    H = HIDDEN
    # Fold decoder embedding into the embedding part of the GRU input weight.
    w_oh = dec['embedding'] @ dec['wih_e']                       # (V, 3H)
    d_win = jnp.concatenate([w_oh, dec['wih_c']], axis=0)        # (V+H, 3H)
    w96 = jnp.concatenate(
        [enc['wih'], enc['whh'], dec['whh'], d_win], axis=0)     # (136, 3H)
    wout = jnp.concatenate([dec['w_out_h'], dec['w_out_c']], axis=0)  # (2H, V)

    def gru_biases(bih, bhh):
        # r/z gates: input+hidden biases are additive -> pre-sum.
        bi = bih.at[:2 * H].add(bhh[:2 * H])
        return bi, bhh[2 * H:]                                   # (3H,), (H,)

    e_bi, e_bhn = gru_biases(enc['bih'], enc['bhh'])
    d_bi, d_bhn = gru_biases(dec['bih'], dec['bhh'])

    def pad128(v):
        return jnp.pad(v, (0, 128 - v.shape[0]))

    biases = jnp.stack(
        [pad128(e_bi), pad128(e_bhn), pad128(d_bi), pad128(d_bhn),
         pad128(dec['b_out'])], axis=0).astype(jnp.float32)      # (5, 128)

    return w96.astype(jnp.bfloat16), wout.astype(jnp.bfloat16), biases


# --------------------------------- main ---------------------------------------
if __name__ == "__main__":
    key = jax.random.PRNGKey(0)
    k_params, k_src, k_tgt = jax.random.split(key, 3)
    enc_params, dec_params = _init_params(k_params)
    w96, wout, biases = _pack_params(enc_params, dec_params)

    src = jax.random.randint(k_src, (SRC_LEN, BATCH), 0, VOCAB_IN, dtype=jnp.int32)
    tgt = jax.random.randint(k_tgt, (TGT_LEN, BATCH), 0, VOCAB_OUT, dtype=jnp.int32)
    src_len = jnp.full((BATCH,), SRC_LEN, jnp.int32)
    tgt_len = jnp.full((BATCH,), TGT_LEN, jnp.int32)

    # One random draw for all teacher-forcing decisions (host-side, static).
    tf_draws = jax.device_get(
        jax.random.uniform(jax.random.PRNGKey(42), (TGT_LEN,)) < TEACHER_FORCING_RATIO)
    teacher_mask = tuple(bool(x) for x in tf_draws)

    seq2seq_forward = make_seq2seq_forward(teacher_mask)
    outputs = seq2seq_forward(enc_params['embedding'], w96, wout, biases,
                              src, src_len, tgt, tgt_len)
    outputs = jax.block_until_ready(outputs)

    assert outputs.shape == (TGT_LEN, BATCH, VOCAB_OUT)
    assert bool(jnp.all(jnp.isfinite(outputs)))
    assert bool(jnp.all(outputs[0] == 0.0))   # outputs[0] left zero as in reference
    print("KERNEL_OK")
</pallas_src>

<mosaic_0001>
module attributes {stable_mosaic.version = 11 : i64} {
  func.func @_seq2seq_kernel(%arg0: memref<8x4x16xbf16, #tpu.memory_space<vmem>>, %arg1: memref<6x4x24xbf16, #tpu.memory_space<vmem>>, %arg2: memref<136x96xbf16, #tpu.memory_space<vmem>>, %arg3: memref<64x24xbf16, #tpu.memory_space<vmem>>, %arg4: memref<5x128xf32, #tpu.memory_space<vmem>>, %arg5: memref<6x4x24xf32, #tpu.memory_space<vmem>>, %arg6: memref<32x32xf32, #tpu.memory_space<vmem>>) attributes {dimension_semantics = [], scalar_prefetch = 0 : i64, scratch_operands = 1 : i64, tpu.core_type = #tpu.core_type<tc>} {
    %c0 = arith.constant 0 : index
    %c0_0 = arith.constant 0 : index
    %0 = vector.load %arg2[%c0, %c0_0] : memref<136x96xbf16, #tpu.memory_space<vmem>>, vector<136x96xbf16>
    %1 = vector.extract_strided_slice %0 {offsets = [0, 0], sizes = [16, 96], strides = [1, 1]} : vector<136x96xbf16> to vector<16x96xbf16>
    %2 = vector.extract_strided_slice %0 {offsets = [16, 0], sizes = [32, 96], strides = [1, 1]} : vector<136x96xbf16> to vector<32x96xbf16>
    %3 = vector.extract_strided_slice %0 {offsets = [48, 0], sizes = [32, 96], strides = [1, 1]} : vector<136x96xbf16> to vector<32x96xbf16>
    %4 = vector.extract_strided_slice %0 {offsets = [80, 0], sizes = [56, 96], strides = [1, 1]} : vector<136x96xbf16> to vector<56x96xbf16>
    %c0_1 = arith.constant 0 : index
    %c0_2 = arith.constant 0 : index
    %5 = vector.load %arg3[%c0_1, %c0_2] : memref<64x24xbf16, #tpu.memory_space<vmem>>, vector<64x24xbf16>
    %c0_3 = arith.constant 0 : index
    %c0_4 = arith.constant 0 : index
    %6 = vector.load %arg4[%c0_3, %c0_4] : memref<5x128xf32, #tpu.memory_space<vmem>>, vector<5x128xf32>
    %7 = vector.extract_strided_slice %6 {offsets = [0, 0], sizes = [1, 96], strides = [1, 1]} : vector<5x128xf32> to vector<1x96xf32>
    %8 = vector.shape_cast %7 : vector<1x96xf32> to vector<1x96xf32>
    %9 = vector.broadcast %8 : vector<1x96xf32> to vector<4x96xf32>
    %10 = vector.extract_strided_slice %6 {offsets = [1, 0], sizes = [1, 32], strides = [1, 1]} : vector<5x128xf32> to vector<1x32xf32>
    %11 = vector.shape_cast %10 : vector<1x32xf32> to vector<1x32xf32>
    %12 = vector.broadcast %11 : vector<1x32xf32> to vector<4x32xf32>
    %13 = vector.extract_strided_slice %6 {offsets = [2, 0], sizes = [1, 96], strides = [1, 1]} : vector<5x128xf32> to vector<1x96xf32>
    %14 = vector.shape_cast %13 : vector<1x96xf32> to vector<1x96xf32>
    %15 = vector.broadcast %14 : vector<1x96xf32> to vector<4x96xf32>
    %16 = vector.extract_strided_slice %6 {offsets = [3, 0], sizes = [1, 32], strides = [1, 1]} : vector<5x128xf32> to vector<1x32xf32>
    %17 = vector.shape_cast %16 : vector<1x32xf32> to vector<1x32xf32>
    %18 = vector.broadcast %17 : vector<1x32xf32> to vector<4x32xf32>
    %19 = vector.extract_strided_slice %6 {offsets = [4, 0], sizes = [1, 24], strides = [1, 1]} : vector<5x128xf32> to vector<1x24xf32>
    %20 = vector.shape_cast %19 : vector<1x24xf32> to vector<1x24xf32>
    %21 = vector.broadcast %20 : vector<1x24xf32> to vector<4x24xf32>
    %cst = arith.constant 0.000000e+00 : f32
    %22 = vector.broadcast %cst : f32 to vector<4x32xf32>
    %c0_5 = arith.constant 0 : index
    %c0_6 = arith.constant 0 : index
    %c0_7 = arith.constant 0 : index
    %23 = vector.load %arg0[%c0_5, %c0_6, %c0_7] : memref<8x4x16xbf16, #tpu.memory_space<vmem>>, vector<1x4x16xbf16>
    %24 = vector.shape_cast %23 : vector<1x4x16xbf16> to vector<4x16xbf16>
    %25 = arith.truncf %22 : vector<4x32xf32> to vector<4x32xbf16>
    %cst_8 = arith.constant dense<0.000000e+00> : vector<4x96xf32>
    %26 = tpu.matmul %24, %1, %cst_8 {dimension_numbers = #tpu.dot_dimension_numbers<[1], [0], [0], [1], [0, 0, 1, 1], [], []>} : vector<4x16xbf16>, vector<16x96xbf16>, vector<4x96xf32> -> vector<4x96xf32>
    %27 = arith.addf %26, %9 : vector<4x96xf32>
    %cst_9 = arith.constant dense<0.000000e+00> : vector<4x96xf32>
    %28 = tpu.matmul %25, %2, %cst_9 {dimension_numbers = #tpu.dot_dimension_numbers<[1], [0], [0], [1], [0, 0, 1, 1], [], []>} : vector<4x32xbf16>, vector<32x96xbf16>, vector<4x96xf32> -> vector<4x96xf32>
    %29 = vector.extract_strided_slice %27 {offsets = [0, 0], sizes = [4, 64], strides = [1, 1]} : vector<4x96xf32> to vector<4x64xf32>
    %30 = vector.extract_strided_slice %28 {offsets = [0, 0], sizes = [4, 64], strides = [1, 1]} : vector<4x96xf32> to vector<4x64xf32>
    %31 = arith.addf %29, %30 : vector<4x64xf32>
    %32 = arith.negf %31 : vector<4x64xf32>
    %33 = math.exp %32 : vector<4x64xf32>
    %cst_10 = arith.constant 1.000000e+00 : f32
    %34 = vector.broadcast %cst_10 : f32 to vector<4x64xf32>
    %35 = arith.addf %34, %33 : vector<4x64xf32>
    %36 = arith.divf %34, %35 : vector<4x64xf32>
    %37 = vector.extract_strided_slice %36 {offsets = [0, 0], sizes = [4, 32], strides = [1, 1]} : vector<4x64xf32> to vector<4x32xf32>
    %38 = vector.extract_strided_slice %36 {offsets = [0, 32], sizes = [4, 32], strides = [1, 1]} : vector<4x64xf32> to vector<4x32xf32>
    %39 = vector.extract_strided_slice %27 {offsets = [0, 64], sizes = [4, 32], strides = [1, 1]} : vector<4x96xf32> to vector<4x32xf32>
    %40 = vector.extract_strided_slice %28 {offsets = [0, 64], sizes = [4, 32], strides = [1, 1]} : vector<4x96xf32> to vector<4x32xf32>
    %41 = arith.addf %40, %12 : vector<4x32xf32>
    %42 = arith.mulf %37, %41 : vector<4x32xf32>
    %43 = arith.addf %39, %42 : vector<4x32xf32>
    %44 = math.tanh %43 : vector<4x32xf32>
    %cst_11 = arith.constant 1.000000e+00 : f32
    %45 = vector.broadcast %cst_11 : f32 to vector<4x32xf32>
    %46 = arith.subf %45, %38 : vector<4x32xf32>
    %47 = arith.mulf %46, %44 : vector<4x32xf32>
    %48 = arith.mulf %38, %22 : vector<4x32xf32>
    %49 = arith.addf %47, %48 : vector<4x32xf32>
    %c0_12 = arith.constant 0 : index
    %c0_13 = arith.constant 0 : index
    %50 = vector.load %arg6[%c0_12, %c0_13] : memref<32x32xf32, #tpu.memory_space<vmem>>, vector<4x32xf32>
    tpu.vector_store %arg6[%c0_12, %c0_13], %49 {strides = array<i32>} : memref<32x32xf32, #tpu.memory_space<vmem>>, vector<4x32xf32>,
    %c1 = arith.constant 1 : index
    %c0_14 = arith.constant 0 : index
    %c0_15 = arith.constant 0 : index
    %51 = vector.load %arg0[%c1, %c0_14, %c0_15] : memref<8x4x16xbf16, #tpu.memory_space<vmem>>, vector<1x4x16xbf16>
    %52 = vector.shape_cast %51 : vector<1x4x16xbf16> to vector<4x16xbf16>
    %53 = arith.truncf %49 : vector<4x32xf32> to vector<4x32xbf16>
    %cst_16 = arith.constant dense<0.000000e+00> : vector<4x96xf32>
    %54 = tpu.matmul %52, %1, %cst_16 {dimension_numbers = #tpu.dot_dimension_numbers<[1], [0], [0], [1], [0, 0, 1, 1], [], []>} : vector<4x16xbf16>, vector<16x96xbf16>, vector<4x96xf32> -> vector<4x96xf32>
    %55 = arith.addf %54, %9 : vector<4x96xf32>
    %cst_17 = arith.constant dense<0.000000e+00> : vector<4x96xf32>
    %56 = tpu.matmul %53, %2, %cst_17 {dimension_numbers = #tpu.dot_dimension_numbers<[1], [0], [0], [1], [0, 0, 1, 1], [], []>} : vector<4x32xbf16>, vector<32x96xbf16>, vector<4x96xf32> -> vector<4x96xf32>
    %57 = vector.extract_strided_slice %55 {offsets = [0, 0], sizes = [4, 64], strides = [1, 1]} : vector<4x96xf32> to vector<4x64xf32>
    %58 = vector.extract_strided_slice %56 {offsets = [0, 0], sizes = [4, 64], strides = [1, 1]} : vector<4x96xf32> to vector<4x64xf32>
    %59 = arith.addf %57, %58 : vector<4x64xf32>
    %60 = arith.negf %59 : vector<4x64xf32>
    %61 = math.exp %60 : vector<4x64xf32>
    %cst_18 = arith.constant 1.000000e+00 : f32
    %62 = vector.broadcast %cst_18 : f32 to vector<4x64xf32>
    %63 = arith.addf %62, %61 : vector<4x64xf32>
    %64 = arith.divf %62, %63 : vector<4x64xf32>
    %65 = vector.extract_strided_slice %64 {offsets = [0, 0], sizes = [4, 32], strides = [1, 1]} : vector<4x64xf32> to vector<4x32xf32>
    %66 = vector.extract_strided_slice %64 {offsets = [0, 32], sizes = [4, 32], strides = [1, 1]} : vector<4x64xf32> to vector<4x32xf32>
    %67 = vector.extract_strided_slice %55 {offsets = [0, 64], sizes = [4, 32], strides = [1, 1]} : vector<4x96xf32> to vector<4x32xf32>
    %68 = vector.extract_strided_slice %56 {offsets = [0, 64], sizes = [4, 32], strides = [1, 1]} : vector<4x96xf32> to vector<4x32xf32>
    %69 = arith.addf %68, %12 : vector<4x32xf32>
    %70 = arith.mulf %65, %69 : vector<4x32xf32>
    %71 = arith.addf %67, %70 : vector<4x32xf32>
    %72 = math.tanh %71 : vector<4x32xf32>
    %cst_19 = arith.constant 1.000000e+00 : f32
    %73 = vector.broadcast %cst_19 : f32 to vector<4x32xf32>
    %74 = arith.subf %73, %66 : vector<4x32xf32>
    %75 = arith.mulf %74, %72 : vector<4x32xf32>
    %76 = arith.mulf %66, %49 : vector<4x32xf32>
    %77 = arith.addf %75, %76 : vector<4x32xf32>
    %c4 = arith.constant 4 : index
    %c0_20 = arith.constant 0 : index
    %78 = vector.load %arg6[%c4, %c0_20] : memref<32x32xf32, #tpu.memory_space<vmem>>, vector<4x32xf32>
    tpu.vector_store %arg6[%c4, %c0_20], %77 {strides = array<i32>} : memref<32x32xf32, #tpu.memory_space<vmem>>, vector<4x32xf32>,
    %c2 = arith.constant 2 : index
    %c0_21 = arith.constant 0 : index
    %c0_22 = arith.constant 0 : index
    %79 = vector.load %arg0[%c2, %c0_21, %c0_22] : memref<8x4x16xbf16, #tpu.memory_space<vmem>>, vector<1x4x16xbf16>
    %80 = vector.shape_cast %79 : vector<1x4x16xbf16> to vector<4x16xbf16>
    %81 = arith.truncf %77 : vector<4x32xf32> to vector<4x32xbf16>
    %cst_23 = arith.constant dense<0.000000e+00> : vector<4x96xf32>
    %82 = tpu.matmul %80, %1, %cst_23 {dimension_numbers = #tpu.dot_dimension_numbers<[1], [0], [0], [1], [0, 0, 1, 1], [], []>} : vector<4x16xbf16>, vector<16x96xbf16>, vector<4x96xf32> -> vector<4x96xf32>
    %83 = arith.addf %82, %9 : vector<4x96xf32>
    %cst_24 = arith.constant dense<0.000000e+00> : vector<4x96xf32>
    %84 = tpu.matmul %81, %2, %cst_24 {dimension_numbers = #tpu.dot_dimension_numbers<[1], [0], [0], [1], [0, 0, 1, 1], [], []>} : vector<4x32xbf16>, vector<32x96xbf16>, vector<4x96xf32> -> vector<4x96xf32>
    %85 = vector.extract_strided_slice %83 {offsets = [0, 0], sizes = [4, 64], strides = [1, 1]} : vector<4x96xf32> to vector<4x64xf32>
    %86 = vector.extract_strided_slice %84 {offsets = [0, 0], sizes = [4, 64], strides = [1, 1]} : vector<4x96xf32> to vector<4x64xf32>
    %87 = arith.addf %85, %86 : vector<4x64xf32>
    %88 = arith.negf %87 : vector<4x64xf32>
    %89 = math.exp %88 : vector<4x64xf32>
    %cst_25 = arith.constant 1.000000e+00 : f32
    %90 = vector.broadcast %cst_25 : f32 to vector<4x64xf32>
    %91 = arith.addf %90, %89 : vector<4x64xf32>
    %92 = arith.divf %90, %91 : vector<4x64xf32>
    %93 = vector.extract_strided_slice %92 {offsets = [0, 0], sizes = [4, 32], strides = [1, 1]} : vector<4x64xf32> to vector<4x32xf32>
    %94 = vector.extract_strided_slice %92 {offsets = [0, 32], sizes = [4, 32], strides = [1, 1]} : vector<4x64xf32> to vector<4x32xf32>
    %95 = vector.extract_strided_slice %83 {offsets = [0, 64], sizes = [4, 32], strides = [1, 1]} : vector<4x96xf32> to vector<4x32xf32>
    %96 = vector.extract_strided_slice %84 {offsets = [0, 64], sizes = [4, 32], strides = [1, 1]} : vector<4x96xf32> to vector<4x32xf32>
    %97 = arith.addf %96, %12 : vector<4x32xf32>
    %98 = arith.mulf %93, %97 : vector<4x32xf32>
    %99 = arith.addf %95, %98 : vector<4x32xf32>
    %100 = math.tanh %99 : vector<4x32xf32>
    %cst_26 = arith.constant 1.000000e+00 : f32
    %101 = vector.broadcast %cst_26 : f32 to vector<4x32xf32>
    %102 = arith.subf %101, %94 : vector<4x32xf32>
    %103 = arith.mulf %102, %100 : vector<4x32xf32>
    %104 = arith.mulf %94, %77 : vector<4x32xf32>
    %105 = arith.addf %103, %104 : vector<4x32xf32>
    %c8 = arith.constant 8 : index
    %c0_27 = arith.constant 0 : index
    %106 = vector.load %arg6[%c8, %c0_27] : memref<32x32xf32, #tpu.memory_space<vmem>>, vector<4x32xf32>
    tpu.vector_store %arg6[%c8, %c0_27], %105 {strides = array<i32>} : memref<32x32xf32, #tpu.memory_space<vmem>>, vector<4x32xf32>,
    %c3 = arith.constant 3 : index
    %c0_28 = arith.constant 0 : index
    %c0_29 = arith.constant 0 : index
    %107 = vector.load %arg0[%c3, %c0_28, %c0_29] : memref<8x4x16xbf16, #tpu.memory_space<vmem>>, vector<1x4x16xbf16>
    %108 = vector.shape_cast %107 : vector<1x4x16xbf16> to vector<4x16xbf16>
    %109 = arith.truncf %105 : vector<4x32xf32> to vector<4x32xbf16>
    %cst_30 = arith.constant dense<0.000000e+00> : vector<4x96xf32>
    %110 = tpu.matmul %108, %1, %cst_30 {dimension_numbers = #tpu.dot_dimension_numbers<[1], [0], [0], [1], [0, 0, 1, 1], [], []>} : vector<4x16xbf16>, vector<16x96xbf16>, vector<4x96xf32> -> vector<4x96xf32>
    %111 = arith.addf %110, %9 : vector<4x96xf32>
    %cst_31 = arith.constant dense<0.000000e+00> : vector<4x96xf32>
    %112 = tpu.matmul %109, %2, %cst_31 {dimension_numbers = #tpu.dot_dimension_numbers<[1], [0], [0], [1], [0, 0, 1, 1], [], []>} : vector<4x32xbf16>, vector<32x96xbf16>, vector<4x96xf32> -> vector<4x96xf32>
    %113 = vector.extract_strided_slice %111 {offsets = [0, 0], sizes = [4, 64], strides = [1, 1]} : vector<4x96xf32> to vector<4x64xf32>
    %114 = vector.extract_strided_slice %112 {offsets = [0, 0], sizes = [4, 64], strides = [1, 1]} : vector<4x96xf32> to vector<4x64xf32>
    %115 = arith.addf %113, %114 : vector<4x64xf32>
    %116 = arith.negf %115 : vector<4x64xf32>
    %117 = math.exp %116 : vector<4x64xf32>
    %cst_32 = arith.constant 1.000000e+00 : f32
    %118 = vector.broadcast %cst_32 : f32 to vector<4x64xf32>
    %119 = arith.addf %118, %117 : vector<4x64xf32>
    %120 = arith.divf %118, %119 : vector<4x64xf32>
    %121 = vector.extract_strided_slice %120 {offsets = [0, 0], sizes = [4, 32], strides = [1, 1]} : vector<4x64xf32> to vector<4x32xf32>
    %122 = vector.extract_strided_slice %120 {offsets = [0, 32], sizes = [4, 32], strides = [1, 1]} : vector<4x64xf32> to vector<4x32xf32>
    %123 = vector.extract_strided_slice %111 {offsets = [0, 64], sizes = [4, 32], strides = [1, 1]} : vector<4x96xf32> to vector<4x32xf32>
    %124 = vector.extract_strided_slice %112 {offsets = [0, 64], sizes = [4, 32], strides = [1, 1]} : vector<4x96xf32> to vector<4x32xf32>
    %125 = arith.addf %124, %12 : vector<4x32xf32>
    %126 = arith.mulf %121, %125 : vector<4x32xf32>
    %127 = arith.addf %123, %126 : vector<4x32xf32>
    %128 = math.tanh %127 : vector<4x32xf32>
    %cst_33 = arith.constant 1.000000e+00 : f32
    %129 = vector.broadcast %cst_33 : f32 to vector<4x32xf32>
    %130 = arith.subf %129, %122 : vector<4x32xf32>
    %131 = arith.mulf %130, %128 : vector<4x32xf32>
    %132 = arith.mulf %122, %105 : vector<4x32xf32>
    %133 = arith.addf %131, %132 : vector<4x32xf32>
    %c12 = arith.constant 12 : index
    %c0_34 = arith.constant 0 : index
    %134 = vector.load %arg6[%c12, %c0_34] : memref<32x32xf32, #tpu.memory_space<vmem>>, vector<4x32xf32>
    tpu.vector_store %arg6[%c12, %c0_34], %133 {strides = array<i32>} : memref<32x32xf32, #tpu.memory_space<vmem>>, vector<4x32xf32>,
    %c4_35 = arith.constant 4 : index
    %c0_36 = arith.constant 0 : index
    %c0_37 = arith.constant 0 : index
    %135 = vector.load %arg0[%c4_35, %c0_36, %c0_37] : memref<8x4x16xbf16, #tpu.memory_space<vmem>>, vector<1x4x16xbf16>
    %136 = vector.shape_cast %135 : vector<1x4x16xbf16> to vector<4x16xbf16>
    %137 = arith.truncf %133 : vector<4x32xf32> to vector<4x32xbf16>
    %cst_38 = arith.constant dense<0.000000e+00> : vector<4x96xf32>
    %138 = tpu.matmul %136, %1, %cst_38 {dimension_numbers = #tpu.dot_dimension_numbers<[1], [0], [0], [1], [0, 0, 1, 1], [], []>} : vector<4x16xbf16>, vector<16x96xbf16>, vector<4x96xf32> -> vector<4x96xf32>
    %139 = arith.addf %138, %9 : vector<4x96xf32>
    %cst_39 = arith.constant dense<0.000000e+00> : vector<4x96xf32>
    %140 = tpu.matmul %137, %2, %cst_39 {dimension_numbers = #tpu.dot_dimension_numbers<[1], [0], [0], [1], [0, 0, 1, 1], [], []>} : vector<4x32xbf16>, vector<32x96xbf16>, vector<4x96xf32> -> vector<4x96xf32>
    %141 = vector.extract_strided_slice %139 {offsets = [0, 0], sizes = [4, 64], strides = [1, 1]} : vector<4x96xf32> to vector<4x64xf32>
    %142 = vector.extract_strided_slice %140 {offsets = [0, 0], sizes = [4, 64], strides = [1, 1]} : vector<4x96xf32> to vector<4x64xf32>
    %143 = arith.addf %141, %142 : vector<4x64xf32>
    %144 = arith.negf %143 : vector<4x64xf32>
    %145 = math.exp %144 : vector<4x64xf32>
    %cst_40 = arith.constant 1.000000e+00 : f32
    %146 = vector.broadcast %cst_40 : f32 to vector<4x64xf32>
    %147 = arith.addf %146, %145 : vector<4x64xf32>
    %148 = arith.divf %146, %147 : vector<4x64xf32>
    %149 = vector.extract_strided_slice %148 {offsets = [0, 0], sizes = [4, 32], strides = [1, 1]} : vector<4x64xf32> to vector<4x32xf32>
    %150 = vector.extract_strided_slice %148 {offsets = [0, 32], sizes = [4, 32], strides = [1, 1]} : vector<4x64xf32> to vector<4x32xf32>
    %151 = vector.extract_strided_slice %139 {offsets = [0, 64], sizes = [4, 32], strides = [1, 1]} : vector<4x96xf32> to vector<4x32xf32>
    %152 = vector.extract_strided_slice %140 {offsets = [0, 64], sizes = [4, 32], strides = [1, 1]} : vector<4x96xf32> to vector<4x32xf32>
    %153 = arith.addf %152, %12 : vector<4x32xf32>
    %154 = arith.mulf %149, %153 : vector<4x32xf32>
    %155 = arith.addf %151, %154 : vector<4x32xf32>
    %156 = math.tanh %155 : vector<4x32xf32>
    %cst_41 = arith.constant 1.000000e+00 : f32
    %157 = vector.broadcast %cst_41 : f32 to vector<4x32xf32>
    %158 = arith.subf %157, %150 : vector<4x32xf32>
    %159 = arith.mulf %158, %156 : vector<4x32xf32>
    %160 = arith.mulf %150, %133 : vector<4x32xf32>
    %161 = arith.addf %159, %160 : vector<4x32xf32>
    %c16 = arith.constant 16 : index
    %c0_42 = arith.constant 0 : index
    %162 = vector.load %arg6[%c16, %c0_42] : memref<32x32xf32, #tpu.memory_space<vmem>>, vector<4x32xf32>
    tpu.vector_store %arg6[%c16, %c0_42], %161 {strides = array<i32>} : memref<32x32xf32, #tpu.memory_space<vmem>>, vector<4x32xf32>,
    %c5 = arith.constant 5 : index
    %c0_43 = arith.constant 0 : index
    %c0_44 = arith.constant 0 : index
    %163 = vector.load %arg0[%c5, %c0_43, %c0_44] : memref<8x4x16xbf16, #tpu.memory_space<vmem>>, vector<1x4x16xbf16>
    %164 = vector.shape_cast %163 : vector<1x4x16xbf16> to vector<4x16xbf16>
    %165 = arith.truncf %161 : vector<4x32xf32> to vector<4x32xbf16>
    %cst_45 = arith.constant dense<0.000000e+00> : vector<4x96xf32>
    %166 = tpu.matmul %164, %1, %cst_45 {dimension_numbers = #tpu.dot_dimension_numbers<[1], [0], [0], [1], [0, 0, 1, 1], [], []>} : vector<4x16xbf16>, vector<16x96xbf16>, vector<4x96xf32> -> vector<4x96xf32>
    %167 = arith.addf %166, %9 : vector<4x96xf32>
    %cst_46 = arith.constant dense<0.000000e+00> : vector<4x96xf32>
    %168 = tpu.matmul %165, %2, %cst_46 {dimension_numbers = #tpu.dot_dimension_numbers<[1], [0], [0], [1], [0, 0, 1, 1], [], []>} : vector<4x32xbf16>, vector<32x96xbf16>, vector<4x96xf32> -> vector<4x96xf32>
    %169 = vector.extract_strided_slice %167 {offsets = [0, 0], sizes = [4, 64], strides = [1, 1]} : vector<4x96xf32> to vector<4x64xf32>
    %170 = vector.extract_strided_slice %168 {offsets = [0, 0], sizes = [4, 64], strides = [1, 1]} : vector<4x96xf32> to vector<4x64xf32>
    %171 = arith.addf %169, %170 : vector<4x64xf32>
    %172 = arith.negf %171 : vector<4x64xf32>
    %173 = math.exp %172 : vector<4x64xf32>
    %cst_47 = arith.constant 1.000000e+00 : f32
    %174 = vector.broadcast %cst_47 : f32 to vector<4x64xf32>
    %175 = arith.addf %174, %173 : vector<4x64xf32>
    %176 = arith.divf %174, %175 : vector<4x64xf32>
    %177 = vector.extract_strided_slice %176 {offsets = [0, 0], sizes = [4, 32], strides = [1, 1]} : vector<4x64xf32> to vector<4x32xf32>
    %178 = vector.extract_strided_slice %176 {offsets = [0, 32], sizes = [4, 32], strides = [1, 1]} : vector<4x64xf32> to vector<4x32xf32>
    %179 = vector.extract_strided_slice %167 {offsets = [0, 64], sizes = [4, 32], strides = [1, 1]} : vector<4x96xf32> to vector<4x32xf32>
    %180 = vector.extract_strided_slice %168 {offsets = [0, 64], sizes = [4, 32], strides = [1, 1]} : vector<4x96xf32> to vector<4x32xf32>
    %181 = arith.addf %180, %12 : vector<4x32xf32>
    %182 = arith.mulf %177, %181 : vector<4x32xf32>
    %183 = arith.addf %179, %182 : vector<4x32xf32>
    %184 = math.tanh %183 : vector<4x32xf32>
    %cst_48 = arith.constant 1.000000e+00 : f32
    %185 = vector.broadcast %cst_48 : f32 to vector<4x32xf32>
    %186 = arith.subf %185, %178 : vector<4x32xf32>
    %187 = arith.mulf %186, %184 : vector<4x32xf32>
    %188 = arith.mulf %178, %161 : vector<4x32xf32>
    %189 = arith.addf %187, %188 : vector<4x32xf32>
    %c20 = arith.constant 20 : index
    %c0_49 = arith.constant 0 : index
    %190 = vector.load %arg6[%c20, %c0_49] : memref<32x32xf32, #tpu.memory_space<vmem>>, vector<4x32xf32>
    tpu.vector_store %arg6[%c20, %c0_49], %189 {strides = array<i32>} : memref<32x32xf32, #tpu.memory_space<vmem>>, vector<4x32xf32>,
    %c6 = arith.constant 6 : index
    %c0_50 = arith.constant 0 : index
    %c0_51 = arith.constant 0 : index
    %191 = vector.load %arg0[%c6, %c0_50, %c0_51] : memref<8x4x16xbf16, #tpu.memory_space<vmem>>, vector<1x4x16xbf16>
    %192 = vector.shape_cast %191 : vector<1x4x16xbf16> to vector<4x16xbf16>
    %193 = arith.truncf %189 : vector<4x32xf32> to vector<4x32xbf16>
    %cst_52 = arith.constant dense<0.000000e+00> : vector<4x96xf32>
    %194 = tpu.matmul %192, %1, %cst_52 {dimension_numbers = #tpu.dot_dimension_numbers<[1], [0], [0], [1], [0, 0, 1, 1], [], []>} : vector<4x16xbf16>, vector<16x96xbf16>, vector<4x96xf32> -> vector<4x96xf32>
    %195 = arith.addf %194, %9 : vector<4x96xf32>
    %cst_53 = arith.constant dense<0.000000e+00> : vector<4x96xf32>
    %196 = tpu.matmul %193, %2, %cst_53 {dimension_numbers = #tpu.dot_dimension_numbers<[1], [0], [0], [1], [0, 0, 1, 1], [], []>} : vector<4x32xbf16>, vector<32x96xbf16>, vector<4x96xf32> -> vector<4x96xf32>
    %197 = vector.extract_strided_slice %195 {offsets = [0, 0], sizes = [4, 64], strides = [1, 1]} : vector<4x96xf32> to vector<4x64xf32>
    %198 = vector.extract_strided_slice %196 {offsets = [0, 0], sizes = [4, 64], strides = [1, 1]} : vector<4x96xf32> to vector<4x64xf32>
    %199 = arith.addf %197, %198 : vector<4x64xf32>
    %200 = arith.negf %199 : vector<4x64xf32>
    %201 = math.exp %200 : vector<4x64xf32>
    %cst_54 = arith.constant 1.000000e+00 : f32
    %202 = vector.broadcast %cst_54 : f32 to vector<4x64xf32>
    %203 = arith.addf %202, %201 : vector<4x64xf32>
    %204 = arith.divf %202, %203 : vector<4x64xf32>
    %205 = vector.extract_strided_slice %204 {offsets = [0, 0], sizes = [4, 32], strides = [1, 1]} : vector<4x64xf32> to vector<4x32xf32>
    %206 = vector.extract_strided_slice %204 {offsets = [0, 32], sizes = [4, 32], strides = [1, 1]} : vector<4x64xf32> to vector<4x32xf32>
    %207 = vector.extract_strided_slice %195 {offsets = [0, 64], sizes = [4, 32], strides = [1, 1]} : vector<4x96xf32> to vector<4x32xf32>
    %208 = vector.extract_strided_slice %196 {offsets = [0, 64], sizes = [4, 32], strides = [1, 1]} : vector<4x96xf32> to vector<4x32xf32>
    %209 = arith.addf %208, %12 : vector<4x32xf32>
    %210 = arith.mulf %205, %209 : vector<4x32xf32>
    %211 = arith.addf %207, %210 : vector<4x32xf32>
    %212 = math.tanh %211 : vector<4x32xf32>
    %cst_55 = arith.constant 1.000000e+00 : f32
    %213 = vector.broadcast %cst_55 : f32 to vector<4x32xf32>
    %214 = arith.subf %213, %206 : vector<4x32xf32>
    %215 = arith.mulf %214, %212 : vector<4x32xf32>
    %216 = arith.mulf %206, %189 : vector<4x32xf32>
    %217 = arith.addf %215, %216 : vector<4x32xf32>
    %c24 = arith.constant 24 : index
    %c0_56 = arith.constant 0 : index
    %218 = vector.load %arg6[%c24, %c0_56] : memref<32x32xf32, #tpu.memory_space<vmem>>, vector<4x32xf32>
    tpu.vector_store %arg6[%c24, %c0_56], %217 {strides = array<i32>} : memref<32x32xf32, #tpu.memory_space<vmem>>, vector<4x32xf32>,
    %c7 = arith.constant 7 : index
    %c0_57 = arith.constant 0 : index
    %c0_58 = arith.constant 0 : index
    %219 = vector.load %arg0[%c7, %c0_57, %c0_58] : memref<8x4x16xbf16, #tpu.memory_space<vmem>>, vector<1x4x16xbf16>
    %220 = vector.shape_cast %219 : vector<1x4x16xbf16> to vector<4x16xbf16>
    %221 = arith.truncf %217 : vector<4x32xf32> to vector<4x32xbf16>
    %cst_59 = arith.constant dense<0.000000e+00> : vector<4x96xf32>
    %222 = tpu.matmul %220, %1, %cst_59 {dimension_numbers = #tpu.dot_dimension_numbers<[1], [0], [0], [1], [0, 0, 1, 1], [], []>} : vector<4x16xbf16>, vector<16x96xbf16>, vector<4x96xf32> -> vector<4x96xf32>
    %223 = arith.addf %222, %9 : vector<4x96xf32>
    %cst_60 = arith.constant dense<0.000000e+00> : vector<4x96xf32>
    %224 = tpu.matmul %221, %2, %cst_60 {dimension_numbers = #tpu.dot_dimension_numbers<[1], [0], [0], [1], [0, 0, 1, 1], [], []>} : vector<4x32xbf16>, vector<32x96xbf16>, vector<4x96xf32> -> vector<4x96xf32>
    %225 = vector.extract_strided_slice %223 {offsets = [0, 0], sizes = [4, 64], strides = [1, 1]} : vector<4x96xf32> to vector<4x64xf32>
    %226 = vector.extract_strided_slice %224 {offsets = [0, 0], sizes = [4, 64], strides = [1, 1]} : vector<4x96xf32> to vector<4x64xf32>
    %227 = arith.addf %225, %226 : vector<4x64xf32>
    %228 = arith.negf %227 : vector<4x64xf32>
    %229 = math.exp %228 : vector<4x64xf32>
    %cst_61 = arith.constant 1.000000e+00 : f32
    %230 = vector.broadcast %cst_61 : f32 to vector<4x64xf32>
    %231 = arith.addf %230, %229 : vector<4x64xf32>
    %232 = arith.divf %230, %231 : vector<4x64xf32>
    %233 = vector.extract_strided_slice %232 {offsets = [0, 0], sizes = [4, 32], strides = [1, 1]} : vector<4x64xf32> to vector<4x32xf32>
    %234 = vector.extract_strided_slice %232 {offsets = [0, 32], sizes = [4, 32], strides = [1, 1]} : vector<4x64xf32> to vector<4x32xf32>
    %235 = vector.extract_strided_slice %223 {offsets = [0, 64], sizes = [4, 32], strides = [1, 1]} : vector<4x96xf32> to vector<4x32xf32>
    %236 = vector.extract_strided_slice %224 {offsets = [0, 64], sizes = [4, 32], strides = [1, 1]} : vector<4x96xf32> to vector<4x32xf32>
    %237 = arith.addf %236, %12 : vector<4x32xf32>
    %238 = arith.mulf %233, %237 : vector<4x32xf32>
    %239 = arith.addf %235, %238 : vector<4x32xf32>
    %240 = math.tanh %239 : vector<4x32xf32>
    %cst_62 = arith.constant 1.000000e+00 : f32
    %241 = vector.broadcast %cst_62 : f32 to vector<4x32xf32>
    %242 = arith.subf %241, %234 : vector<4x32xf32>
    %243 = arith.mulf %242, %240 : vector<4x32xf32>
    %244 = arith.mulf %234, %217 : vector<4x32xf32>
    %245 = arith.addf %243, %244 : vector<4x32xf32>
    %c28 = arith.constant 28 : index
    %c0_63 = arith.constant 0 : index
    %246 = vector.load %arg6[%c28, %c0_63] : memref<32x32xf32, #tpu.memory_space<vmem>>, vector<4x32xf32>
    tpu.vector_store %arg6[%c28, %c0_63], %245 {strides = array<i32>} : memref<32x32xf32, #tpu.memory_space<vmem>>, vector<4x32xf32>,
    %c0_64 = arith.constant 0 : index
    %c0_65 = arith.constant 0 : index
    %247 = vector.load %arg6[%c0_64, %c0_65] : memref<32x32xf32, #tpu.memory_space<vmem>>, vector<32x32xf32>
    %248 = arith.truncf %247 : vector<32x32xf32> to vector<32x32xbf16>
    %249 = tpu.transpose %247, [1, 0] : vector<32x32xf32> -> vector<32x32xf32>
    %250 = arith.truncf %249 : vector<32x32xf32> to vector<32x32xbf16>
    %251 = tpu.iota {dimensions = array<i32: 1>} : vector<4x32xi32>
    %c4_i32 = arith.constant 4 : i32
    %c0_i32 = arith.constant 0 : i32
    %252 = arith.cmpi eq, %c4_i32, %c0_i32 : i32
    %c1_i32 = arith.constant 1 : i32
    %253 = arith.select %252, %c1_i32, %c4_i32 : i32
    %254 = vector.broadcast %253 : i32 to vector<4x32xi32>
    %255 = arith.remsi %251, %254 : vector<4x32xi32>
    %c0_i32_66 = arith.constant 0 : i32
    %256 = vector.broadcast %c0_i32_66 : i32 to vector<4x32xi32>
    %257 = arith.cmpi ne, %255, %256 : vector<4x32xi32>
    %c0_i32_67 = arith.constant 0 : i32
    %258 = vector.broadcast %c0_i32_67 : i32 to vector<4x32xi32>
    %259 = arith.cmpi slt, %255, %258 : vector<4x32xi32>
    %c0_i32_68 = arith.constant 0 : i32
    %260 = arith.cmpi slt, %253, %c0_i32_68 : i32
    %261 = vector.broadcast %260 : i1 to vector<4x32xi1>
    %262 = vector.broadcast %261 : vector<4x32xi1> to vector<4x32xi1>
    %263 = arith.xori %259, %262 : vector<4x32xi1>
    %264 = arith.andi %263, %257 : vector<4x32xi1>
    %265 = vector.broadcast %253 : i32 to vector<4x32xi32>
    %266 = arith.addi %255, %265 : vector<4x32xi32>
    %267 = arith.select %264, %266, %255 : vector<4x32xi1>, vector<4x32xi32>
    %268 = tpu.iota {dimensions = array<i32: 0>} : vector<4x32xi32>
    %269 = arith.cmpi eq, %267, %268 : vector<4x32xi32>
    %270 = tpu.iota {dimensions = array<i32: 1>} : vector<4x24xi32>
    %cst_69 = arith.constant 0.000000e+00 : f32
    %271 = vector.broadcast %cst_69 : f32 to vector<4x24xf32>
    %c0_70 = arith.constant 0 : index
    %c0_71 = arith.constant 0 : index
    %c0_72 = arith.constant 0 : index
    %272 = vector.load %arg5[%c0_70, %c0_71, %c0_72] : memref<6x4x24xf32, #tpu.memory_space<vmem>>, vector<1x4x24xf32>
    %273 = vector.shape_cast %272 : vector<1x4x24xf32> to vector<4x24xf32>
    %274 = vector.shape_cast %271 : vector<4x24xf32> to vector<1x4x24xf32>
    tpu.vector_store %arg5[%c0_70, %c0_71, %c0_72], %274 {strides = array<i32>} : memref<6x4x24xf32, #tpu.memory_space<vmem>>, vector<1x4x24xf32>,
    %c0_73 = arith.constant 0 : index
    %c0_74 = arith.constant 0 : index
    %c0_75 = arith.constant 0 : index
    %275 = vector.load %arg1[%c0_73, %c0_74, %c0_75] : memref<6x4x24xbf16, #tpu.memory_space<vmem>>, vector<1x4x24xbf16>
    %276 = vector.shape_cast %275 : vector<1x4x24xbf16> to vector<4x24xbf16>
    %277 = arith.truncf %245 : vector<4x32xf32> to vector<4x32xbf16>
    %cst_76 = arith.constant dense<0.000000e+00> : vector<4x32xf32>
    %278 = tpu.matmul %277, %250, %cst_76 {dimension_numbers = #tpu.dot_dimension_numbers<[1], [0], [0], [1], [0, 0, 1, 1], [], []>} : vector<4x32xbf16>, vector<32x32xbf16>, vector<4x32xf32> -> vector<4x32xf32>
    %cst_77 = arith.constant -1.000000e+30 : f32
    %279 = vector.broadcast %cst_77 : f32 to vector<4x32xf32>
    %280 = arith.select %269, %278, %279 : vector<4x32xi1>, vector<4x32xf32>
    %cst_78 = arith.constant dense<0xFF800000> : vector<4xf32>
    %281 = vector.multi_reduction <maximumf>, %280, %cst_78 [1] : vector<4x32xf32> to vector<4xf32>
    %282 = vector.shape_cast %281 : vector<4xf32> to vector<4x1xf32>
    %283 = vector.broadcast %282 : vector<4x1xf32> to vector<4x32xf32>
    %284 = arith.subf %280, %283 : vector<4x32xf32>
    %285 = math.exp %284 : vector<4x32xf32>
    %cst_79 = arith.constant dense<0.000000e+00> : vector<4xf32>
    %286 = vector.multi_reduction <add>, %285, %cst_79 [1] : vector<4x32xf32> to vector<4xf32>
    %287 = vector.shape_cast %286 : vector<4xf32> to vector<4x1xf32>
    %288 = vector.broadcast %287 : vector<4x1xf32> to vector<4x32xf32>
    %289 = arith.divf %285, %288 : vector<4x32xf32>
    %290 = arith.truncf %289 : vector<4x32xf32> to vector<4x32xbf16>
    %cst_80 = arith.constant dense<0.000000e+00> : vector<4x32xf32>
    %291 = tpu.matmul %290, %248, %cst_80 {dimension_numbers = #tpu.dot_dimension_numbers<[1], [0], [0], [1], [0, 0, 1, 1], [], []>} : vector<4x32xbf16>, vector<32x32xbf16>, vector<4x32xf32> -> vector<4x32xf32>
    %292 = arith.truncf %291 : vector<4x32xf32> to vector<4x32xbf16>
    %293 = tpu.concatenate %276, %292 in 1 : vector<4x24xbf16>, vector<4x32xbf16> -> vector<4x56xbf16>
    %cst_81 = arith.constant dense<0.000000e+00> : vector<4x96xf32>
    %294 = tpu.matmul %293, %4, %cst_81 {dimension_numbers = #tpu.dot_dimension_numbers<[1], [0], [0], [1], [0, 0, 1, 1], [], []>} : vector<4x56xbf16>, vector<56x96xbf16>, vector<4x96xf32> -> vector<4x96xf32>
    %295 = arith.addf %294, %15 : vector<4x96xf32>
    %cst_82 = arith.constant dense<0.000000e+00> : vector<4x96xf32>
    %296 = tpu.matmul %277, %3, %cst_82 {dimension_numbers = #tpu.dot_dimension_numbers<[1], [0], [0], [1], [0, 0, 1, 1], [], []>} : vector<4x32xbf16>, vector<32x96xbf16>, vector<4x96xf32> -> vector<4x96xf32>
    %297 = vector.extract_strided_slice %295 {offsets = [0, 0], sizes = [4, 64], strides = [1, 1]} : vector<4x96xf32> to vector<4x64xf32>
    %298 = vector.extract_strided_slice %296 {offsets = [0, 0], sizes = [4, 64], strides = [1, 1]} : vector<4x96xf32> to vector<4x64xf32>
    %299 = arith.addf %297, %298 : vector<4x64xf32>
    %300 = arith.negf %299 : vector<4x64xf32>
    %301 = math.exp %300 : vector<4x64xf32>
    %cst_83 = arith.constant 1.000000e+00 : f32
    %302 = vector.broadcast %cst_83 : f32 to vector<4x64xf32>
    %303 = arith.addf %302, %301 : vector<4x64xf32>
    %304 = arith.divf %302, %303 : vector<4x64xf32>
    %305 = vector.extract_strided_slice %304 {offsets = [0, 0], sizes = [4, 32], strides = [1, 1]} : vector<4x64xf32> to vector<4x32xf32>
    %306 = vector.extract_strided_slice %304 {offsets = [0, 32], sizes = [4, 32], strides = [1, 1]} : vector<4x64xf32> to vector<4x32xf32>
    %307 = vector.extract_strided_slice %295 {offsets = [0, 64], sizes = [4, 32], strides = [1, 1]} : vector<4x96xf32> to vector<4x32xf32>
    %308 = vector.extract_strided_slice %296 {offsets = [0, 64], sizes = [4, 32], strides = [1, 1]} : vector<4x96xf32> to vector<4x32xf32>
    %309 = arith.addf %308, %18 : vector<4x32xf32>
    %310 = arith.mulf %305, %309 : vector<4x32xf32>
    %311 = arith.addf %307, %310 : vector<4x32xf32>
    %312 = math.tanh %311 : vector<4x32xf32>
    %cst_84 = arith.constant 1.000000e+00 : f32
    %313 = vector.broadcast %cst_84 : f32 to vector<4x32xf32>
    %314 = arith.subf %313, %306 : vector<4x32xf32>
    %315 = arith.mulf %314, %312 : vector<4x32xf32>
    %316 = arith.mulf %306, %245 : vector<4x32xf32>
    %317 = arith.addf %315, %316 : vector<4x32xf32>
    %318 = arith.truncf %317 : vector<4x32xf32> to vector<4x32xbf16>
    %319 = tpu.concatenate %318, %292 in 1 : vector<4x32xbf16>, vector<4x32xbf16> -> vector<4x64xbf16>
    %cst_85 = arith.constant dense<0.000000e+00> : vector<4x24xf32>
    %320 = tpu.matmul %319, %5, %cst_85 {dimension_numbers = #tpu.dot_dimension_numbers<[1], [0], [0], [1], [0, 0, 1, 1], [], []>} : vector<4x64xbf16>, vector<64x24xbf16>, vector<4x24xf32> -> vector<4x24xf32>
    %321 = arith.addf %320, %21 : vector<4x24xf32>
    %cst_86 = arith.constant dense<0xFF800000> : vector<4xf32>
    %322 = vector.multi_reduction <maximumf>, %321, %cst_86 [1] : vector<4x24xf32> to vector<4xf32>
    %323 = vector.shape_cast %322 : vector<4xf32> to vector<4x1xf32>
    %324 = vector.broadcast %323 : vector<4x1xf32> to vector<4x24xf32>
    %325 = arith.cmpf oeq, %321, %324 : vector<4x24xf32>
    %c24_i32 = arith.constant 24 : i32
    %326 = vector.broadcast %c24_i32 : i32 to vector<4x24xi32>
    %327 = arith.select %325, %270, %326 : vector<4x24xi1>, vector<4x24xi32>
    %cst_87 = arith.constant dense<2147483647> : vector<4xi32>
    %328 = vector.multi_reduction <minsi>, %327, %cst_87 [1] : vector<4x24xi32> to vector<4xi32>
    %329 = vector.shape_cast %328 : vector<4xi32> to vector<4x1xi32>
    %330 = vector.broadcast %329 : vector<4x1xi32> to vector<4x24xi32>
    %331 = arith.cmpi eq, %270, %330 : vector<4x24xi32>
    %332 = arith.extui %331 : vector<4x24xi1> to vector<4x24xi32>
    %333 = arith.sitofp %332 : vector<4x24xi32> to vector<4x24xf32>
    %334 = arith.truncf %333 : vector<4x24xf32> to vector<4x24xbf16>
    %cst_88 = arith.constant dense<0xFF800000> : vector<4xf32>
    %335 = vector.multi_reduction <maximumf>, %321, %cst_88 [1] : vector<4x24xf32> to vector<4xf32>
    %336 = vector.shape_cast %335 : vector<4xf32> to vector<4x1xf32>
    %337 = vector.broadcast %336 : vector<4x1xf32> to vector<4x24xf32>
    %338 = arith.subf %321, %337 : vector<4x24xf32>
    %339 = math.exp %338 : vector<4x24xf32>
    %cst_89 = arith.constant dense<0.000000e+00> : vector<4xf32>
    %340 = vector.multi_reduction <add>, %339, %cst_89 [1] : vector<4x24xf32> to vector<4xf32>
    %341 = vector.shape_cast %340 : vector<4xf32> to vector<4x1xf32>
    %342 = math.log %341 : vector<4x1xf32>
    %343 = arith.addf %336, %342 : vector<4x1xf32>
    %344 = vector.broadcast %343 : vector<4x1xf32> to vector<4x24xf32>
    %345 = arith.subf %321, %344 : vector<4x24xf32>
    %c1_90 = arith.constant 1 : index
    %c0_91 = arith.constant 0 : index
    %c0_92 = arith.constant 0 : index
    %346 = vector.load %arg5[%c1_90, %c0_91, %c0_92] : memref<6x4x24xf32, #tpu.memory_space<vmem>>, vector<1x4x24xf32>
    %347 = vector.shape_cast %346 : vector<1x4x24xf32> to vector<4x24xf32>
    %348 = vector.shape_cast %345 : vector<4x24xf32> to vector<1x4x24xf32>
    tpu.vector_store %arg5[%c1_90, %c0_91, %c0_92], %348 {strides = array<i32>} : memref<6x4x24xf32, #tpu.memory_space<vmem>>, vector<1x4x24xf32>,
    %349 = arith.truncf %317 : vector<4x32xf32> to vector<4x32xbf16>
    %cst_93 = arith.constant dense<0.000000e+00> : vector<4x32xf32>
    %350 = tpu.matmul %349, %250, %cst_93 {dimension_numbers = #tpu.dot_dimension_numbers<[1], [0], [0], [1], [0, 0, 1, 1], [], []>} : vector<4x32xbf16>, vector<32x32xbf16>, vector<4x32xf32> -> vector<4x32xf32>
    %cst_94 = arith.constant -1.000000e+30 : f32
    %351 = vector.broadcast %cst_94 : f32 to vector<4x32xf32>
    %352 = arith.select %269, %350, %351 : vector<4x32xi1>, vector<4x32xf32>
    %cst_95 = arith.constant dense<0xFF800000> : vector<4xf32>
    %353 = vector.multi_reduction <maximumf>, %352, %cst_95 [1] : vector<4x32xf32> to vector<4xf32>
    %354 = vector.shape_cast %353 : vector<4xf32> to vector<4x1xf32>
    %355 = vector.broadcast %354 : vector<4x1xf32> to vector<4x32xf32>
    %356 = arith.subf %352, %355 : vector<4x32xf32>
    %357 = math.exp %356 : vector<4x32xf32>
    %cst_96 = arith.constant dense<0.000000e+00> : vector<4xf32>
    %358 = vector.multi_reduction <add>, %357, %cst_96 [1] : vector<4x32xf32> to vector<4xf32>
    %359 = vector.shape_cast %358 : vector<4xf32> to vector<4x1xf32>
    %360 = vector.broadcast %359 : vector<4x1xf32> to vector<4x32xf32>
    %361 = arith.divf %357, %360 : vector<4x32xf32>
    %362 = arith.truncf %361 : vector<4x32xf32> to vector<4x32xbf16>
    %cst_97 = arith.constant dense<0.000000e+00> : vector<4x32xf32>
    %363 = tpu.matmul %362, %248, %cst_97 {dimension_numbers = #tpu.dot_dimension_numbers<[1], [0], [0], [1], [0, 0, 1, 1], [], []>} : vector<4x32xbf16>, vector<32x32xbf16>, vector<4x32xf32> -> vector<4x32xf32>
    %364 = arith.truncf %363 : vector<4x32xf32> to vector<4x32xbf16>
    %365 = tpu.concatenate %334, %364 in 1 : vector<4x24xbf16>, vector<4x32xbf16> -> vector<4x56xbf16>
    %cst_98 = arith.constant dense<0.000000e+00> : vector<4x96xf32>
    %366 = tpu.matmul %365, %4, %cst_98 {dimension_numbers = #tpu.dot_dimension_numbers<[1], [0], [0], [1], [0, 0, 1, 1], [], []>} : vector<4x56xbf16>, vector<56x96xbf16>, vector<4x96xf32> -> vector<4x96xf32>
    %367 = arith.addf %366, %15 : vector<4x96xf32>
    %cst_99 = arith.constant dense<0.000000e+00> : vector<4x96xf32>
    %368 = tpu.matmul %349, %3, %cst_99 {dimension_numbers = #tpu.dot_dimension_numbers<[1], [0], [0], [1], [0, 0, 1, 1], [], []>} : vector<4x32xbf16>, vector<32x96xbf16>, vector<4x96xf32> -> vector<4x96xf32>
    %369 = vector.extract_strided_slice %367 {offsets = [0, 0], sizes = [4, 64], strides = [1, 1]} : vector<4x96xf32> to vector<4x64xf32>
    %370 = vector.extract_strided_slice %368 {offsets = [0, 0], sizes = [4, 64], strides = [1, 1]} : vector<4x96xf32> to vector<4x64xf32>
    %371 = arith.addf %369, %370 : vector<4x64xf32>
    %372 = arith.negf %371 : vector<4x64xf32>
    %373 = math.exp %372 : vector<4x64xf32>
    %cst_100 = arith.constant 1.000000e+00 : f32
    %374 = vector.broadcast %cst_100 : f32 to vector<4x64xf32>
    %375 = arith.addf %374, %373 : vector<4x64xf32>
    %376 = arith.divf %374, %375 : vector<4x64xf32>
    %377 = vector.extract_strided_slice %376 {offsets = [0, 0], sizes = [4, 32], strides = [1, 1]} : vector<4x64xf32> to vector<4x32xf32>
    %378 = vector.extract_strided_slice %376 {offsets = [0, 32], sizes = [4, 32], strides = [1, 1]} : vector<4x64xf32> to vector<4x32xf32>
    %379 = vector.extract_strided_slice %367 {offsets = [0, 64], sizes = [4, 32], strides = [1, 1]} : vector<4x96xf32> to vector<4x32xf32>
    %380 = vector.extract_strided_slice %368 {offsets = [0, 64], sizes = [4, 32], strides = [1, 1]} : vector<4x96xf32> to vector<4x32xf32>
    %381 = arith.addf %380, %18 : vector<4x32xf32>
    %382 = arith.mulf %377, %381 : vector<4x32xf32>
    %383 = arith.addf %379, %382 : vector<4x32xf32>
    %384 = math.tanh %383 : vector<4x32xf32>
    %cst_101 = arith.constant 1.000000e+00 : f32
    %385 = vector.broadcast %cst_101 : f32 to vector<4x32xf32>
    %386 = arith.subf %385, %378 : vector<4x32xf32>
    %387 = arith.mulf %386, %384 : vector<4x32xf32>
    %388 = arith.mulf %378, %317 : vector<4x32xf32>
    %389 = arith.addf %387, %388 : vector<4x32xf32>
    %390 = arith.truncf %389 : vector<4x32xf32> to vector<4x32xbf16>
    %391 = tpu.concatenate %390, %364 in 1 : vector<4x32xbf16>, vector<4x32xbf16> -> vector<4x64xbf16>
    %cst_102 = arith.constant dense<0.000000e+00> : vector<4x24xf32>
    %392 = tpu.matmul %391, %5, %cst_102 {dimension_numbers = #tpu.dot_dimension_numbers<[1], [0], [0], [1], [0, 0, 1, 1], [], []>} : vector<4x64xbf16>, vector<64x24xbf16>, vector<4x24xf32> -> vector<4x24xf32>
    %393 = arith.addf %392, %21 : vector<4x24xf32>
    %cst_103 = arith.constant dense<0xFF800000> : vector<4xf32>
    %394 = vector.multi_reduction <maximumf>, %393, %cst_103 [1] : vector<4x24xf32> to vector<4xf32>
    %395 = vector.shape_cast %394 : vector<4xf32> to vector<4x1xf32>
    %396 = vector.broadcast %395 : vector<4x1xf32> to vector<4x24xf32>
    %397 = arith.cmpf oeq, %393, %396 : vector<4x24xf32>
    %c24_i32_104 = arith.constant 24 : i32
    %398 = vector.broadcast %c24_i32_104 : i32 to vector<4x24xi32>
    %399 = arith.select %397, %270, %398 : vector<4x24xi1>, vector<4x24xi32>
    %cst_105 = arith.constant dense<2147483647> : vector<4xi32>
    %400 = vector.multi_reduction <minsi>, %399, %cst_105 [1] : vector<4x24xi32> to vector<4xi32>
    %401 = vector.shape_cast %400 : vector<4xi32> to vector<4x1xi32>
    %402 = vector.broadcast %401 : vector<4x1xi32> to vector<4x24xi32>
    %403 = arith.cmpi eq, %270, %402 : vector<4x24xi32>
    %404 = arith.extui %403 : vector<4x24xi1> to vector<4x24xi32>
    %405 = arith.sitofp %404 : vector<4x24xi32> to vector<4x24xf32>
    %406 = arith.truncf %405 : vector<4x24xf32> to vector<4x24xbf16>
    %cst_106 = arith.constant dense<0xFF800000> : vector<4xf32>
    %407 = vector.multi_reduction <maximumf>, %393, %cst_106 [1] : vector<4x24xf32> to vector<4xf32>
    %408 = vector.shape_cast %407 : vector<4xf32> to vector<4x1xf32>
    %409 = vector.broadcast %408 : vector<4x1xf32> to vector<4x24xf32>
    %410 = arith.subf %393, %409 : vector<4x24xf32>
    %411 = math.exp %410 : vector<4x24xf32>
    %cst_107 = arith.constant dense<0.000000e+00> : vector<4xf32>
    %412 = vector.multi_reduction <add>, %411, %cst_107 [1] : vector<4x24xf32> to vector<4xf32>
    %413 = vector.shape_cast %412 : vector<4xf32> to vector<4x1xf32>
    %414 = math.log %413 : vector<4x1xf32>
    %415 = arith.addf %408, %414 : vector<4x1xf32>
    %416 = vector.broadcast %415 : vector<4x1xf32> to vector<4x24xf32>
    %417 = arith.subf %393, %416 : vector<4x24xf32>
    %c2_108 = arith.constant 2 : index
    %c0_109 = arith.constant 0 : index
    %c0_110 = arith.constant 0 : index
    %418 = vector.load %arg5[%c2_108, %c0_109, %c0_110] : memref<6x4x24xf32, #tpu.memory_space<vmem>>, vector<1x4x24xf32>
    %419 = vector.shape_cast %418 : vector<1x4x24xf32> to vector<4x24xf32>
    %420 = vector.shape_cast %417 : vector<4x24xf32> to vector<1x4x24xf32>
    tpu.vector_store %arg5[%c2_108, %c0_109, %c0_110], %420 {strides = array<i32>} : memref<6x4x24xf32, #tpu.memory_space<vmem>>, vector<1x4x24xf32>,
    %421 = arith.truncf %389 : vector<4x32xf32> to vector<4x32xbf16>
    %cst_111 = arith.constant dense<0.000000e+00> : vector<4x32xf32>
    %422 = tpu.matmul %421, %250, %cst_111 {dimension_numbers = #tpu.dot_dimension_numbers<[1], [0], [0], [1], [0, 0, 1, 1], [], []>} : vector<4x32xbf16>, vector<32x32xbf16>, vector<4x32xf32> -> vector<4x32xf32>
    %cst_112 = arith.constant -1.000000e+30 : f32
    %423 = vector.broadcast %cst_112 : f32 to vector<4x32xf32>
    %424 = arith.select %269, %422, %423 : vector<4x32xi1>, vector<4x32xf32>
    %cst_113 = arith.constant dense<0xFF800000> : vector<4xf32>
    %425 = vector.multi_reduction <maximumf>, %424, %cst_113 [1] : vector<4x32xf32> to vector<4xf32>
    %426 = vector.shape_cast %425 : vector<4xf32> to vector<4x1xf32>
    %427 = vector.broadcast %426 : vector<4x1xf32> to vector<4x32xf32>
    %428 = arith.subf %424, %427 : vector<4x32xf32>
    %429 = math.exp %428 : vector<4x32xf32>
    %cst_114 = arith.constant dense<0.000000e+00> : vector<4xf32>
    %430 = vector.multi_reduction <add>, %429, %cst_114 [1] : vector<4x32xf32> to vector<4xf32>
    %431 = vector.shape_cast %430 : vector<4xf32> to vector<4x1xf32>
    %432 = vector.broadcast %431 : vector<4x1xf32> to vector<4x32xf32>
    %433 = arith.divf %429, %432 : vector<4x32xf32>
    %434 = arith.truncf %433 : vector<4x32xf32> to vector<4x32xbf16>
    %cst_115 = arith.constant dense<0.000000e+00> : vector<4x32xf32>
    %435 = tpu.matmul %434, %248, %cst_115 {dimension_numbers = #tpu.dot_dimension_numbers<[1], [0], [0], [1], [0, 0, 1, 1], [], []>} : vector<4x32xbf16>, vector<32x32xbf16>, vector<4x32xf32> -> vector<4x32xf32>
    %436 = arith.truncf %435 : vector<4x32xf32> to vector<4x32xbf16>
    %437 = tpu.concatenate %406, %436 in 1 : vector<4x24xbf16>, vector<4x32xbf16> -> vector<4x56xbf16>
    %cst_116 = arith.constant dense<0.000000e+00> : vector<4x96xf32>
    %438 = tpu.matmul %437, %4, %cst_116 {dimension_numbers = #tpu.dot_dimension_numbers<[1], [0], [0], [1], [0, 0, 1, 1], [], []>} : vector<4x56xbf16>, vector<56x96xbf16>, vector<4x96xf32> -> vector<4x96xf32>
    %439 = arith.addf %438, %15 : vector<4x96xf32>
    %cst_117 = arith.constant dense<0.000000e+00> : vector<4x96xf32>
    %440 = tpu.matmul %421, %3, %cst_117 {dimension_numbers = #tpu.dot_dimension_numbers<[1], [0], [0], [1], [0, 0, 1, 1], [], []>} : vector<4x32xbf16>, vector<32x96xbf16>, vector<4x96xf32> -> vector<4x96xf32>
    %441 = vector.extract_strided_slice %439 {offsets = [0, 0], sizes = [4, 64], strides = [1, 1]} : vector<4x96xf32> to vector<4x64xf32>
    %442 = vector.extract_strided_slice %440 {offsets = [0, 0], sizes = [4, 64], strides = [1, 1]} : vector<4x96xf32> to vector<4x64xf32>
    %443 = arith.addf %441, %442 : vector<4x64xf32>
    %444 = arith.negf %443 : vector<4x64xf32>
    %445 = math.exp %444 : vector<4x64xf32>
    %cst_118 = arith.constant 1.000000e+00 : f32
    %446 = vector.broadcast %cst_118 : f32 to vector<4x64xf32>
    %447 = arith.addf %446, %445 : vector<4x64xf32>
    %448 = arith.divf %446, %447 : vector<4x64xf32>
    %449 = vector.extract_strided_slice %448 {offsets = [0, 0], sizes = [4, 32], strides = [1, 1]} : vector<4x64xf32> to vector<4x32xf32>
    %450 = vector.extract_strided_slice %448 {offsets = [0, 32], sizes = [4, 32], strides = [1, 1]} : vector<4x64xf32> to vector<4x32xf32>
    %451 = vector.extract_strided_slice %439 {offsets = [0, 64], sizes = [4, 32], strides = [1, 1]} : vector<4x96xf32> to vector<4x32xf32>
    %452 = vector.extract_strided_slice %440 {offsets = [0, 64], sizes = [4, 32], strides = [1, 1]} : vector<4x96xf32> to vector<4x32xf32>
    %453 = arith.addf %452, %18 : vector<4x32xf32>
    %454 = arith.mulf %449, %453 : vector<4x32xf32>
    %455 = arith.addf %451, %454 : vector<4x32xf32>
    %456 = math.tanh %455 : vector<4x32xf32>
    %cst_119 = arith.constant 1.000000e+00 : f32
    %457 = vector.broadcast %cst_119 : f32 to vector<4x32xf32>
    %458 = arith.subf %457, %450 : vector<4x32xf32>
    %459 = arith.mulf %458, %456 : vector<4x32xf32>
    %460 = arith.mulf %450, %389 : vector<4x32xf32>
    %461 = arith.addf %459, %460 : vector<4x32xf32>
    %462 = arith.truncf %461 : vector<4x32xf32> to vector<4x32xbf16>
    %463 = tpu.concatenate %462, %436 in 1 : vector<4x32xbf16>, vector<4x32xbf16> -> vector<4x64xbf16>
    %cst_120 = arith.constant dense<0.000000e+00> : vector<4x24xf32>
    %464 = tpu.matmul %463, %5, %cst_120 {dimension_numbers = #tpu.dot_dimension_numbers<[1], [0], [0], [1], [0, 0, 1, 1], [], []>} : vector<4x64xbf16>, vector<64x24xbf16>, vector<4x24xf32> -> vector<4x24xf32>
    %465 = arith.addf %464, %21 : vector<4x24xf32>
    %cst_121 = arith.constant dense<0xFF800000> : vector<4xf32>
    %466 = vector.multi_reduction <maximumf>, %465, %cst_121 [1] : vector<4x24xf32> to vector<4xf32>
    %467 = vector.shape_cast %466 : vector<4xf32> to vector<4x1xf32>
    %468 = vector.broadcast %467 : vector<4x1xf32> to vector<4x24xf32>
    %469 = arith.cmpf oeq, %465, %468 : vector<4x24xf32>
    %c24_i32_122 = arith.constant 24 : i32
    %470 = vector.broadcast %c24_i32_122 : i32 to vector<4x24xi32>
    %471 = arith.select %469, %270, %470 : vector<4x24xi1>, vector<4x24xi32>
    %cst_123 = arith.constant dense<2147483647> : vector<4xi32>
    %472 = vector.multi_reduction <minsi>, %471, %cst_123 [1] : vector<4x24xi32> to vector<4xi32>
    %473 = vector.shape_cast %472 : vector<4xi32> to vector<4x1xi32>
    %474 = vector.broadcast %473 : vector<4x1xi32> to vector<4x24xi32>
    %475 = arith.cmpi eq, %270, %474 : vector<4x24xi32>
    %476 = arith.extui %475 : vector<4x24xi1> to vector<4x24xi32>
    %477 = arith.sitofp %476 : vector<4x24xi32> to vector<4x24xf32>
    %478 = arith.truncf %477 : vector<4x24xf32> to vector<4x24xbf16>
    %cst_124 = arith.constant dense<0xFF800000> : vector<4xf32>
    %479 = vector.multi_reduction <maximumf>, %465, %cst_124 [1] : vector<4x24xf32> to vector<4xf32>
    %480 = vector.shape_cast %479 : vector<4xf32> to vector<4x1xf32>
    %481 = vector.broadcast %480 : vector<4x1xf32> to vector<4x24xf32>
    %482 = arith.subf %465, %481 : vector<4x24xf32>
    %483 = math.exp %482 : vector<4x24xf32>
    %cst_125 = arith.constant dense<0.000000e+00> : vector<4xf32>
    %484 = vector.multi_reduction <add>, %483, %cst_125 [1] : vector<4x24xf32> to vector<4xf32>
    %485 = vector.shape_cast %484 : vector<4xf32> to vector<4x1xf32>
    %486 = math.log %485 : vector<4x1xf32>
    %487 = arith.addf %480, %486 : vector<4x1xf32>
    %488 = vector.broadcast %487 : vector<4x1xf32> to vector<4x24xf32>
    %489 = arith.subf %465, %488 : vector<4x24xf32>
    %c3_126 = arith.constant 3 : index
    %c0_127 = arith.constant 0 : index
    %c0_128 = arith.constant 0 : index
    %490 = vector.load %arg5[%c3_126, %c0_127, %c0_128] : memref<6x4x24xf32, #tpu.memory_space<vmem>>, vector<1x4x24xf32>
    %491 = vector.shape_cast %490 : vector<1x4x24xf32> to vector<4x24xf32>
    %492 = vector.shape_cast %489 : vector<4x24xf32> to vector<1x4x24xf32>
    tpu.vector_store %arg5[%c3_126, %c0_127, %c0_128], %492 {strides = array<i32>} : memref<6x4x24xf32, #tpu.memory_space<vmem>>, vector<1x4x24xf32>,
    %493 = arith.truncf %461 : vector<4x32xf32> to vector<4x32xbf16>
    %cst_129 = arith.constant dense<0.000000e+00> : vector<4x32xf32>
    %494 = tpu.matmul %493, %250, %cst_129 {dimension_numbers = #tpu.dot_dimension_numbers<[1], [0], [0], [1], [0, 0, 1, 1], [], []>} : vector<4x32xbf16>, vector<32x32xbf16>, vector<4x32xf32> -> vector<4x32xf32>
    %cst_130 = arith.constant -1.000000e+30 : f32
    %495 = vector.broadcast %cst_130 : f32 to vector<4x32xf32>
    %496 = arith.select %269, %494, %495 : vector<4x32xi1>, vector<4x32xf32>
    %cst_131 = arith.constant dense<0xFF800000> : vector<4xf32>
    %497 = vector.multi_reduction <maximumf>, %496, %cst_131 [1] : vector<4x32xf32> to vector<4xf32>
    %498 = vector.shape_cast %497 : vector<4xf32> to vector<4x1xf32>
    %499 = vector.broadcast %498 : vector<4x1xf32> to vector<4x32xf32>
    %500 = arith.subf %496, %499 : vector<4x32xf32>
    %501 = math.exp %500 : vector<4x32xf32>
    %cst_132 = arith.constant dense<0.000000e+00> : vector<4xf32>
    %502 = vector.multi_reduction <add>, %501, %cst_132 [1] : vector<4x32xf32> to vector<4xf32>
    %503 = vector.shape_cast %502 : vector<4xf32> to vector<4x1xf32>
    %504 = vector.broadcast %503 : vector<4x1xf32> to vector<4x32xf32>
    %505 = arith.divf %501, %504 : vector<4x32xf32>
    %506 = arith.truncf %505 : vector<4x32xf32> to vector<4x32xbf16>
    %cst_133 = arith.constant dense<0.000000e+00> : vector<4x32xf32>
    %507 = tpu.matmul %506, %248, %cst_133 {dimension_numbers = #tpu.dot_dimension_numbers<[1], [0], [0], [1], [0, 0, 1, 1], [], []>} : vector<4x32xbf16>, vector<32x32xbf16>, vector<4x32xf32> -> vector<4x32xf32>
    %508 = arith.truncf %507 : vector<4x32xf32> to vector<4x32xbf16>
    %509 = tpu.concatenate %478, %508 in 1 : vector<4x24xbf16>, vector<4x32xbf16> -> vector<4x56xbf16>
    %cst_134 = arith.constant dense<0.000000e+00> : vector<4x96xf32>
    %510 = tpu.matmul %509, %4, %cst_134 {dimension_numbers = #tpu.dot_dimension_numbers<[1], [0], [0], [1], [0, 0, 1, 1], [], []>} : vector<4x56xbf16>, vector<56x96xbf16>, vector<4x96xf32> -> vector<4x96xf32>
    %511 = arith.addf %510, %15 : vector<4x96xf32>
    %cst_135 = arith.constant dense<0.000000e+00> : vector<4x96xf32>
    %512 = tpu.matmul %493, %3, %cst_135 {dimension_numbers = #tpu.dot_dimension_numbers<[1], [0], [0], [1], [0, 0, 1, 1], [], []>} : vector<4x32xbf16>, vector<32x96xbf16>, vector<4x96xf32> -> vector<4x96xf32>
    %513 = vector.extract_strided_slice %511 {offsets = [0, 0], sizes = [4, 64], strides = [1, 1]} : vector<4x96xf32> to vector<4x64xf32>
    %514 = vector.extract_strided_slice %512 {offsets = [0, 0], sizes = [4, 64], strides = [1, 1]} : vector<4x96xf32> to vector<4x64xf32>
    %515 = arith.addf %513, %514 : vector<4x64xf32>
    %516 = arith.negf %515 : vector<4x64xf32>
    %517 = math.exp %516 : vector<4x64xf32>
    %cst_136 = arith.constant 1.000000e+00 : f32
    %518 = vector.broadcast %cst_136 : f32 to vector<4x64xf32>
    %519 = arith.addf %518, %517 : vector<4x64xf32>
    %520 = arith.divf %518, %519 : vector<4x64xf32>
    %521 = vector.extract_strided_slice %520 {offsets = [0, 0], sizes = [4, 32], strides = [1, 1]} : vector<4x64xf32> to vector<4x32xf32>
    %522 = vector.extract_strided_slice %520 {offsets = [0, 32], sizes = [4, 32], strides = [1, 1]} : vector<4x64xf32> to vector<4x32xf32>
    %523 = vector.extract_strided_slice %511 {offsets = [0, 64], sizes = [4, 32], strides = [1, 1]} : vector<4x96xf32> to vector<4x32xf32>
    %524 = vector.extract_strided_slice %512 {offsets = [0, 64], sizes = [4, 32], strides = [1, 1]} : vector<4x96xf32> to vector<4x32xf32>
    %525 = arith.addf %524, %18 : vector<4x32xf32>
    %526 = arith.mulf %521, %525 : vector<4x32xf32>
    %527 = arith.addf %523, %526 : vector<4x32xf32>
    %528 = math.tanh %527 : vector<4x32xf32>
    %cst_137 = arith.constant 1.000000e+00 : f32
    %529 = vector.broadcast %cst_137 : f32 to vector<4x32xf32>
    %530 = arith.subf %529, %522 : vector<4x32xf32>
    %531 = arith.mulf %530, %528 : vector<4x32xf32>
    %532 = arith.mulf %522, %461 : vector<4x32xf32>
    %533 = arith.addf %531, %532 : vector<4x32xf32>
    %534 = arith.truncf %533 : vector<4x32xf32> to vector<4x32xbf16>
    %535 = tpu.concatenate %534, %508 in 1 : vector<4x32xbf16>, vector<4x32xbf16> -> vector<4x64xbf16>
    %cst_138 = arith.constant dense<0.000000e+00> : vector<4x24xf32>
    %536 = tpu.matmul %535, %5, %cst_138 {dimension_numbers = #tpu.dot_dimension_numbers<[1], [0], [0], [1], [0, 0, 1, 1], [], []>} : vector<4x64xbf16>, vector<64x24xbf16>, vector<4x24xf32> -> vector<4x24xf32>
    %537 = arith.addf %536, %21 : vector<4x24xf32>
    %c4_139 = arith.constant 4 : index
    %c0_140 = arith.constant 0 : index
    %c0_141 = arith.constant 0 : index
    %538 = vector.load %arg1[%c4_139, %c0_140, %c0_141] : memref<6x4x24xbf16, #tpu.memory_space<vmem>>, vector<1x4x24xbf16>
    %539 = vector.shape_cast %538 : vector<1x4x24xbf16> to vector<4x24xbf16>
    %cst_142 = arith.constant dense<0xFF800000> : vector<4xf32>
    %540 = vector.multi_reduction <maximumf>, %537, %cst_142 [1] : vector<4x24xf32> to vector<4xf32>
    %541 = vector.shape_cast %540 : vector<4xf32> to vector<4x1xf32>
    %542 = vector.broadcast %541 : vector<4x1xf32> to vector<4x24xf32>
    %543 = arith.subf %537, %542 : vector<4x24xf32>
    %544 = math.exp %543 : vector<4x24xf32>
    %cst_143 = arith.constant dense<0.000000e+00> : vector<4xf32>
    %545 = vector.multi_reduction <add>, %544, %cst_143 [1] : vector<4x24xf32> to vector<4xf32>
    %546 = vector.shape_cast %545 : vector<4xf32> to vector<4x1xf32>
    %547 = math.log %546 : vector<4x1xf32>
    %548 = arith.addf %541, %547 : vector<4x1xf32>
    %549 = vector.broadcast %548 : vector<4x1xf32> to vector<4x24xf32>
    %550 = arith.subf %537, %549 : vector<4x24xf32>
    %c4_144 = arith.constant 4 : index
    %c0_145 = arith.constant 0 : index
    %c0_146 = arith.constant 0 : index
    %551 = vector.load %arg5[%c4_144, %c0_145, %c0_146] : memref<6x4x24xf32, #tpu.memory_space<vmem>>, vector<1x4x24xf32>
    %552 = vector.shape_cast %551 : vector<1x4x24xf32> to vector<4x24xf32>
    %553 = vector.shape_cast %550 : vector<4x24xf32> to vector<1x4x24xf32>
    tpu.vector_store %arg5[%c4_144, %c0_145, %c0_146], %553 {strides = array<i32>} : memref<6x4x24xf32, #tpu.memory_space<vmem>>, vector<1x4x24xf32>,
    %554 = arith.truncf %533 : vector<4x32xf32> to vector<4x32xbf16>
    %cst_147 = arith.constant dense<0.000000e+00> : vector<4x32xf32>
    %555 = tpu.matmul %554, %250, %cst_147 {dimension_numbers = #tpu.dot_dimension_numbers<[1], [0], [0], [1], [0, 0, 1, 1], [], []>} : vector<4x32xbf16>, vector<32x32xbf16>, vector<4x32xf32> -> vector<4x32xf32>
    %cst_148 = arith.constant -1.000000e+30 : f32
    %556 = vector.broadcast %cst_148 : f32 to vector<4x32xf32>
    %557 = arith.select %269, %555, %556 : vector<4x32xi1>, vector<4x32xf32>
    %cst_149 = arith.constant dense<0xFF800000> : vector<4xf32>
    %558 = vector.multi_reduction <maximumf>, %557, %cst_149 [1] : vector<4x32xf32> to vector<4xf32>
    %559 = vector.shape_cast %558 : vector<4xf32> to vector<4x1xf32>
    %560 = vector.broadcast %559 : vector<4x1xf32> to vector<4x32xf32>
    %561 = arith.subf %557, %560 : vector<4x32xf32>
    %562 = math.exp %561 : vector<4x32xf32>
    %cst_150 = arith.constant dense<0.000000e+00> : vector<4xf32>
    %563 = vector.multi_reduction <add>, %562, %cst_150 [1] : vector<4x32xf32> to vector<4xf32>
    %564 = vector.shape_cast %563 : vector<4xf32> to vector<4x1xf32>
    %565 = vector.broadcast %564 : vector<4x1xf32> to vector<4x32xf32>
    %566 = arith.divf %562, %565 : vector<4x32xf32>
    %567 = arith.truncf %566 : vector<4x32xf32> to vector<4x32xbf16>
    %cst_151 = arith.constant dense<0.000000e+00> : vector<4x32xf32>
    %568 = tpu.matmul %567, %248, %cst_151 {dimension_numbers = #tpu.dot_dimension_numbers<[1], [0], [0], [1], [0, 0, 1, 1], [], []>} : vector<4x32xbf16>, vector<32x32xbf16>, vector<4x32xf32> -> vector<4x32xf32>
    %569 = arith.truncf %568 : vector<4x32xf32> to vector<4x32xbf16>
    %570 = tpu.concatenate %539, %569 in 1 : vector<4x24xbf16>, vector<4x32xbf16> -> vector<4x56xbf16>
    %cst_152 = arith.constant dense<0.000000e+00> : vector<4x96xf32>
    %571 = tpu.matmul %570, %4, %cst_152 {dimension_numbers = #tpu.dot_dimension_numbers<[1], [0], [0], [1], [0, 0, 1, 1], [], []>} : vector<4x56xbf16>, vector<56x96xbf16>, vector<4x96xf32> -> vector<4x96xf32>
    %572 = arith.addf %571, %15 : vector<4x96xf32>
    %cst_153 = arith.constant dense<0.000000e+00> : vector<4x96xf32>
    %573 = tpu.matmul %554, %3, %cst_153 {dimension_numbers = #tpu.dot_dimension_numbers<[1], [0], [0], [1], [0, 0, 1, 1], [], []>} : vector<4x32xbf16>, vector<32x96xbf16>, vector<4x96xf32> -> vector<4x96xf32>
    %574 = vector.extract_strided_slice %572 {offsets = [0, 0], sizes = [4, 64], strides = [1, 1]} : vector<4x96xf32> to vector<4x64xf32>
    %575 = vector.extract_strided_slice %573 {offsets = [0, 0], sizes = [4, 64], strides = [1, 1]} : vector<4x96xf32> to vector<4x64xf32>
    %576 = arith.addf %574, %575 : vector<4x64xf32>
    %577 = arith.negf %576 : vector<4x64xf32>
    %578 = math.exp %577 : vector<4x64xf32>
    %cst_154 = arith.constant 1.000000e+00 : f32
    %579 = vector.broadcast %cst_154 : f32 to vector<4x64xf32>
    %580 = arith.addf %579, %578 : vector<4x64xf32>
    %581 = arith.divf %579, %580 : vector<4x64xf32>
    %582 = vector.extract_strided_slice %581 {offsets = [0, 0], sizes = [4, 32], strides = [1, 1]} : vector<4x64xf32> to vector<4x32xf32>
    %583 = vector.extract_strided_slice %581 {offsets = [0, 32], sizes = [4, 32], strides = [1, 1]} : vector<4x64xf32> to vector<4x32xf32>
    %584 = vector.extract_strided_slice %572 {offsets = [0, 64], sizes = [4, 32], strides = [1, 1]} : vector<4x96xf32> to vector<4x32xf32>
    %585 = vector.extract_strided_slice %573 {offsets = [0, 64], sizes = [4, 32], strides = [1, 1]} : vector<4x96xf32> to vector<4x32xf32>
    %586 = arith.addf %585, %18 : vector<4x32xf32>
    %587 = arith.mulf %582, %586 : vector<4x32xf32>
    %588 = arith.addf %584, %587 : vector<4x32xf32>
    %589 = math.tanh %588 : vector<4x32xf32>
    %cst_155 = arith.constant 1.000000e+00 : f32
    %590 = vector.broadcast %cst_155 : f32 to vector<4x32xf32>
    %591 = arith.subf %590, %583 : vector<4x32xf32>
    %592 = arith.mulf %591, %589 : vector<4x32xf32>
    %593 = arith.mulf %583, %533 : vector<4x32xf32>
    %594 = arith.addf %592, %593 : vector<4x32xf32>
    %595 = arith.truncf %594 : vector<4x32xf32> to vector<4x32xbf16>
    %596 = tpu.concatenate %595, %569 in 1 : vector<4x32xbf16>, vector<4x32xbf16> -> vector<4x64xbf16>
    %cst_156 = arith.constant dense<0.000000e+00> : vector<4x24xf32>
    %597 = tpu.matmul %596, %5, %cst_156 {dimension_numbers = #tpu.dot_dimension_numbers<[1], [0], [0], [1], [0, 0, 1, 1], [], []>} : vector<4x64xbf16>, vector<64x24xbf16>, vector<4x24xf32> -> vector<4x24xf32>
    %598 = arith.addf %597, %21 : vector<4x24xf32>
    %cst_157 = arith.constant dense<0xFF800000> : vector<4xf32>
    %599 = vector.multi_reduction <maximumf>, %598, %cst_157 [1] : vector<4x24xf32> to vector<4xf32>
    %600 = vector.shape_cast %599 : vector<4xf32> to vector<4x1xf32>
    %601 = vector.broadcast %600 : vector<4x1xf32> to vector<4x24xf32>
    %602 = arith.subf %598, %601 : vector<4x24xf32>
    %603 = math.exp %602 : vector<4x24xf32>
    %cst_158 = arith.constant dense<0.000000e+00> : vector<4xf32>
    %604 = vector.multi_reduction <add>, %603, %cst_158 [1] : vector<4x24xf32> to vector<4xf32>
    %605 = vector.shape_cast %604 : vector<4xf32> to vector<4x1xf32>
    %606 = math.log %605 : vector<4x1xf32>
    %607 = arith.addf %600, %606 : vector<4x1xf32>
    %608 = vector.broadcast %607 : vector<4x1xf32> to vector<4x24xf32>
    %609 = arith.subf %598, %608 : vector<4x24xf32>
    %c5_159 = arith.constant 5 : index
    %c0_160 = arith.constant 0 : index
    %c0_161 = arith.constant 0 : index
    %610 = vector.load %arg5[%c5_159, %c0_160, %c0_161] : memref<6x4x24xf32, #tpu.memory_space<vmem>>, vector<1x4x24xf32>
    %611 = vector.shape_cast %610 : vector<1x4x24xf32> to vector<4x24xf32>
    %612 = vector.shape_cast %609 : vector<4x24xf32> to vector<1x4x24xf32>
    tpu.vector_store %arg5[%c5_159, %c0_160, %c0_161], %612 {strides = array<i32>} : memref<6x4x24xf32, #tpu.memory_space<vmem>>, vector<1x4x24xf32>,
    return
  }
}

</mosaic_0001>

<llo_original>
// kernel: forward.1
$region0: #{forward.1}
  #allocation0 [shape = 'u32[]', space=smem, size = 0x4, offset = 0x4, fixed_abs, tag = 'smem constant byte address 0x4 - core index']
  #allocation1 [shape = 'u32[144,128]{1,0:T(1,128)}', space=vmem, size = 0x12000, scoped, tag = 'internal scratch']
  #allocation2 [shape = 'f32[32,32]{1,0:T(8,128)}', space=vmem, size = 0x4000, scoped, tag = 'scratch operand']
  %s0 = inlined_call_operand.vmem [shape: bf16[8,4,16], index: 0, kind: input, shape index: {}]
  %s1 = inlined_call_operand.vmem [shape: bf16[6,4,24], index: 1, kind: input, shape index: {}]
  %s2 = inlined_call_operand.vmem [shape: bf16[136,96], index: 2, kind: input, shape index: {}]
  %s3 = inlined_call_operand.vmem [shape: bf16[64,24], index: 3, kind: input, shape index: {}]
  %s4 = inlined_call_operand.vmem [shape: f32[5,128], index: 4, kind: input, shape index: {}]
  %s5 = inlined_call_operand.hbm [shape: f32[6,4,24], index: 5, kind: output, shape index: {}]
  %s6 = sld [smem:[#allocation0]]
  $region30: #{forward.1} parent=0
    _
  %s8 = ssub.s32 1, %s6
  %s9 = scalar_select 0, %s8, %s6
  $region1: #{forward.1} parent=0
    #allocation3 [shape = 'u8[12288]{0}', space=vmem, size = 0x3000, scoped, tag = 'output window, operand 0, single buffered']
    #allocation4 [shape = 's32[1]{0}', space=sflag, size = 0x4, scoped, tag = 'scoped memory for forward.1']
    %10 = vsyncpa [#allocation4], 0
    // Predicated region
    $region2: #{forward.1} parent=1 // pred_check
      _
    $region3: #{forward.1} parent=1 // pred_check_branch
      %12 = sbr.rel (0) target = $region5
    $region4: #{forward.1} parent=1 // pred_region
      _
    $region5: #{forward.1} parent=1 // pred_fallthru
      _
    // Predicated region
    $region6: #{forward.1} parent=1 // pred_check
      _
    $region7: #{forward.1} parent=1 // pred_check_branch
      %14 = sbr.rel (0) target = $region9
    $region8: #{forward.1} parent=1 // pred_region
      _
    $region9: #{forward.1} parent=1 // pred_fallthru
      _
    // Predicated region
    $region10: #{forward.1} parent=1 // pred_check
      _
    $region11: #{forward.1} parent=1 // pred_check_branch
      %16 = sbr.rel (0) target = $region13
    $region12: #{forward.1} parent=1 // pred_region
      _
    $region13: #{forward.1} parent=1 // pred_fallthru
      _
    // Predicated region
    $region14: #{forward.1} parent=1 // pred_check
      _
    $region15: #{forward.1} parent=1 // pred_check_branch
      %18 = sbr.rel (0) target = $region17
    $region16: #{forward.1} parent=1 // pred_region
      _
    $region17: #{forward.1} parent=1 // pred_fallthru
      _
    // Predicated region
    $region18: #{forward.1} parent=1 // pred_check
      _
    $region19: #{forward.1} parent=1 // pred_check_branch
      %20 = sbr.rel (0) target = $region21
    $region20: #{forward.1} parent=1 // pred_region
      _
    $region21: #{forward.1} parent=1 // pred_fallthru
      _
    %v22 = vld [vmem:[%s2] sm:$0xf]
    %v23 = vld [vmem:[%s2 + $0x4] sm:$0xf]
    %v24 = vld [vmem:[%s2 + $0x8] sm:$0xf]
    %v25 = vld [vmem:[%s2 + $0xc] sm:$0xf]
    %v26 = vld [vmem:[%s2 + $0x10] sm:$0xf]
    %v27 = vld [vmem:[%s2 + $0x14] sm:$0xf]
    %v28 = vld [vmem:[%s2 + $0x18] sm:$0xf]
    %v29 = vld [vmem:[%s2 + $0x1c] sm:$0xf]
    %v30 = vld [vmem:[%s2 + $0x20] sm:$0xf]
    %v31 = vld [vmem:[%s2 + $0x24] sm:$0xf]
    %v32 = vld [vmem:[%s2 + $0x28] sm:$0xf]
    %v33 = vld [vmem:[%s2 + $0x2c] sm:$0xf]
    %v34 = vld [vmem:[%s2 + $0x30] sm:$0xf]
    %v35 = vld [vmem:[%s2 + $0x34] sm:$0xf]
    %v36 = vld [vmem:[%s2 + $0x38] sm:$0xf]
    %v37 = vld [vmem:[%s2 + $0x3c] sm:$0xf]
    %v38 = vld [vmem:[%s2 + $0x40] sm:$0xf]
    %v39 = vld [vmem:[%s3] sm:$0xf]
    %v40 = vld [vmem:[%s3 + $0x4] sm:$0xf]
    %v41 = vld [vmem:[%s3 + $0x8] sm:$0xf]
    %v42 = vld [vmem:[%s3 + $0xc] sm:$0xf]
    %v43 = vld [vmem:[%s3 + $0x10] sm:$0xf]
    %v44 = vld [vmem:[%s3 + $0x14] sm:$0xf]
    %v45 = vld [vmem:[%s3 + $0x18] sm:$0xf]
    %v46 = vld [vmem:[%s3 + $0x1c] sm:$0xf]
    %v47 = vld [vmem:[%s4] sm:$0x1f]
    %v48 = vlaneseq
    %v49 = vshrl.u32 %v48, 7
    %v50 = vsub.s32 0, %v49
    %v51 = vrot.slane %v47, %v50
    %v52 = vlaneseq
    %v53 = vshrl.u32 %v52, 7
    %v54 = vsub.s32 1, %v53
    %v55 = vrot.slane %v47, %v54
    %v56 = vlaneseq
    %v57 = vshrl.u32 %v56, 7
    %v58 = vsub.s32 2, %v57
    %v59 = vrot.slane %v47, %v58
    %v60 = vlaneseq
    %v61 = vshrl.u32 %v60, 7
    %v62 = vsub.s32 3, %v61
    %v63 = vrot.slane %v47, %v62
    %v64 = vlaneseq
    %v65 = vshrl.u32 %v64, 7
    %v66 = vsub.s32 4, %v65
    %v67 = vrot.slane %v47, %v66
    %v68 = vld [vmem:[%s0] sm:$0x3]
    %v71 = vunpack.c.l.b16 %v22
    %v72 = vunpack.c.l.b16 %v23
    %v73 = vpack.c.b16 %v72, %v71
    %vm75 = vcmask 130048
    %v77 = vsel %vm75, %v68, 0
    %79 = vmatprep.subr.bf16.mxu0 0
    %80 = vmatpush1.bf16.msra.mxu0 %v73
    %81 = vmatprep.subr.bf16.mxu0 0
    %82 = vmatpush1.bf16.msra.mxu0 0
    %83 = vmatprep.subr.bf16.mxu0 0
    %84 = vmatpush1.bf16.msra.mxu0 0
    %85 = vmatprep.subr.bf16.mxu0 0
    %86 = vmatpush1.bf16.msra.mxu0 0
    %87 = vmatprep.subr.bf16.mxu0 0
    %88 = vmatpush1.bf16.msra.mxu0 0
    %89 = vmatprep.subr.bf16.mxu0 0
    %90 = vmatpush1.bf16.msra.mxu0 0
    %91 = vmatprep.subr.bf16.mxu0 0
    %92 = vmatpush1.bf16.msra.mxu0 0
    %93 = vmatprep.subr.bf16.mxu0 0
    %94 = vmatpush1.bf16.msra.mxu0 0
    %95 = vmatprep.subr.bf16.mxu0 0
    %96 = vmatpush1.bf16.msra.mxu0 0
    %97 = vmatprep.subr.bf16.mxu0 0
    %98 = vmatpush1.bf16.msra.mxu0 0
    %99 = vmatprep.subr.bf16.mxu0 0
    %100 = vmatpush1.bf16.msra.mxu0 0
    %101 = vmatprep.subr.bf16.mxu0 0
    %102 = vmatpush1.bf16.msra.mxu0 0
    %103 = vmatprep.subr.bf16.mxu0 0
    %104 = vmatpush1.bf16.msra.mxu0 0
    %105 = vmatprep.subr.bf16.mxu0 0
    %106 = vmatpush1.bf16.msra.mxu0 0
    %107 = vmatprep.subr.bf16.mxu0 0
    %108 = vmatpush1.bf16.msra.mxu0 0
    %109 = vmatprep.subr.bf16.mxu0 0
    %110 = vmatpush1.bf16.msra.mxu0 0
    %111 = vmatprep.mubr.bf16.mxu0 0
    %112 = vmatmul.mubr.bf16.gmra.mrb[0].mxu0 %v77
    %v113 = vpop.f32.mrb[0].mxu0
    %v114 = vadd.f32 %v51, %v113
    %v115 = vpop.f32.mrb[0].mxu0
    %v116 = vpop.f32.mrb[0].mxu0
    %v117 = vpop.f32.mrb[0].mxu0
    %118 = vdwg.mxu0
    %v123 = vunpack.c.l.b16 %v24
    %v124 = vunpack.c.l.b16 %v25
    %v125 = vunpack.c.l.b16 %v26
    %v126 = vunpack.c.l.b16 %v27
    %v127 = vpack.c.b16 %v124, %v123
    %v128 = vpack.c.b16 %v126, %v125
    %vm131 = vcmask 261120
    %v133 = vsel %vm131, 0, 0
    %135 = vmatprep.subr.bf16.mxu0 0
    %136 = vmatpush1.bf16.msra.mxu0 %v127
    %137 = vmatprep.subr.bf16.mxu0 0
    %138 = vmatpush1.bf16.msra.mxu0 %v128
    %139 = vmatprep.subr.bf16.mxu0 0
    %140 = vmatpush1.bf16.msra.mxu0 0
    %141 = vmatprep.subr.bf16.mxu0 0
    %142 = vmatpush1.bf16.msra.mxu0 0
    %143 = vmatprep.subr.bf16.mxu0 0
    %144 = vmatpush1.bf16.msra.mxu0 0
    %145 = vmatprep.subr.bf16.mxu0 0
    %146 = vmatpush1.bf16.msra.mxu0 0
    %147 = vmatprep.subr.bf16.mxu0 0
    %148 = vmatpush1.bf16.msra.mxu0 0
    %149 = vmatprep.subr.bf16.mxu0 0
    %150 = vmatpush1.bf16.msra.mxu0 0
    %151 = vmatprep.subr.bf16.mxu0 0
    %152 = vmatpush1.bf16.msra.mxu0 0
    %153 = vmatprep.subr.bf16.mxu0 0
    %154 = vmatpush1.bf16.msra.mxu0 0
    %155 = vmatprep.subr.bf16.mxu0 0
    %156 = vmatpush1.bf16.msra.mxu0 0
    %157 = vmatprep.subr.bf16.mxu0 0
    %158 = vmatpush1.bf16.msra.mxu0 0
    %159 = vmatprep.subr.bf16.mxu0 0
    %160 = vmatpush1.bf16.msra.mxu0 0
    %161 = vmatprep.subr.bf16.mxu0 0
    %162 = vmatpush1.bf16.msra.mxu0 0
    %163 = vmatprep.subr.bf16.mxu0 0
    %164 = vmatpush1.bf16.msra.mxu0 0
    %165 = vmatprep.subr.bf16.mxu0 0
    %166 = vmatpush1.bf16.msra.mxu0 0
    %167 = vmatprep.mubr.bf16.mxu0 0
    %168 = vmatmul.mubr.bf16.gmra.mrb[0].mxu0 %v133
    %v169 = vpop.f32.mrb[0].mxu0
    %v170 = vadd.f32 0.0, %v169
    %v171 = vpop.f32.mrb[0].mxu0
    %v172 = vpop.f32.mrb[0].mxu0
    %v173 = vpop.f32.mrb[0].mxu0
    %174 = vdwg.mxu0
    %v175 = vadd.f32 %v114, %v170
    %v176 = vxor.u32 %v175, 2147483648
    %v177 = vmul.f32 %v176, 1.442695
    %v178 = vpow.pop %v177
    %v179 = vadd.f32 %v178, 1.0
    %v180 = vrcp.pop %v179
    %v181 = vmul.f32 1.0, %v180
    %183 = vrot.lane.b32.xlu0 %v55, 64
    %v184 = vpop.permute.xlu0 %183
    %v186 = vadd.f32 %v170, %v184
    %188 = vrot.lane.b32.xlu0 %v186, 64
    %v189 = vpop.permute.xlu0 %188
    %v191 = vmul.f32 %v181, %v189
    %193 = vrot.lane.b32.xlu0 %v191, 64
    %v194 = vpop.permute.xlu0 %193
    %v196 = vadd.f32 %v114, %v194
    %v197 = vtanh.pop %v196
    %v198 = vsub.f32 1.0, %v181
    %200 = vrot.lane.b32.xlu0 %v197, 96
    %v201 = vpop.permute.xlu0 %200
    %v203 = vmul.f32 %v198, %v201
    %v204 = vmul.f32 %v181, 0.0
    %v205 = vadd.f32 %v203, %v204
    %207 = vrot.lane.b32.xlu0 %v205, 96
    %v208 = vpop.permute.xlu0 %207
    %vm210 = vcmask 257024
    %211 = vst.msk [vmem:[#allocation2] sm:$0xf] %vm210, %v208
    %s212 = scalar_lea.vmem %s0, 2
    %v213 = vld [vmem:[%s212] sm:$0x3]
    %v214 = vpack.c.bf16 %v205, %v205
    %v216 = vsel %vm75, %v213, 0
    %218 = vmatprep.subr.bf16.mxu0 0
    %219 = vmatpush1.bf16.msra.mxu0 %v73
    %220 = vmatprep.subr.bf16.mxu0 0
    %221 = vmatpush1.bf16.msra.mxu0 0
    %222 = vmatprep.subr.bf16.mxu0 0
    %223 = vmatpush1.bf16.msra.mxu0 0
    %224 = vmatprep.subr.bf16.mxu0 0
    %225 = vmatpush1.bf16.msra.mxu0 0
    %226 = vmatprep.subr.bf16.mxu0 0
    %227 = vmatpush1.bf16.msra.mxu0 0
    %228 = vmatprep.subr.bf16.mxu0 0
    %229 = vmatpush1.bf16.msra.mxu0 0
    %230 = vmatprep.subr.bf16.mxu0 0
    %231 = vmatpush1.bf16.msra.mxu0 0
    %232 = vmatprep.subr.bf16.mxu0 0
    %233 = vmatpush1.bf16.msra.mxu0 0
    %234 = vmatprep.subr.bf16.mxu0 0
    %235 = vmatpush1.bf16.msra.mxu0 0
    %236 = vmatprep.subr.bf16.mxu0 0
    %237 = vmatpush1.bf16.msra.mxu0 0
    %238 = vmatprep.subr.bf16.mxu0 0
    %239 = vmatpush1.bf16.msra.mxu0 0
    %240 = vmatprep.subr.bf16.mxu0 0
    %241 = vmatpush1.bf16.msra.mxu0 0
    %242 = vmatprep.subr.bf16.mxu0 0
    %243 = vmatpush1.bf16.msra.mxu0 0
    %244 = vmatprep.subr.bf16.mxu0 0
    %245 = vmatpush1.bf16.msra.mxu0 0
    %246 = vmatprep.subr.bf16.mxu0 0
    %247 = vmatpush1.bf16.msra.mxu0 0
    %248 = vmatprep.subr.bf16.mxu0 0
    %249 = vmatpush1.bf16.msra.mxu0 0
    %250 = vmatprep.mubr.bf16.mxu0 0
    %251 = vmatmul.mubr.bf16.gmra.mrb[0].mxu0 %v216
    %v252 = vpop.f32.mrb[0].mxu0
    %v253 = vadd.f32 %v51, %v252
    %v254 = vpop.f32.mrb[0].mxu0
    %v255 = vpop.f32.mrb[0].mxu0
    %v256 = vpop.f32.mrb[0].mxu0
    %257 = vdwg.mxu0
    %259 = vrot.lane.b32.xlu0 %v214, 96
    %v260 = vpop.permute.xlu0 %259
    %v262 = vsel %vm131, %v260, 0
    %264 = vmatprep.subr.bf16.mxu0 0
    %265 = vmatpush1.bf16.msra.mxu0 %v127
    %266 = vmatprep.subr.bf16.mxu0 0
    %267 = vmatpush1.bf16.msra.mxu0 %v128
    %268 = vmatprep.subr.bf16.mxu0 0
    %269 = vmatpush1.bf16.msra.mxu0 0
    %270 = vmatprep.subr.bf16.mxu0 0
    %271 = vmatpush1.bf16.msra.mxu0 0
    %272 = vmatprep.subr.bf16.mxu0 0
    %273 = vmatpush1.bf16.msra.mxu0 0
    %274 = vmatprep.subr.bf16.mxu0 0
    %275 = vmatpush1.bf16.msra.mxu0 0
    %276 = vmatprep.subr.bf16.mxu0 0
    %277 = vmatpush1.bf16.msra.mxu0 0
    %278 = vmatprep.subr.bf16.mxu0 0
    %279 = vmatpush1.bf16.msra.mxu0 0
    %280 = vmatprep.subr.bf16.mxu0 0
    %281 = vmatpush1.bf16.msra.mxu0 0
    %282 = vmatprep.subr.bf16.mxu0 0
    %283 = vmatpush1.bf16.msra.mxu0 0
    %284 = vmatprep.subr.bf16.mxu0 0
    %285 = vmatpush1.bf16.msra.mxu0 0
    %286 = vmatprep.subr.bf16.mxu0 0
    %287 = vmatpush1.bf16.msra.mxu0 0
    %288 = vmatprep.subr.bf16.mxu0 0
    %289 = vmatpush1.bf16.msra.mxu0 0
    %290 = vmatprep.subr.bf16.mxu0 0
    %291 = vmatpush1.bf16.msra.mxu0 0
    %292 = vmatprep.subr.bf16.mxu0 0
    %293 = vmatpush1.bf16.msra.mxu0 0
    %294 = vmatprep.subr.bf16.mxu0 0
    %295 = vmatpush1.bf16.msra.mxu0 0
    %296 = vmatprep.mubr.bf16.mxu0 0
    %297 = vmatmul.mubr.bf16.gmra.mrb[0].mxu0 %v262
    %v298 = vpop.f32.mrb[0].mxu0
    %v299 = vadd.f32 0.0, %v298
    %v300 = vpop.f32.mrb[0].mxu0
    %v301 = vpop.f32.mrb[0].mxu0
    %v302 = vpop.f32.mrb[0].mxu0
    %303 = vdwg.mxu0
    %v304 = vadd.f32 %v253, %v299
    %v305 = vxor.u32 %v304, 2147483648
    %v306 = vmul.f32 %v305, 1.442695
    %v307 = vpow.pop %v306
    %v308 = vadd.f32 %v307, 1.0
    %v309 = vrcp.pop %v308
    %v310 = vmul.f32 1.0, %v309
    %v311 = vadd.f32 %v299, %v184
    %313 = vrot.lane.b32.xlu0 %v311, 64
    %v314 = vpop.permute.xlu0 %313
    %v316 = vmul.f32 %v310, %v314
    %318 = vrot.lane.b32.xlu0 %v316, 64
    %v319 = vpop.permute.xlu0 %318
    %v321 = vadd.f32 %v253, %v319
    %v322 = vtanh.pop %v321
    %v323 = vsub.f32 1.0, %v310
    %325 = vrot.lane.b32.xlu0 %v322, 96
    %v326 = vpop.permute.xlu0 %325
    %v328 = vmul.f32 %v323, %v326
    %v329 = vmul.f32 %v310, %v205
    %v330 = vadd.f32 %v328, %v329
    %332 = vrot.lane.b32.xlu0 %v330, 96
    %v333 = vpop.permute.xlu0 %332
    %335 = vst.msk [vmem:[#allocation2 + $0x4] sm:$0xf] %vm210, %v333
    %s336 = scalar_lea.vmem %s0, 4
    %v337 = vld [vmem:[%s336] sm:$0x3]
    %v338 = vpack.c.bf16 %v330, %v330
    %v340 = vsel %vm75, %v337, 0
    %342 = vmatprep.subr.bf16.mxu0 0
    %343 = vmatpush1.bf16.msra.mxu0 %v73
    %344 = vmatprep.subr.bf16.mxu0 0
    %345 = vmatpush1.bf16.msra.mxu0 0
    %346 = vmatprep.subr.bf16.mxu0 0
    %347 = vmatpush1.bf16.msra.mxu0 0
    %348 = vmatprep.subr.bf16.mxu0 0
    %349 = vmatpush1.bf16.msra.mxu0 0
    %350 = vmatprep.subr.bf16.mxu0 0
    %351 = vmatpush1.bf16.msra.mxu0 0
    %352 = vmatprep.subr.bf16.mxu0 0
    %353 = vmatpush1.bf16.msra.mxu0 0
    %354 = vmatprep.subr.bf16.mxu0 0
    %355 = vmatpush1.bf16.msra.mxu0 0
    %356 = vmatprep.subr.bf16.mxu0 0
    %357 = vmatpush1.bf16.msra.mxu0 0
    %358 = vmatprep.subr.bf16.mxu0 0
    %359 = vmatpush1.bf16.msra.mxu0 0
    %360 = vmatprep.subr.bf16.mxu0 0
    %361 = vmatpush1.bf16.msra.mxu0 0
    %362 = vmatprep.subr.bf16.mxu0 0
    %363 = vmatpush1.bf16.msra.mxu0 0
    %364 = vmatprep.subr.bf16.mxu0 0
    %365 = vmatpush1.bf16.msra.mxu0 0
    %366 = vmatprep.subr.bf16.mxu0 0
    %367 = vmatpush1.bf16.msra.mxu0 0
    %368 = vmatprep.subr.bf16.mxu0 0
    %369 = vmatpush1.bf16.msra.mxu0 0
    %370 = vmatprep.subr.bf16.mxu0 0
    %371 = vmatpush1.bf16.msra.mxu0 0
    %372 = vmatprep.subr.bf16.mxu0 0
    %373 = vmatpush1.bf16.msra.mxu0 0
    %374 = vmatprep.mubr.bf16.mxu0 0
    %375 = vmatmul.mubr.bf16.gmra.mrb[0].mxu0 %v340
    %v376 = vpop.f32.mrb[0].mxu0
    %v377 = vadd.f32 %v51, %v376
    %v378 = vpop.f32.mrb[0].mxu0
    %v379 = vpop.f32.mrb[0].mxu0
    %v380 = vpop.f32.mrb[0].mxu0
    %381 = vdwg.mxu0
    %383 = vrot.lane.b32.xlu0 %v338, 96
    %v384 = vpop.permute.xlu0 %383
    %v386 = vsel %vm131, %v384, 0
    %388 = vmatprep.subr.bf16.mxu0 0
    %389 = vmatpush1.bf16.msra.mxu0 %v127
    %390 = vmatprep.subr.bf16.mxu0 0
    %391 = vmatpush1.bf16.msra.mxu0 %v128
    %392 = vmatprep.subr.bf16.mxu0 0
    %393 = vmatpush1.bf16.msra.mxu0 0
    %394 = vmatprep.subr.bf16.mxu0 0
    %395 = vmatpush1.bf16.msra.mxu0 0
    %396 = vmatprep.subr.bf16.mxu0 0
    %397 = vmatpush1.bf16.msra.mxu0 0
    %398 = vmatprep.subr.bf16.mxu0 0
    %399 = vmatpush1.bf16.msra.mxu0 0
    %400 = vmatprep.subr.bf16.mxu0 0
    %401 = vmatpush1.bf16.msra.mxu0 0
    %402 = vmatprep.subr.bf16.mxu0 0
    %403 = vmatpush1.bf16.msra.mxu0 0
    %404 = vmatprep.subr.bf16.mxu0 0
    %405 = vmatpush1.bf16.msra.mxu0 0
    %406 = vmatprep.subr.bf16.mxu0 0
    %407 = vmatpush1.bf16.msra.mxu0 0
    %408 = vmatprep.subr.bf16.mxu0 0
    %409 = vmatpush1.bf16.msra.mxu0 0
    %410 = vmatprep.subr.bf16.mxu0 0
    %411 = vmatpush1.bf16.msra.mxu0 0
    %412 = vmatprep.subr.bf16.mxu0 0
    %413 = vmatpush1.bf16.msra.mxu0 0
    %414 = vmatprep.subr.bf16.mxu0 0
    %415 = vmatpush1.bf16.msra.mxu0 0
    %416 = vmatprep.subr.bf16.mxu0 0
    %417 = vmatpush1.bf16.msra.mxu0 0
    %418 = vmatprep.subr.bf16.mxu0 0
    %419 = vmatpush1.bf16.msra.mxu0 0
    %420 = vmatprep.mubr.bf16.mxu0 0
    %421 = vmatmul.mubr.bf16.gmra.mrb[0].mxu0 %v386
    %v422 = vpop.f32.mrb[0].mxu0
    %v423 = vadd.f32 0.0, %v422
    %v424 = vpop.f32.mrb[0].mxu0
    %v425 = vpop.f32.mrb[0].mxu0
    %v426 = vpop.f32.mrb[0].mxu0
    %427 = vdwg.mxu0
    %v428 = vadd.f32 %v377, %v423
    %v429 = vxor.u32 %v428, 2147483648
    %v430 = vmul.f32 %v429, 1.442695
    %v431 = vpow.pop %v430
    %v432 = vadd.f32 %v431, 1.0
    %v433 = vrcp.pop %v432
    %v434 = vmul.f32 1.0, %v433
    %v435 = vadd.f32 %v423, %v184
    %437 = vrot.lane.b32.xlu0 %v435, 64
    %v438 = vpop.permute.xlu0 %437
    %v440 = vmul.f32 %v434, %v438
    %442 = vrot.lane.b32.xlu0 %v440, 64
    %v443 = vpop.permute.xlu0 %442
    %v445 = vadd.f32 %v377, %v443
    %v446 = vtanh.pop %v445
    %v447 = vsub.f32 1.0, %v434
    %449 = vrot.lane.b32.xlu0 %v446, 96
    %v450 = vpop.permute.xlu0 %449
    %v452 = vmul.f32 %v447, %v450
    %v453 = vmul.f32 %v434, %v330
    %v454 = vadd.f32 %v452, %v453
    %456 = vrot.lane.b32.xlu0 %v454, 96
    %v457 = vpop.permute.xlu0 %456
    %459 = vst.msk [vmem:[#allocation2 + $0x8] sm:$0xf] %vm210, %v457
    %s460 = scalar_lea.vmem %s0, 6
    %v461 = vld [vmem:[%s460] sm:$0x3]
    %v462 = vpack.c.bf16 %v454, %v454
    %v464 = vsel %vm75, %v461, 0
    %466 = vmatprep.subr.bf16.mxu0 0
    %467 = vmatpush1.bf16.msra.mxu0 %v73
    %468 = vmatprep.subr.bf16.mxu0 0
    %469 = vmatpush1.bf16.msra.mxu0 0
    %470 = vmatprep.subr.bf16.mxu0 0
    %471 = vmatpush1.bf16.msra.mxu0 0
    %472 = vmatprep.subr.bf16.mxu0 0
    %473 = vmatpush1.bf16.msra.mxu0 0
    %474 = vmatprep.subr.bf16.mxu0 0
    %475 = vmatpush1.bf16.msra.mxu0 0
    %476 = vmatprep.subr.bf16.mxu0 0
    %477 = vmatpush1.bf16.msra.mxu0 0
    %478 = vmatprep.subr.bf16.mxu0 0
    %479 = vmatpush1.bf16.msra.mxu0 0
    %480 = vmatprep.subr.bf16.mxu0 0
    %481 = vmatpush1.bf16.msra.mxu0 0
    %482 = vmatprep.subr.bf16.mxu0 0
    %483 = vmatpush1.bf16.msra.mxu0 0
    %484 = vmatprep.subr.bf16.mxu0 0
    %485 = vmatpush1.bf16.msra.mxu0 0
    %486 = vmatprep.subr.bf16.mxu0 0
    %487 = vmatpush1.bf16.msra.mxu0 0
    %488 = vmatprep.subr.bf16.mxu0 0
    %489 = vmatpush1.bf16.msra.mxu0 0
    %490 = vmatprep.subr.bf16.mxu0 0
    %491 = vmatpush1.bf16.msra.mxu0 0
    %492 = vmatprep.subr.bf16.mxu0 0
    %493 = vmatpush1.bf16.msra.mxu0 0
    %494 = vmatprep.subr.bf16.mxu0 0
    %495 = vmatpush1.bf16.msra.mxu0 0
    %496 = vmatprep.subr.bf16.mxu0 0
    %497 = vmatpush1.bf16.msra.mxu0 0
    %498 = vmatprep.mubr.bf16.mxu0 0
    %499 = vmatmul.mubr.bf16.gmra.mrb[0].mxu0 %v464
    %v500 = vpop.f32.mrb[0].mxu0
    %v501 = vadd.f32 %v51, %v500
    %v502 = vpop.f32.mrb[0].mxu0
    %v503 = vpop.f32.mrb[0].mxu0
    %v504 = vpop.f32.mrb[0].mxu0
    %505 = vdwg.mxu0
    %507 = vrot.lane.b32.xlu0 %v462, 96
    %v508 = vpop.permute.xlu0 %507
    %v510 = vsel %vm131, %v508, 0
    %512 = vmatprep.subr.bf16.mxu0 0
    %513 = vmatpush1.bf16.msra.mxu0 %v127
    %514 = vmatprep.subr.bf16.mxu0 0
    %515 = vmatpush1.bf16.msra.mxu0 %v128
    %516 = vmatprep.subr.bf16.mxu0 0
    %517 = vmatpush1.bf16.msra.mxu0 0
    %518 = vmatprep.subr.bf16.mxu0 0
    %519 = vmatpush1.bf16.msra.mxu0 0
    %520 = vmatprep.subr.bf16.mxu0 0
    %521 = vmatpush1.bf16.msra.mxu0 0
    %522 = vmatprep.subr.bf16.mxu0 0
    %523 = vmatpush1.bf16.msra.mxu0 0
    %524 = vmatprep.subr.bf16.mxu0 0
    %525 = vmatpush1.bf16.msra.mxu0 0
    %526 = vmatprep.subr.bf16.mxu0 0
    %527 = vmatpush1.bf16.msra.mxu0 0
    %528 = vmatprep.subr.bf16.mxu0 0
    %529 = vmatpush1.bf16.msra.mxu0 0
    %530 = vmatprep.subr.bf16.mxu0 0
    %531 = vmatpush1.bf16.msra.mxu0 0
    %532 = vmatprep.subr.bf16.mxu0 0
    %533 = vmatpush1.bf16.msra.mxu0 0
    %534 = vmatprep.subr.bf16.mxu0 0
    %535 = vmatpush1.bf16.msra.mxu0 0
    %536 = vmatprep.subr.bf16.mxu0 0
    %537 = vmatpush1.bf16.msra.mxu0 0
    %538 = vmatprep.subr.bf16.mxu0 0
    %539 = vmatpush1.bf16.msra.mxu0 0
    %540 = vmatprep.subr.bf16.mxu0 0
    %541 = vmatpush1.bf16.msra.mxu0 0
    %542 = vmatprep.subr.bf16.mxu0 0
    %543 = vmatpush1.bf16.msra.mxu0 0
    %544 = vmatprep.mubr.bf16.mxu0 0
    %545 = vmatmul.mubr.bf16.gmra.mrb[0].mxu0 %v510
    %v546 = vpop.f32.mrb[0].mxu0
    %v547 = vadd.f32 0.0, %v546
    %v548 = vpop.f32.mrb[0].mxu0
    %v549 = vpop.f32.mrb[0].mxu0
    %v550 = vpop.f32.mrb[0].mxu0
    %551 = vdwg.mxu0
    %v552 = vadd.f32 %v501, %v547
    %v553 = vxor.u32 %v552, 2147483648
    %v554 = vmul.f32 %v553, 1.442695
    %v555 = vpow.pop %v554
    %v556 = vadd.f32 %v555, 1.0
    %v557 = vrcp.pop %v556
    %v558 = vmul.f32 1.0, %v557
    %v559 = vadd.f32 %v547, %v184
    %561 = vrot.lane.b32.xlu0 %v559, 64
    %v562 = vpop.permute.xlu0 %561
    %v564 = vmul.f32 %v558, %v562
    %566 = vrot.lane.b32.xlu0 %v564, 64
    %v567 = vpop.permute.xlu0 %566
    %v569 = vadd.f32 %v501, %v567
    %v570 = vtanh.pop %v569
    %v571 = vsub.f32 1.0, %v558
    %573 = vrot.lane.b32.xlu0 %v570, 96
    %v574 = vpop.permute.xlu0 %573
    %v576 = vmul.f32 %v571, %v574
    %v577 = vmul.f32 %v558, %v454
    %v578 = vadd.f32 %v576, %v577
    %580 = vrot.lane.b32.xlu0 %v578, 96
    %v581 = vpop.permute.xlu0 %580
    %583 = vst.msk [vmem:[#allocation2 + $0xc] sm:$0xf] %vm210, %v581
    %s584 = scalar_lea.vmem %s0, 8
    %v585 = vld [vmem:[%s584] sm:$0x3]
    %v586 = vpack.c.bf16 %v578, %v578
    %v588 = vsel %vm75, %v585, 0
    %590 = vmatprep.subr.bf16.mxu0 0
    %591 = vmatpush1.bf16.msra.mxu0 %v73
    %592 = vmatprep.subr.bf16.mxu0 0
    %593 = vmatpush1.bf16.msra.mxu0 0
    %594 = vmatprep.subr.bf16.mxu0 0
    %595 = vmatpush1.bf16.msra.mxu0 0
    %596 = vmatprep.subr.bf16.mxu0 0
    %597 = vmatpush1.bf16.msra.mxu0 0
    %598 = vmatprep.subr.bf16.mxu0 0
    %599 = vmatpush1.bf16.msra.mxu0 0
    %600 = vmatprep.subr.bf16.mxu0 0
    %601 = vmatpush1.bf16.msra.mxu0 0
    %602 = vmatprep.subr.bf16.mxu0 0
    %603 = vmatpush1.bf16.msra.mxu0 0
    %604 = vmatprep.subr.bf16.mxu0 0
    %605 = vmatpush1.bf16.msra.mxu0 0
    %606 = vmatprep.subr.bf16.mxu0 0
    %607 = vmatpush1.bf16.msra.mxu0 0
    %608 = vmatprep.subr.bf16.mxu0 0
    %609 = vmatpush1.bf16.msra.mxu0 0
    %610 = vmatprep.subr.bf16.mxu0 0
    %611 = vmatpush1.bf16.msra.mxu0 0
    %612 = vmatprep.subr.bf16.mxu0 0
    %613 = vmatpush1.bf16.msra.mxu0 0
    %614 = vmatprep.subr.bf16.mxu0 0
    %615 = vmatpush1.bf16.msra.mxu0 0
    %616 = vmatprep.subr.bf16.mxu0 0
    %617 = vmatpush1.bf16.msra.mxu0 0
    %618 = vmatprep.subr.bf16.mxu0 0
    %619 = vmatpush1.bf16.msra.mxu0 0
    %620 = vmatprep.subr.bf16.mxu0 0
    %621 = vmatpush1.bf16.msra.mxu0 0
    %622 = vmatprep.mubr.bf16.mxu0 0
    %623 = vmatmul.mubr.bf16.gmra.mrb[0].mxu0 %v588
    %v624 = vpop.f32.mrb[0].mxu0
    %v625 = vadd.f32 %v51, %v624
    %v626 = vpop.f32.mrb[0].mxu0
    %v627 = vpop.f32.mrb[0].mxu0
    %v628 = vpop.f32.mrb[0].mxu0
    %629 = vdwg.mxu0
    %631 = vrot.lane.b32.xlu0 %v586, 96
    %v632 = vpop.permute.xlu0 %631
    %v634 = vsel %vm131, %v632, 0
    %636 = vmatprep.subr.bf16.mxu0 0
    %637 = vmatpush1.bf16.msra.mxu0 %v127
    %638 = vmatprep.subr.bf16.mxu0 0
    %639 = vmatpush1.bf16.msra.mxu0 %v128
    %640 = vmatprep.subr.bf16.mxu0 0
    %641 = vmatpush1.bf16.msra.mxu0 0
    %642 = vmatprep.subr.bf16.mxu0 0
    %643 = vmatpush1.bf16.msra.mxu0 0
    %644 = vmatprep.subr.bf16.mxu0 0
    %645 = vmatpush1.bf16.msra.mxu0 0
    %646 = vmatprep.subr.bf16.mxu0 0
    %647 = vmatpush1.bf16.msra.mxu0 0
    %648 = vmatprep.subr.bf16.mxu0 0
    %649 = vmatpush1.bf16.msra.mxu0 0
    %650 = vmatprep.subr.bf16.mxu0 0
    %651 = vmatpush1.bf16.msra.mxu0 0
    %652 = vmatprep.subr.bf16.mxu0 0
    %653 = vmatpush1.bf16.msra.mxu0 0
    %654 = vmatprep.subr.bf16.mxu0 0
    %655 = vmatpush1.bf16.msra.mxu0 0
    %656 = vmatprep.subr.bf16.mxu0 0
    %657 = vmatpush1.bf16.msra.mxu0 0
    %658 = vmatprep.subr.bf16.mxu0 0
    %659 = vmatpush1.bf16.msra.mxu0 0
    %660 = vmatprep.subr.bf16.mxu0 0
    %661 = vmatpush1.bf16.msra.mxu0 0
    %662 = vmatprep.subr.bf16.mxu0 0
    %663 = vmatpush1.bf16.msra.mxu0 0
    %664 = vmatprep.subr.bf16.mxu0 0
    %665 = vmatpush1.bf16.msra.mxu0 0
    %666 = vmatprep.subr.bf16.mxu0 0
    %667 = vmatpush1.bf16.msra.mxu0 0
    %668 = vmatprep.mubr.bf16.mxu0 0
    %669 = vmatmul.mubr.bf16.gmra.mrb[0].mxu0 %v634
    %v670 = vpop.f32.mrb[0].mxu0
    %v671 = vadd.f32 0.0, %v670
    %v672 = vpop.f32.mrb[0].mxu0
    %v673 = vpop.f32.mrb[0].mxu0
    %v674 = vpop.f32.mrb[0].mxu0
    %675 = vdwg.mxu0
    %v676 = vadd.f32 %v625, %v671
    %v677 = vxor.u32 %v676, 2147483648
    %v678 = vmul.f32 %v677, 1.442695
    %v679 = vpow.pop %v678
    %v680 = vadd.f32 %v679, 1.0
    %v681 = vrcp.pop %v680
    %v682 = vmul.f32 1.0, %v681
    %v683 = vadd.f32 %v671, %v184
    %685 = vrot.lane.b32.xlu0 %v683, 64
    %v686 = vpop.permute.xlu0 %685
    %v688 = vmul.f32 %v682, %v686
    %690 = vrot.lane.b32.xlu0 %v688, 64
    %v691 = vpop.permute.xlu0 %690
    %v693 = vadd.f32 %v625, %v691
    %v694 = vtanh.pop %v693
    %v695 = vsub.f32 1.0, %v682
    %697 = vrot.lane.b32.xlu0 %v694, 96
    %v698 = vpop.permute.xlu0 %697
    %v700 = vmul.f32 %v695, %v698
    %v701 = vmul.f32 %v682, %v578
    %v702 = vadd.f32 %v700, %v701
    %704 = vrot.lane.b32.xlu0 %v702, 96
    %v705 = vpop.permute.xlu0 %704
    %707 = vst.msk [vmem:[#allocation2 + $0x10] sm:$0xf] %vm210, %v705
    %s708 = scalar_lea.vmem %s0, 10
    %v709 = vld [vmem:[%s708] sm:$0x3]
    %v710 = vpack.c.bf16 %v702, %v702
    %v712 = vsel %vm75, %v709, 0
    %714 = vmatprep.subr.bf16.mxu0 0
    %715 = vmatpush1.bf16.msra.mxu0 %v73
    %716 = vmatprep.subr.bf16.mxu0 0
    %717 = vmatpush1.bf16.msra.mxu0 0
    %718 = vmatprep.subr.bf16.mxu0 0
    %719 = vmatpush1.bf16.msra.mxu0 0
    %720 = vmatprep.subr.bf16.mxu0 0
    %721 = vmatpush1.bf16.msra.mxu0 0
    %722 = vmatprep.subr.bf16.mxu0 0
    %723 = vmatpush1.bf16.msra.mxu0 0
    %724 = vmatprep.subr.bf16.mxu0 0
    %725 = vmatpush1.bf16.msra.mxu0 0
    %726 = vmatprep.subr.bf16.mxu0 0
    %727 = vmatpush1.bf16.msra.mxu0 0
    %728 = vmatprep.subr.bf16.mxu0 0
    %729 = vmatpush1.bf16.msra.mxu0 0
    %730 = vmatprep.subr.bf16.mxu0 0
    %731 = vmatpush1.bf16.msra.mxu0 0
    %732 = vmatprep.subr.bf16.mxu0 0
    %733 = vmatpush1.bf16.msra.mxu0 0
    %734 = vmatprep.subr.bf16.mxu0 0
    %735 = vmatpush1.bf16.msra.mxu0 0
    %736 = vmatprep.subr.bf16.mxu0 0
    %737 = vmatpush1.bf16.msra.mxu0 0
    %738 = vmatprep.subr.bf16.mxu0 0
    %739 = vmatpush1.bf16.msra.mxu0 0
    %740 = vmatprep.subr.bf16.mxu0 0
    %741 = vmatpush1.bf16.msra.mxu0 0
    %742 = vmatprep.subr.bf16.mxu0 0
    %743 = vmatpush1.bf16.msra.mxu0 0
    %744 = vmatprep.subr.bf16.mxu0 0
    %745 = vmatpush1.bf16.msra.mxu0 0
    %746 = vmatprep.mubr.bf16.mxu0 0
    %747 = vmatmul.mubr.bf16.gmra.mrb[0].mxu0 %v712
    %v748 = vpop.f32.mrb[0].mxu0
    %v749 = vadd.f32 %v51, %v748
    %v750 = vpop.f32.mrb[0].mxu0
    %v751 = vpop.f32.mrb[0].mxu0
    %v752 = vpop.f32.mrb[0].mxu0
    %753 = vdwg.mxu0
    %755 = vrot.lane.b32.xlu0 %v710, 96
    %v756 = vpop.permute.xlu0 %755
    %v758 = vsel %vm131, %v756, 0
    %760 = vmatprep.subr.bf16.mxu0 0
    %761 = vmatpush1.bf16.msra.mxu0 %v127
    %762 = vmatprep.subr.bf16.mxu0 0
    %763 = vmatpush1.bf16.msra.mxu0 %v128
    %764 = vmatprep.subr.bf16.mxu0 0
    %765 = vmatpush1.bf16.msra.mxu0 0
    %766 = vmatprep.subr.bf16.mxu0 0
    %767 = vmatpush1.bf16.msra.mxu0 0
    %768 = vmatprep.subr.bf16.mxu0 0
    %769 = vmatpush1.bf16.msra.mxu0 0
    %770 = vmatprep.subr.bf16.mxu0 0
    %771 = vmatpush1.bf16.msra.mxu0 0
    %772 = vmatprep.subr.bf16.mxu0 0
    %773 = vmatpush1.bf16.msra.mxu0 0
    %774 = vmatprep.subr.bf16.mxu0 0
    %775 = vmatpush1.bf16.msra.mxu0 0
    %776 = vmatprep.subr.bf16.mxu0 0
    %777 = vmatpush1.bf16.msra.mxu0 0
    %778 = vmatprep.subr.bf16.mxu0 0
    %779 = vmatpush1.bf16.msra.mxu0 0
    %780 = vmatprep.subr.bf16.mxu0 0
    %781 = vmatpush1.bf16.msra.mxu0 0
    %782 = vmatprep.subr.bf16.mxu0 0
    %783 = vmatpush1.bf16.msra.mxu0 0
    %784 = vmatprep.subr.bf16.mxu0 0
    %785 = vmatpush1.bf16.msra.mxu0 0
    %786 = vmatprep.subr.bf16.mxu0 0
    %787 = vmatpush1.bf16.msra.mxu0 0
    %788 = vmatprep.subr.bf16.mxu0 0
    %789 = vmatpush1.bf16.msra.mxu0 0
    %790 = vmatprep.subr.bf16.mxu0 0
    %791 = vmatpush1.bf16.msra.mxu0 0
    %792 = vmatprep.mubr.bf16.mxu0 0
    %793 = vmatmul.mubr.bf16.gmra.mrb[0].mxu0 %v758
    %v794 = vpop.f32.mrb[0].mxu0
    %v795 = vadd.f32 0.0, %v794
    %v796 = vpop.f32.mrb[0].mxu0
    %v797 = vpop.f32.mrb[0].mxu0
    %v798 = vpop.f32.mrb[0].mxu0
    %799 = vdwg.mxu0
    %v800 = vadd.f32 %v749, %v795
    %v801 = vxor.u32 %v800, 2147483648
    %v802 = vmul.f32 %v801, 1.442695
    %v803 = vpow.pop %v802
    %v804 = vadd.f32 %v803, 1.0
    %v805 = vrcp.pop %v804
    %v806 = vmul.f32 1.0, %v805
    %v807 = vadd.f32 %v795, %v184
    %809 = vrot.lane.b32.xlu0 %v807, 64
    %v810 = vpop.permute.xlu0 %809
    %v812 = vmul.f32 %v806, %v810
    %814 = vrot.lane.b32.xlu0 %v812, 64
    %v815 = vpop.permute.xlu0 %814
    %v817 = vadd.f32 %v749, %v815
    %v818 = vtanh.pop %v817
    %v819 = vsub.f32 1.0, %v806
    %821 = vrot.lane.b32.xlu0 %v818, 96
    %v822 = vpop.permute.xlu0 %821
    %v824 = vmul.f32 %v819, %v822
    %v825 = vmul.f32 %v806, %v702
    %v826 = vadd.f32 %v824, %v825
    %828 = vrot.lane.b32.xlu0 %v826, 96
    %v829 = vpop.permute.xlu0 %828
    %831 = vst.msk [vmem:[#allocation2 + $0x14] sm:$0xf] %vm210, %v829
    %s832 = scalar_lea.vmem %s0, 12
    %v833 = vld [vmem:[%s832] sm:$0x3]
    %v834 = vpack.c.bf16 %v826, %v826
    %v836 = vsel %vm75, %v833, 0
    %838 = vmatprep.subr.bf16.mxu0 0
    %839 = vmatpush1.bf16.msra.mxu0 %v73
    %840 = vmatprep.subr.bf16.mxu0 0
    %841 = vmatpush1.bf16.msra.mxu0 0
    %842 = vmatprep.subr.bf16.mxu0 0
    %843 = vmatpush1.bf16.msra.mxu0 0
    %844 = vmatprep.subr.bf16.mxu0 0
    %845 = vmatpush1.bf16.msra.mxu0 0
    %846 = vmatprep.subr.bf16.mxu0 0
    %847 = vmatpush1.bf16.msra.mxu0 0
    %848 = vmatprep.subr.bf16.mxu0 0
    %849 = vmatpush1.bf16.msra.mxu0 0
    %850 = vmatprep.subr.bf16.mxu0 0
    %851 = vmatpush1.bf16.msra.mxu0 0
    %852 = vmatprep.subr.bf16.mxu0 0
    %853 = vmatpush1.bf16.msra.mxu0 0
    %854 = vmatprep.subr.bf16.mxu0 0
    %855 = vmatpush1.bf16.msra.mxu0 0
    %856 = vmatprep.subr.bf16.mxu0 0
    %857 = vmatpush1.bf16.msra.mxu0 0
    %858 = vmatprep.subr.bf16.mxu0 0
    %859 = vmatpush1.bf16.msra.mxu0 0
    %860 = vmatprep.subr.bf16.mxu0 0
    %861 = vmatpush1.bf16.msra.mxu0 0
    %862 = vmatprep.subr.bf16.mxu0 0
    %863 = vmatpush1.bf16.msra.mxu0 0
    %864 = vmatprep.subr.bf16.mxu0 0
    %865 = vmatpush1.bf16.msra.mxu0 0
    %866 = vmatprep.subr.bf16.mxu0 0
    %867 = vmatpush1.bf16.msra.mxu0 0
    %868 = vmatprep.subr.bf16.mxu0 0
    %869 = vmatpush1.bf16.msra.mxu0 0
    %870 = vmatprep.mubr.bf16.mxu0 0
    %871 = vmatmul.mubr.bf16.gmra.mrb[0].mxu0 %v836
    %v872 = vpop.f32.mrb[0].mxu0
    %v873 = vadd.f32 %v51, %v872
    %v874 = vpop.f32.mrb[0].mxu0
    %v875 = vpop.f32.mrb[0].mxu0
    %v876 = vpop.f32.mrb[0].mxu0
    %877 = vdwg.mxu0
    %879 = vrot.lane.b32.xlu0 %v834, 96
    %v880 = vpop.permute.xlu0 %879
    %v882 = vsel %vm131, %v880, 0
    %884 = vmatprep.subr.bf16.mxu0 0
    %885 = vmatpush1.bf16.msra.mxu0 %v127
    %886 = vmatprep.subr.bf16.mxu0 0
    %887 = vmatpush1.bf16.msra.mxu0 %v128
    %888 = vmatprep.subr.bf16.mxu0 0
    %889 = vmatpush1.bf16.msra.mxu0 0
    %890 = vmatprep.subr.bf16.mxu0 0
    %891 = vmatpush1.bf16.msra.mxu0 0
    %892 = vmatprep.subr.bf16.mxu0 0
    %893 = vmatpush1.bf16.msra.mxu0 0
    %894 = vmatprep.subr.bf16.mxu0 0
    %895 = vmatpush1.bf16.msra.mxu0 0
    %896 = vmatprep.subr.bf16.mxu0 0
    %897 = vmatpush1.bf16.msra.mxu0 0
    %898 = vmatprep.subr.bf16.mxu0 0
    %899 = vmatpush1.bf16.msra.mxu0 0
    %900 = vmatprep.subr.bf16.mxu0 0
    %901 = vmatpush1.bf16.msra.mxu0 0
    %902 = vmatprep.subr.bf16.mxu0 0
    %903 = vmatpush1.bf16.msra.mxu0 0
    %904 = vmatprep.subr.bf16.mxu0 0
    %905 = vmatpush1.bf16.msra.mxu0 0
    %906 = vmatprep.subr.bf16.mxu0 0
    %907 = vmatpush1.bf16.msra.mxu0 0
    %908 = vmatprep.subr.bf16.mxu0 0
    %909 = vmatpush1.bf16.msra.mxu0 0
    %910 = vmatprep.subr.bf16.mxu0 0
    %911 = vmatpush1.bf16.msra.mxu0 0
    %912 = vmatprep.subr.bf16.mxu0 0
    %913 = vmatpush1.bf16.msra.mxu0 0
    %914 = vmatprep.subr.bf16.mxu0 0
    %915 = vmatpush1.bf16.msra.mxu0 0
    %916 = vmatprep.mubr.bf16.mxu0 0
    %917 = vmatmul.mubr.bf16.gmra.mrb[0].mxu0 %v882
    %v918 = vpop.f32.mrb[0].mxu0
    %v919 = vadd.f32 0.0, %v918
    %v920 = vpop.f32.mrb[0].mxu0
    %v921 = vpop.f32.mrb[0].mxu0
    %v922 = vpop.f32.mrb[0].mxu0
    %923 = vdwg.mxu0
    %v924 = vadd.f32 %v873, %v919
    %v925 = vxor.u32 %v924, 2147483648
    %v926 = vmul.f32 %v925, 1.442695
    %v927 = vpow.pop %v926
    %v928 = vadd.f32 %v927, 1.0
    %v929 = vrcp.pop %v928
    %v930 = vmul.f32 1.0, %v929
    %v931 = vadd.f32 %v919, %v184
    %933 = vrot.lane.b32.xlu0 %v931, 64
    %v934 = vpop.permute.xlu0 %933
    %v936 = vmul.f32 %v930, %v934
    %938 = vrot.lane.b32.xlu0 %v936, 64
    %v939 = vpop.permute.xlu0 %938
    %v941 = vadd.f32 %v873, %v939
    %v942 = vtanh.pop %v941
    %v943 = vsub.f32 1.0, %v930
    %945 = vrot.lane.b32.xlu0 %v942, 96
    %v946 = vpop.permute.xlu0 %945
    %v948 = vmul.f32 %v943, %v946
    %v949 = vmul.f32 %v930, %v826
    %v950 = vadd.f32 %v948, %v949
    %952 = vrot.lane.b32.xlu0 %v950, 96
    %v953 = vpop.permute.xlu0 %952
    %955 = vst.msk [vmem:[#allocation2 + $0x18] sm:$0xf] %vm210, %v953
    %s956 = scalar_lea.vmem %s0, 14
    %v957 = vld [vmem:[%s956] sm:$0x3]
    %v958 = vpack.c.bf16 %v950, %v950
    %v960 = vsel %vm75, %v957, 0
    %962 = vmatprep.subr.bf16.mxu0 0
    %963 = vmatpush1.bf16.msra.mxu0 %v73
    %964 = vmatprep.subr.bf16.mxu0 0
    %965 = vmatpush1.bf16.msra.mxu0 0
    %966 = vmatprep.subr.bf16.mxu0 0
    %967 = vmatpush1.bf16.msra.mxu0 0
    %968 = vmatprep.subr.bf16.mxu0 0
    %969 = vmatpush1.bf16.msra.mxu0 0
    %970 = vmatprep.subr.bf16.mxu0 0
    %971 = vmatpush1.bf16.msra.mxu0 0
    %972 = vmatprep.subr.bf16.mxu0 0
    %973 = vmatpush1.bf16.msra.mxu0 0
    %974 = vmatprep.subr.bf16.mxu0 0
    %975 = vmatpush1.bf16.msra.mxu0 0
    %976 = vmatprep.subr.bf16.mxu0 0
    %977 = vmatpush1.bf16.msra.mxu0 0
    %978 = vmatprep.subr.bf16.mxu0 0
    %979 = vmatpush1.bf16.msra.mxu0 0
    %980 = vmatprep.subr.bf16.mxu0 0
    %981 = vmatpush1.bf16.msra.mxu0 0
    %982 = vmatprep.subr.bf16.mxu0 0
    %983 = vmatpush1.bf16.msra.mxu0 0
    %984 = vmatprep.subr.bf16.mxu0 0
    %985 = vmatpush1.bf16.msra.mxu0 0
    %986 = vmatprep.subr.bf16.mxu0 0
    %987 = vmatpush1.bf16.msra.mxu0 0
    %988 = vmatprep.subr.bf16.mxu0 0
    %989 = vmatpush1.bf16.msra.mxu0 0
    %990 = vmatprep.subr.bf16.mxu0 0
    %991 = vmatpush1.bf16.msra.mxu0 0
    %992 = vmatprep.subr.bf16.mxu0 0
    %993 = vmatpush1.bf16.msra.mxu0 0
    %994 = vmatprep.mubr.bf16.mxu0 0
    %995 = vmatmul.mubr.bf16.gmra.mrb[0].mxu0 %v960
    %v996 = vpop.f32.mrb[0].mxu0
    %v997 = vadd.f32 %v51, %v996
    %v998 = vpop.f32.mrb[0].mxu0
    %v999 = vpop.f32.mrb[0].mxu0
    %v1000 = vpop.f32.mrb[0].mxu0
    %1001 = vdwg.mxu0
    %1003 = vrot.lane.b32.xlu0 %v958, 96
    %v1004 = vpop.permute.xlu0 %1003
    %v1006 = vsel %vm131, %v1004, 0
    %1008 = vmatprep.subr.bf16.mxu0 0
    %1009 = vmatpush1.bf16.msra.mxu0 %v127
    %1010 = vmatprep.subr.bf16.mxu0 0
    %1011 = vmatpush1.bf16.msra.mxu0 %v128
    %1012 = vmatprep.subr.bf16.mxu0 0
    %1013 = vmatpush1.bf16.msra.mxu0 0
    %1014 = vmatprep.subr.bf16.mxu0 0
    %1015 = vmatpush1.bf16.msra.mxu0 0
    %1016 = vmatprep.subr.bf16.mxu0 0
    %1017 = vmatpush1.bf16.msra.mxu0 0
    %1018 = vmatprep.subr.bf16.mxu0 0
    %1019 = vmatpush1.bf16.msra.mxu0 0
    %1020 = vmatprep.subr.bf16.mxu0 0
    %1021 = vmatpush1.bf16.msra.mxu0 0
    %1022 = vmatprep.subr.bf16.mxu0 0
    %1023 = vmatpush1.bf16.msra.mxu0 0
    %1024 = vmatprep.subr.bf16.mxu0 0
    %1025 = vmatpush1.bf16.msra.mxu0 0
    %1026 = vmatprep.subr.bf16.mxu0 0
    %1027 = vmatpush1.bf16.msra.mxu0 0
    %1028 = vmatprep.subr.bf16.mxu0 0
    %1029 = vmatpush1.bf16.msra.mxu0 0
    %1030 = vmatprep.subr.bf16.mxu0 0
    %1031 = vmatpush1.bf16.msra.mxu0 0
    %1032 = vmatprep.subr.bf16.mxu0 0
    %1033 = vmatpush1.bf16.msra.mxu0 0
    %1034 = vmatprep.subr.bf16.mxu0 0
    %1035 = vmatpush1.bf16.msra.mxu0 0
    %1036 = vmatprep.subr.bf16.mxu0 0
    %1037 = vmatpush1.bf16.msra.mxu0 0
    %1038 = vmatprep.subr.bf16.mxu0 0
    %1039 = vmatpush1.bf16.msra.mxu0 0
    %1040 = vmatprep.mubr.bf16.mxu0 0
    %1041 = vmatmul.mubr.bf16.gmra.mrb[0].mxu0 %v1006
    %v1042 = vpop.f32.mrb[0].mxu0
    %v1043 = vadd.f32 0.0, %v1042
    %v1044 = vpop.f32.mrb[0].mxu0
    %v1045 = vpop.f32.mrb[0].mxu0
    %v1046 = vpop.f32.mrb[0].mxu0
    %1047 = vdwg.mxu0
    %v1048 = vadd.f32 %v997, %v1043
    %v1049 = vxor.u32 %v1048, 2147483648
    %v1050 = vmul.f32 %v1049, 1.442695
    %v1051 = vpow.pop %v1050
    %v1052 = vadd.f32 %v1051, 1.0
    %v1053 = vrcp.pop %v1052
    %v1054 = vmul.f32 1.0, %v1053
    %v1055 = vadd.f32 %v1043, %v184
    %1057 = vrot.lane.b32.xlu0 %v1055, 64
    %v1058 = vpop.permute.xlu0 %1057
    %v1060 = vmul.f32 %v1054, %v1058
    %1062 = vrot.lane.b32.xlu0 %v1060, 64
    %v1063 = vpop.permute.xlu0 %1062
    %v1065 = vadd.f32 %v997, %v1063
    %v1066 = vtanh.pop %v1065
    %v1067 = vsub.f32 1.0, %v1054
    %1069 = vrot.lane.b32.xlu0 %v1066, 96
    %v1070 = vpop.permute.xlu0 %1069
    %v1072 = vmul.f32 %v1067, %v1070
    %v1073 = vmul.f32 %v1054, %v950
    %v1074 = vadd.f32 %v1072, %v1073
    %1076 = vrot.lane.b32.xlu0 %v1074, 96
    %v1077 = vpop.permute.xlu0 %1076
    %1079 = vst.msk [vmem:[#allocation2 + $0x1c] sm:$0xf] %vm210, %v1077
    %v1080 = vld [vmem:[#allocation2] sm:$0xff]
    %v1081 = vld [vmem:[#allocation2 + $0x8] sm:$0xff]
    %v1082 = vld [vmem:[#allocation2 + $0x10] sm:$0xff]
    %v1083 = vld [vmem:[#allocation2 + $0x18] sm:$0xff]
    %v1084 = vpack.c.bf16 %v1081, %v1080
    %v1085 = vpack.c.bf16 %v1083, %v1082
    %1086 = vxpose.xlu0.b32.start [1/16] %v1080, 128
    %1087 = vxpose.xlu0.b32.cont [2/16] %v1081, 128
    %1088 = vxpose.xlu0.b32.cont [3/16] %v1082, 128
    %1089 = vxpose.xlu0.b32.cont [4/16] %v1083, 128
    %1090 = vxpose.xlu0.b32.cont [5/16] 0.0, 128
    %1091 = vxpose.xlu0.b32.cont [6/16] 0.0, 128
    %1092 = vxpose.xlu0.b32.cont [7/16] 0.0, 128
    %1093 = vxpose.xlu0.b32.cont [8/16] 0.0, 128
    %1094 = vxpose.xlu0.b32.cont [9/16] 0.0, 128
    %1095 = vxpose.xlu0.b32.cont [10/16] 0.0, 128
    %1096 = vxpose.xlu0.b32.cont [11/16] 0.0, 128
    %1097 = vxpose.xlu0.b32.cont [12/16] 0.0, 128
    %1098 = vxpose.xlu0.b32.cont [13/16] 0.0, 128
    %1099 = vxpose.xlu0.b32.cont [14/16] 0.0, 128
    %1100 = vxpose.xlu0.b32.cont [15/16] 0.0, 128
    %1101 = vxpose.xlu0.b32.end [16/16] 0.0, 128
    %v1102 = vpop.trf.xlu0
    %v1103 = vpop.trf.xlu0
    %v1104 = vpop.trf.xlu0
    %v1105 = vpop.trf.xlu0
    %v1106 = vpop.trf.xlu0
    %v1107 = vpop.trf.xlu0
    %v1108 = vpop.trf.xlu0
    %v1109 = vpop.trf.xlu0
    %v1110 = vpop.trf.xlu0
    %v1111 = vpop.trf.xlu0
    %v1112 = vpop.trf.xlu0
    %v1113 = vpop.trf.xlu0
    %v1114 = vpop.trf.xlu0
    %v1115 = vpop.trf.xlu0
    %v1116 = vpop.trf.xlu0
    %v1117 = vpop.trf.xlu0
    %v1118 = vpack.c.bf16 %v1103, %v1102
    %v1119 = vpack.c.bf16 %v1105, %v1104
    %v1120 = vlaneseq
    %v1121 = vand.u32 %v1120, 127
    %vm1122 = vcmp.lt.s32.totalorder %v1121, 0
    %v1123 = vsub.s32 0, %v1121
    %v1124 = vsel %vm1122, %v1123, %v1121
    %v1125 = vshrl.u32 %v1124, 2
    %v1126 = vand.u32 %v1124, 3
    %v1127 = vsub.s32 0, %v1126
    %v1128 = vsel %vm1122, %v1127, %v1126
    %vm1129 = vcmp.ne.s32.totalorder %v1128, 0
    %vm1130 = vcmp.lt.s32.totalorder %v1128, 0
    %vm1131 = vmand %vm1130, %vm1129
    %v1132 = vadd.s32 %v1128, 4
    %v1133 = vsel %vm1131, %v1132, %v1128
    %v1134 = vlaneseq
    %v1135 = vshrl.u32 %v1134, 7
    %vm1136 = vcmp.eq.s32.totalorder %v1133, %v1135
    %vm1137 = vcmask 191488
    %1138 = vst.msk [vmem:[#allocation3] sm:$0xf] %vm1137, 0.0
    %v1139 = vld [vmem:[%s1] sm:$0x3]
    %v1140 = vpack.c.bf16 %v1074, %v1074
    %1142 = vrot.lane.b32.xlu0 %v1140, 96
    %v1143 = vpop.permute.xlu0 %1142
    %v1145 = vsel %vm131, %v1143, 0
    %1147 = vmatprep.subr.bf16.mxu0 0
    %1148 = vmatpush1.bf16.msra.mxu0 %v1118
    %1149 = vmatprep.subr.bf16.mxu0 0
    %1150 = vmatpush1.bf16.msra.mxu0 %v1119
    %1151 = vmatprep.subr.bf16.mxu0 0
    %1152 = vmatpush1.bf16.msra.mxu0 0
    %1153 = vmatprep.subr.bf16.mxu0 0
    %1154 = vmatpush1.bf16.msra.mxu0 0
    %1155 = vmatprep.subr.bf16.mxu0 0
    %1156 = vmatpush1.bf16.msra.mxu0 0
    %1157 = vmatprep.subr.bf16.mxu0 0
    %1158 = vmatpush1.bf16.msra.mxu0 0
    %1159 = vmatprep.subr.bf16.mxu0 0
    %1160 = vmatpush1.bf16.msra.mxu0 0
    %1161 = vmatprep.subr.bf16.mxu0 0
    %1162 = vmatpush1.bf16.msra.mxu0 0
    %1163 = vmatprep.subr.bf16.mxu0 0
    %1164 = vmatpush1.bf16.msra.mxu0 0
    %1165 = vmatprep.subr.bf16.mxu0 0
    %1166 = vmatpush1.bf16.msra.mxu0 0
    %1167 = vmatprep.subr.bf16.mxu0 0
    %1168 = vmatpush1.bf16.msra.mxu0 0
    %1169 = vmatprep.subr.bf16.mxu0 0
    %1170 = vmatpush1.bf16.msra.mxu0 0
    %1171 = vmatprep.subr.bf16.mxu0 0
    %1172 = vmatpush1.bf16.msra.mxu0 0
    %1173 = vmatprep.subr.bf16.mxu0 0
    %1174 = vmatpush1.bf16.msra.mxu0 0
    %1175 = vmatprep.subr.bf16.mxu0 0
    %1176 = vmatpush1.bf16.msra.mxu0 0
    %1177 = vmatprep.subr.bf16.mxu0 0
    %1178 = vmatpush1.bf16.msra.mxu0 0
    %1179 = vmatprep.mubr.bf16.mxu0 0
    %1180 = vmatmul.mubr.bf16.gmra.mrb[0].mxu0 %v1145
    %v1181 = vpop.f32.mrb[0].mxu0
    %v1182 = vadd.f32 0.0, %v1181
    %v1183 = vpop.f32.mrb[0].mxu0
    %v1184 = vpop.f32.mrb[0].mxu0
    %v1185 = vpop.f32.mrb[0].mxu0
    %1186 = vdwg.mxu0
    %v1187 = vsel %vm1136, %v1182, -1e+30
    %v1188 = vsel %vm210, %v1187, -inf
    %1189 = vmax.xlane.f32.xlu0 %v1188
    %v1190 = vpop.xlane.xlu0 %1189
    %v1191 = vsub.f32 %v1187, %v1190
    %v1192 = vmul.f32 %v1191, 1.442695
    %v1193 = vpow.pop %v1192
    %v1194 = vsel %vm210, %v1193, 0.0
    %1195 = vadd.xlane.f32.xlu0 %v1194
    %v1196 = vpop.xlane.xlu0 %1195
    %v1197 = vrcp.pop %v1196
    %v1198 = vmul.f32 %v1193, %v1197
    %v1199 = vpack.c.bf16 %v1198, %v1198
    %v1201 = vsel %vm131, %v1199, 0
    %1203 = vmatprep.subr.bf16.mxu0 0
    %1204 = vmatpush1.bf16.msra.mxu0 %v1084
    %1205 = vmatprep.subr.bf16.mxu0 0
    %1206 = vmatpush1.bf16.msra.mxu0 %v1085
    %1207 = vmatprep.subr.bf16.mxu0 0
    %1208 = vmatpush1.bf16.msra.mxu0 0
    %1209 = vmatprep.subr.bf16.mxu0 0
    %1210 = vmatpush1.bf16.msra.mxu0 0
    %1211 = vmatprep.subr.bf16.mxu0 0
    %1212 = vmatpush1.bf16.msra.mxu0 0
    %1213 = vmatprep.subr.bf16.mxu0 0
    %1214 = vmatpush1.bf16.msra.mxu0 0
    %1215 = vmatprep.subr.bf16.mxu0 0
    %1216 = vmatpush1.bf16.msra.mxu0 0
    %1217 = vmatprep.subr.bf16.mxu0 0
    %1218 = vmatpush1.bf16.msra.mxu0 0
    %1219 = vmatprep.subr.bf16.mxu0 0
    %1220 = vmatpush1.bf16.msra.mxu0 0
    %1221 = vmatprep.subr.bf16.mxu0 0
    %1222 = vmatpush1.bf16.msra.mxu0 0
    %1223 = vmatprep.subr.bf16.mxu0 0
    %1224 = vmatpush1.bf16.msra.mxu0 0
    %1225 = vmatprep.subr.bf16.mxu0 0
    %1226 = vmatpush1.bf16.msra.mxu0 0
    %1227 = vmatprep.subr.bf16.mxu0 0
    %1228 = vmatpush1.bf16.msra.mxu0 0
    %1229 = vmatprep.subr.bf16.mxu0 0
    %1230 = vmatpush1.bf16.msra.mxu0 0
    %1231 = vmatprep.subr.bf16.mxu0 0
    %1232 = vmatpush1.bf16.msra.mxu0 0
    %1233 = vmatprep.subr.bf16.mxu0 0
    %1234 = vmatpush1.bf16.msra.mxu0 0
    %1235 = vmatprep.mubr.bf16.mxu0 0
    %1236 = vmatmul.mubr.bf16.gmra.mrb[0].mxu0 %v1201
    %v1237 = vpop.f32.mrb[0].mxu0
    %v1238 = vadd.f32 0.0, %v1237
    %v1239 = vpop.f32.mrb[0].mxu0
    %v1240 = vpop.f32.mrb[0].mxu0
    %v1241 = vpop.f32.mrb[0].mxu0
    %1242 = vdwg.mxu0
    %v1243 = vpack.c.bf16 %v1238, %v1238
    %1245 = vrot.lane.b32.xlu0 %v1243, 24
    %v1246 = vpop.permute.xlu0 %1245
    %vm1247 = vcmask 195584
    %v1250 = vsel %vm1247, %v1139, %v1246
    %v1258 = vunpack.c.l.b16 %v32
    %v1259 = vunpack.c.l.b16 %v33
    %v1260 = vunpack.c.l.b16 %v34
    %v1261 = vunpack.c.l.b16 %v35
    %v1262 = vunpack.c.l.b16 %v36
    %v1263 = vunpack.c.l.b16 %v37
    %v1264 = vunpack.c.l.b16 %v38
    %v1265 = vpack.c.b16 %v1259, %v1258
    %v1266 = vpack.c.b16 %v1261, %v1260
    %v1267 = vpack.c.b16 %v1263, %v1262
    %v1268 = vpack.c.b16 %v1264, %v1264
    %vm1272 = vcmask 457728
    %v1273 = vsel %vm1272, %v1250, 0
    %vm1275 = vcmask 1043456
    %v1277 = vsel %vm1275, %v1268, 0
    %1279 = vmatprep.subr.bf16.mxu0 0
    %1280 = vmatpush1.bf16.msra.mxu0 %v1265
    %1281 = vmatprep.subr.bf16.mxu0 0
    %1282 = vmatpush1.bf16.msra.mxu0 %v1266
    %1283 = vmatprep.subr.bf16.mxu0 0
    %1284 = vmatpush1.bf16.msra.mxu0 %v1267
    %1285 = vmatprep.subr.bf16.mxu0 0
    %1286 = vmatpush1.bf16.msra.mxu0 %v1277
    %1287 = vmatprep.subr.bf16.mxu0 0
    %1288 = vmatpush1.bf16.msra.mxu0 0
    %1289 = vmatprep.subr.bf16.mxu0 0
    %1290 = vmatpush1.bf16.msra.mxu0 0
    %1291 = vmatprep.subr.bf16.mxu0 0
    %1292 = vmatpush1.bf16.msra.mxu0 0
    %1293 = vmatprep.subr.bf16.mxu0 0
    %1294 = vmatpush1.bf16.msra.mxu0 0
    %1295 = vmatprep.subr.bf16.mxu0 0
    %1296 = vmatpush1.bf16.msra.mxu0 0
    %1297 = vmatprep.subr.bf16.mxu0 0
    %1298 = vmatpush1.bf16.msra.mxu0 0
    %1299 = vmatprep.subr.bf16.mxu0 0
    %1300 = vmatpush1.bf16.msra.mxu0 0
    %1301 = vmatprep.subr.bf16.mxu0 0
    %1302 = vmatpush1.bf16.msra.mxu0 0
    %1303 = vmatprep.subr.bf16.mxu0 0
    %1304 = vmatpush1.bf16.msra.mxu0 0
    %1305 = vmatprep.subr.bf16.mxu0 0
    %1306 = vmatpush1.bf16.msra.mxu0 0
    %1307 = vmatprep.subr.bf16.mxu0 0
    %1308 = vmatpush1.bf16.msra.mxu0 0
    %1309 = vmatprep.subr.bf16.mxu0 0
    %1310 = vmatpush1.bf16.msra.mxu0 0
    %1311 = vmatprep.mubr.bf16.mxu0 0
    %1312 = vmatmul.mubr.bf16.gmra.mrb[0].mxu0 %v1273
    %v1313 = vpop.f32.mrb[0].mxu0
    %v1314 = vadd.f32 %v59, %v1313
    %v1315 = vpop.f32.mrb[0].mxu0
    %v1316 = vpop.f32.mrb[0].mxu0
    %v1317 = vpop.f32.mrb[0].mxu0
    %1318 = vdwg.mxu0
    %v1323 = vunpack.c.l.b16 %v28
    %v1324 = vunpack.c.l.b16 %v29
    %v1325 = vunpack.c.l.b16 %v30
    %v1326 = vunpack.c.l.b16 %v31
    %v1327 = vpack.c.b16 %v1324, %v1323
    %v1328 = vpack.c.b16 %v1326, %v1325
    %1331 = vmatprep.subr.bf16.mxu0 0
    %1332 = vmatpush1.bf16.msra.mxu0 %v1327
    %1333 = vmatprep.subr.bf16.mxu0 0
    %1334 = vmatpush1.bf16.msra.mxu0 %v1328
    %1335 = vmatprep.subr.bf16.mxu0 0
    %1336 = vmatpush1.bf16.msra.mxu0 0
    %1337 = vmatprep.subr.bf16.mxu0 0
    %1338 = vmatpush1.bf16.msra.mxu0 0
    %1339 = vmatprep.subr.bf16.mxu0 0
    %1340 = vmatpush1.bf16.msra.mxu0 0
    %1341 = vmatprep.subr.bf16.mxu0 0
    %1342 = vmatpush1.bf16.msra.mxu0 0
    %1343 = vmatprep.subr.bf16.mxu0 0
    %1344 = vmatpush1.bf16.msra.mxu0 0
    %1345 = vmatprep.subr.bf16.mxu0 0
    %1346 = vmatpush1.bf16.msra.mxu0 0
    %1347 = vmatprep.subr.bf16.mxu0 0
    %1348 = vmatpush1.bf16.msra.mxu0 0
    %1349 = vmatprep.subr.bf16.mxu0 0
    %1350 = vmatpush1.bf16.msra.mxu0 0
    %1351 = vmatprep.subr.bf16.mxu0 0
    %1352 = vmatpush1.bf16.msra.mxu0 0
    %1353 = vmatprep.subr.bf16.mxu0 0
    %1354 = vmatpush1.bf16.msra.mxu0 0
    %1355 = vmatprep.subr.bf16.mxu0 0
    %1356 = vmatpush1.bf16.msra.mxu0 0
    %1357 = vmatprep.subr.bf16.mxu0 0
    %1358 = vmatpush1.bf16.msra.mxu0 0
    %1359 = vmatprep.subr.bf16.mxu0 0
    %1360 = vmatpush1.bf16.msra.mxu0 0
    %1361 = vmatprep.subr.bf16.mxu0 0
    %1362 = vmatpush1.bf16.msra.mxu0 0
    %1363 = vmatprep.mubr.bf16.mxu0 0
    %1364 = vmatmul.mubr.bf16.gmra.mrb[0].mxu0 %v1145
    %v1365 = vpop.f32.mrb[0].mxu0
    %v1366 = vadd.f32 0.0, %v1365
    %v1367 = vpop.f32.mrb[0].mxu0
    %v1368 = vpop.f32.mrb[0].mxu0
    %v1369 = vpop.f32.mrb[0].mxu0
    %1370 = vdwg.mxu0
    %v1371 = vadd.f32 %v1314, %v1366
    %v1372 = vxor.u32 %v1371, 2147483648
    %v1373 = vmul.f32 %v1372, 1.442695
    %v1374 = vpow.pop %v1373
    %v1375 = vadd.f32 %v1374, 1.0
    %v1376 = vrcp.pop %v1375
    %v1377 = vmul.f32 1.0, %v1376
    %1379 = vrot.lane.b32.xlu0 %v63, 64
    %v1380 = vpop.permute.xlu0 %1379
    %v1382 = vadd.f32 %v1366, %v1380
    %1384 = vrot.lane.b32.xlu0 %v1382, 64
    %v1385 = vpop.permute.xlu0 %1384
    %v1387 = vmul.f32 %v1377, %v1385
    %1389 = vrot.lane.b32.xlu0 %v1387, 64
    %v1390 = vpop.permute.xlu0 %1389
    %v1392 = vadd.f32 %v1314, %v1390
    %v1393 = vtanh.pop %v1392
    %v1394 = vsub.f32 1.0, %v1377
    %1396 = vrot.lane.b32.xlu0 %v1393, 96
    %v1397 = vpop.permute.xlu0 %1396
    %v1399 = vmul.f32 %v1394, %v1397
    %v1400 = vmul.f32 %v1377, %v1074
    %v1401 = vadd.f32 %v1399, %v1400
    %v1402 = vpack.c.bf16 %v1401, %v1401
    %1404 = vrot.lane.b32.xlu0 %v1402, 96
    %v1405 = vpop.permute.xlu0 %1404
    %1406 = vrot.lane.b32.xlu0 %v1243, 32
    %v1407 = vpop.permute.xlu0 %1406
    %v1410 = vsel %vm131, %v1405, %v1407
    %v1419 = vunpack.c.l.b16 %v39
    %v1420 = vunpack.c.l.b16 %v40
    %v1421 = vunpack.c.l.b16 %v41
    %v1422 = vunpack.c.l.b16 %v42
    %v1423 = vunpack.c.l.b16 %v43
    %v1424 = vunpack.c.l.b16 %v44
    %v1425 = vunpack.c.l.b16 %v45
    %v1426 = vunpack.c.l.b16 %v46
    %v1427 = vpack.c.b16 %v1420, %v1419
    %v1428 = vpack.c.b16 %v1422, %v1421
    %v1429 = vpack.c.b16 %v1424, %v1423
    %v1430 = vpack.c.b16 %v1426, %v1425
    %vm1435 = vcmask 523264
    %v1436 = vsel %vm1435, %v1410, 0
    %1438 = vmatprep.subr.bf16.mxu0 0
    %1439 = vmatpush1.bf16.msra.mxu0 %v1427
    %1440 = vmatprep.subr.bf16.mxu0 0
    %1441 = vmatpush1.bf16.msra.mxu0 %v1428
    %1442 = vmatprep.subr.bf16.mxu0 0
    %1443 = vmatpush1.bf16.msra.mxu0 %v1429
    %1444 = vmatprep.subr.bf16.mxu0 0
    %1445 = vmatpush1.bf16.msra.mxu0 %v1430
    %1446 = vmatprep.subr.bf16.mxu0 0
    %1447 = vmatpush1.bf16.msra.mxu0 0
    %1448 = vmatprep.subr.bf16.mxu0 0
    %1449 = vmatpush1.bf16.msra.mxu0 0
    %1450 = vmatprep.subr.bf16.mxu0 0
    %1451 = vmatpush1.bf16.msra.mxu0 0
    %1452 = vmatprep.subr.bf16.mxu0 0
    %1453 = vmatpush1.bf16.msra.mxu0 0
    %1454 = vmatprep.subr.bf16.mxu0 0
    %1455 = vmatpush1.bf16.msra.mxu0 0
    %1456 = vmatprep.subr.bf16.mxu0 0
    %1457 = vmatpush1.bf16.msra.mxu0 0
    %1458 = vmatprep.subr.bf16.mxu0 0
    %1459 = vmatpush1.bf16.msra.mxu0 0
    %1460 = vmatprep.subr.bf16.mxu0 0
    %1461 = vmatpush1.bf16.msra.mxu0 0
    %1462 = vmatprep.subr.bf16.mxu0 0
    %1463 = vmatpush1.bf16.msra.mxu0 0
    %1464 = vmatprep.subr.bf16.mxu0 0
    %1465 = vmatpush1.bf16.msra.mxu0 0
    %1466 = vmatprep.subr.bf16.mxu0 0
    %1467 = vmatpush1.bf16.msra.mxu0 0
    %1468 = vmatprep.subr.bf16.mxu0 0
    %1469 = vmatpush1.bf16.msra.mxu0 0
    %1470 = vmatprep.mubr.bf16.mxu0 0
    %1471 = vmatmul.mubr.bf16.gmra.mrb[0].mxu0 %v1436
    %v1472 = vpop.f32.mrb[0].mxu0
    %v1473 = vadd.f32 %v67, %v1472
    %v1474 = vpop.f32.mrb[0].mxu0
    %v1475 = vpop.f32.mrb[0].mxu0
    %v1476 = vpop.f32.mrb[0].mxu0
    %1477 = vdwg.mxu0
    %v1478 = vsel %vm1137, %v1473, -inf
    %1479 = vmax.xlane.f32.xlu0 %v1478
    %v1480 = vpop.xlane.xlu0 %1479
    %vm1481 = vcmp.eq.f32.partialorder %v1473, %v1480
    %v1482 = vsel %vm1481, %v1121, 24
    %v1483 = vsel %vm1137, %v1482, 2147483647
    %v1484 = vand.u32 %v1483, 65535
    %v1485 = vshra.s32 %v1483, 16
    %v1486 = vcvt.s32.f32 %v1484
    %v1487 = vcvt.s32.f32 %v1485
    %1488 = vmin.xlane.f32.xlu0 %v1487
    %v1489 = vpop.xlane.xlu0 %1488
    %vm1490 = vcmp.eq.f32.partialorder %v1487, %v1489
    %v1491 = vsel %vm1490, %v1486, inf
    %1492 = vmin.xlane.f32.xlu0 %v1491
    %v1493 = vpop.xlane.xlu0 %1492
    %v1494 = vcvt.f32.s32 %v1493
    %v1495 = vcvt.f32.s32 %v1489
    %v1496 = vshll.u32 %v1495, 16
    %v1497 = vadd.s32 %v1496, %v1494
    %vm1498 = vcmp.eq.s32.totalorder %v1121, %v1497
    %v1499 = vsel %vm1498, 1, 0
    %v1500 = vcvt.s32.f32 %v1499
    %v1501 = vpack.c.bf16 %v1500, %v1500
    %v1502 = vsub.f32 %v1473, %v1480
    %v1503 = vmul.f32 %v1502, 1.442695
    %v1504 = vpow.pop %v1503
    %v1505 = vsel %vm1137, %v1504, 0.0
    %1506 = vadd.xlane.f32.xlu0 %v1505
    %v1507 = vpop.xlane.xlu0 %1506
    %v1508 = vlog2.pop %v1507
    %v1509 = vmul.f32 %v1508, 0.6931472
    %v1510 = vadd.f32 %v1480, %v1509
    %v1511 = vsub.f32 %v1473, %v1510
    %s1512 = scalar_lea.vmem [#allocation3], 4
    %1513 = vst.msk [vmem:[%s1512] sm:$0xf] %vm1137, %v1511
    %v1514 = vsel %vm131, %v1405, 0
    %1516 = vmatprep.subr.bf16.mxu0 0
    %1517 = vmatpush1.bf16.msra.mxu0 %v1118
    %1518 = vmatprep.subr.bf16.mxu0 0
    %1519 = vmatpush1.bf16.msra.mxu0 %v1119
    %1520 = vmatprep.subr.bf16.mxu0 0
    %1521 = vmatpush1.bf16.msra.mxu0 0
    %1522 = vmatprep.subr.bf16.mxu0 0
    %1523 = vmatpush1.bf16.msra.mxu0 0
    %1524 = vmatprep.subr.bf16.mxu0 0
    %1525 = vmatpush1.bf16.msra.mxu0 0
    %1526 = vmatprep.subr.bf16.mxu0 0
    %1527 = vmatpush1.bf16.msra.mxu0 0
    %1528 = vmatprep.subr.bf16.mxu0 0
    %1529 = vmatpush1.bf16.msra.mxu0 0
    %1530 = vmatprep.subr.bf16.mxu0 0
    %1531 = vmatpush1.bf16.msra.mxu0 0
    %1532 = vmatprep.subr.bf16.mxu0 0
    %1533 = vmatpush1.bf16.msra.mxu0 0
    %1534 = vmatprep.subr.bf16.mxu0 0
    %1535 = vmatpush1.bf16.msra.mxu0 0
    %1536 = vmatprep.subr.bf16.mxu0 0
    %1537 = vmatpush1.bf16.msra.mxu0 0
    %1538 = vmatprep.subr.bf16.mxu0 0
    %1539 = vmatpush1.bf16.msra.mxu0 0
    %1540 = vmatprep.subr.bf16.mxu0 0
    %1541 = vmatpush1.bf16.msra.mxu0 0
    %1542 = vmatprep.subr.bf16.mxu0 0
    %1543 = vmatpush1.bf16.msra.mxu0 0
    %1544 = vmatprep.subr.bf16.mxu0 0
    %1545 = vmatpush1.bf16.msra.mxu0 0
    %1546 = vmatprep.subr.bf16.mxu0 0
    %1547 = vmatpush1.bf16.msra.mxu0 0
    %1548 = vmatprep.mubr.bf16.mxu0 0
    %1549 = vmatmul.mubr.bf16.gmra.mrb[0].mxu0 %v1514
    %v1550 = vpop.f32.mrb[0].mxu0
    %v1551 = vadd.f32 0.0, %v1550
    %v1552 = vpop.f32.mrb[0].mxu0
    %v1553 = vpop.f32.mrb[0].mxu0
    %v1554 = vpop.f32.mrb[0].mxu0
    %1555 = vdwg.mxu0
    %v1556 = vsel %vm1136, %v1551, -1e+30
    %v1557 = vsel %vm210, %v1556, -inf
    %1558 = vmax.xlane.f32.xlu0 %v1557
    %v1559 = vpop.xlane.xlu0 %1558
    %v1560 = vsub.f32 %v1556, %v1559
    %v1561 = vmul.f32 %v1560, 1.442695
    %v1562 = vpow.pop %v1561
    %v1563 = vsel %vm210, %v1562, 0.0
    %1564 = vadd.xlane.f32.xlu0 %v1563
    %v1565 = vpop.xlane.xlu0 %1564
    %v1566 = vrcp.pop %v1565
    %v1567 = vmul.f32 %v1562, %v1566
    %v1568 = vpack.c.bf16 %v1567, %v1567
    %v1570 = vsel %vm131, %v1568, 0
    %1572 = vmatprep.subr.bf16.mxu0 0
    %1573 = vmatpush1.bf16.msra.mxu0 %v1084
    %1574 = vmatprep.subr.bf16.mxu0 0
    %1575 = vmatpush1.bf16.msra.mxu0 %v1085
    %1576 = vmatprep.subr.bf16.mxu0 0
    %1577 = vmatpush1.bf16.msra.mxu0 0
    %1578 = vmatprep.subr.bf16.mxu0 0
    %1579 = vmatpush1.bf16.msra.mxu0 0
    %1580 = vmatprep.subr.bf16.mxu0 0
    %1581 = vmatpush1.bf16.msra.mxu0 0
    %1582 = vmatprep.subr.bf16.mxu0 0
    %1583 = vmatpush1.bf16.msra.mxu0 0
    %1584 = vmatprep.subr.bf16.mxu0 0
    %1585 = vmatpush1.bf16.msra.mxu0 0
    %1586 = vmatprep.subr.bf16.mxu0 0
    %1587 = vmatpush1.bf16.msra.mxu0 0
    %1588 = vmatprep.subr.bf16.mxu0 0
    %1589 = vmatpush1.bf16.msra.mxu0 0
    %1590 = vmatprep.subr.bf16.mxu0 0
    %1591 = vmatpush1.bf16.msra.mxu0 0
    %1592 = vmatprep.subr.bf16.mxu0 0
    %1593 = vmatpush1.bf16.msra.mxu0 0
    %1594 = vmatprep.subr.bf16.mxu0 0
    %1595 = vmatpush1.bf16.msra.mxu0 0
    %1596 = vmatprep.subr.bf16.mxu0 0
    %1597 = vmatpush1.bf16.msra.mxu0 0
    %1598 = vmatprep.subr.bf16.mxu0 0
    %1599 = vmatpush1.bf16.msra.mxu0 0
    %1600 = vmatprep.subr.bf16.mxu0 0
    %1601 = vmatpush1.bf16.msra.mxu0 0
    %1602 = vmatprep.subr.bf16.mxu0 0
    %1603 = vmatpush1.bf16.msra.mxu0 0
    %1604 = vmatprep.mubr.bf16.mxu0 0
    %1605 = vmatmul.mubr.bf16.gmra.mrb[0].mxu0 %v1570
    %v1606 = vpop.f32.mrb[0].mxu0
    %v1607 = vadd.f32 0.0, %v1606
    %v1608 = vpop.f32.mrb[0].mxu0
    %v1609 = vpop.f32.mrb[0].mxu0
    %v1610 = vpop.f32.mrb[0].mxu0
    %1611 = vdwg.mxu0
    %v1612 = vpack.c.bf16 %v1607, %v1607
    %1614 = vrot.lane.b32.xlu0 %v1612, 24
    %v1615 = vpop.permute.xlu0 %1614
    %v1618 = vsel %vm1247, %v1501, %v1615
    %v1619 = vsel %vm1272, %v1618, 0
    %1621 = vmatprep.subr.bf16.mxu0 0
    %1622 = vmatpush1.bf16.msra.mxu0 %v1265
    %1623 = vmatprep.subr.bf16.mxu0 0
    %1624 = vmatpush1.bf16.msra.mxu0 %v1266
    %1625 = vmatprep.subr.bf16.mxu0 0
    %1626 = vmatpush1.bf16.msra.mxu0 %v1267
    %1627 = vmatprep.subr.bf16.mxu0 0
    %1628 = vmatpush1.bf16.msra.mxu0 %v1277
    %1629 = vmatprep.subr.bf16.mxu0 0
    %1630 = vmatpush1.bf16.msra.mxu0 0
    %1631 = vmatprep.subr.bf16.mxu0 0
    %1632 = vmatpush1.bf16.msra.mxu0 0
    %1633 = vmatprep.subr.bf16.mxu0 0
    %1634 = vmatpush1.bf16.msra.mxu0 0
    %1635 = vmatprep.subr.bf16.mxu0 0
    %1636 = vmatpush1.bf16.msra.mxu0 0
    %1637 = vmatprep.subr.bf16.mxu0 0
    %1638 = vmatpush1.bf16.msra.mxu0 0
    %1639 = vmatprep.subr.bf16.mxu0 0
    %1640 = vmatpush1.bf16.msra.mxu0 0
    %1641 = vmatprep.subr.bf16.mxu0 0
    %1642 = vmatpush1.bf16.msra.mxu0 0
    %1643 = vmatprep.subr.bf16.mxu0 0
    %1644 = vmatpush1.bf16.msra.mxu0 0
    %1645 = vmatprep.subr.bf16.mxu0 0
    %1646 = vmatpush1.bf16.msra.mxu0 0
    %1647 = vmatprep.subr.bf16.mxu0 0
    %1648 = vmatpush1.bf16.msra.mxu0 0
    %1649 = vmatprep.subr.bf16.mxu0 0
    %1650 = vmatpush1.bf16.msra.mxu0 0
    %1651 = vmatprep.subr.bf16.mxu0 0
    %1652 = vmatpush1.bf16.msra.mxu0 0
    %1653 = vmatprep.mubr.bf16.mxu0 0
    %1654 = vmatmul.mubr.bf16.gmra.mrb[0].mxu0 %v1619
    %v1655 = vpop.f32.mrb[0].mxu0
    %v1656 = vadd.f32 %v59, %v1655
    %v1657 = vpop.f32.mrb[0].mxu0
    %v1658 = vpop.f32.mrb[0].mxu0
    %v1659 = vpop.f32.mrb[0].mxu0
    %1660 = vdwg.mxu0
    %1661 = vmatprep.subr.bf16.mxu0 0
    %1662 = vmatpush1.bf16.msra.mxu0 %v1327
    %1663 = vmatprep.subr.bf16.mxu0 0
    %1664 = vmatpush1.bf16.msra.mxu0 %v1328
    %1665 = vmatprep.subr.bf16.mxu0 0
    %1666 = vmatpush1.bf16.msra.mxu0 0
    %1667 = vmatprep.subr.bf16.mxu0 0
    %1668 = vmatpush1.bf16.msra.mxu0 0
    %1669 = vmatprep.subr.bf16.mxu0 0
    %1670 = vmatpush1.bf16.msra.mxu0 0
    %1671 = vmatprep.subr.bf16.mxu0 0
    %1672 = vmatpush1.bf16.msra.mxu0 0
    %1673 = vmatprep.subr.bf16.mxu0 0
    %1674 = vmatpush1.bf16.msra.mxu0 0
    %1675 = vmatprep.subr.bf16.mxu0 0
    %1676 = vmatpush1.bf16.msra.mxu0 0
    %1677 = vmatprep.subr.bf16.mxu0 0
    %1678 = vmatpush1.bf16.msra.mxu0 0
    %1679 = vmatprep.subr.bf16.mxu0 0
    %1680 = vmatpush1.bf16.msra.mxu0 0
    %1681 = vmatprep.subr.bf16.mxu0 0
    %1682 = vmatpush1.bf16.msra.mxu0 0
    %1683 = vmatprep.subr.bf16.mxu0 0
    %1684 = vmatpush1.bf16.msra.mxu0 0
    %1685 = vmatprep.subr.bf16.mxu0 0
    %1686 = vmatpush1.bf16.msra.mxu0 0
    %1687 = vmatprep.subr.bf16.mxu0 0
    %1688 = vmatpush1.bf16.msra.mxu0 0
    %1689 = vmatprep.subr.bf16.mxu0 0
    %1690 = vmatpush1.bf16.msra.mxu0 0
    %1691 = vmatprep.subr.bf16.mxu0 0
    %1692 = vmatpush1.bf16.msra.mxu0 0
    %1693 = vmatprep.mubr.bf16.mxu0 0
    %1694 = vmatmul.mubr.bf16.gmra.mrb[0].mxu0 %v1514
    %v1695 = vpop.f32.mrb[0].mxu0
    %v1696 = vadd.f32 0.0, %v1695
    %v1697 = vpop.f32.mrb[0].mxu0
    %v1698 = vpop.f32.mrb[0].mxu0
    %v1699 = vpop.f32.mrb[0].mxu0
    %1700 = vdwg.mxu0
    %v1701 = vadd.f32 %v1656, %v1696
    %v1702 = vxor.u32 %v1701, 2147483648
    %v1703 = vmul.f32 %v1702, 1.442695
    %v1704 = vpow.pop %v1703
    %v1705 = vadd.f32 %v1704, 1.0
    %v1706 = vrcp.pop %v1705
    %v1707 = vmul.f32 1.0, %v1706
    %v1708 = vadd.f32 %v1696, %v1380
    %1710 = vrot.lane.b32.xlu0 %v1708, 64
    %v1711 = vpop.permute.xlu0 %1710
    %v1713 = vmul.f32 %v1707, %v1711
    %1715 = vrot.lane.b32.xlu0 %v1713, 64
    %v1716 = vpop.permute.xlu0 %1715
    %v1718 = vadd.f32 %v1656, %v1716
    %v1719 = vtanh.pop %v1718
    %v1720 = vsub.f32 1.0, %v1707
    %1722 = vrot.lane.b32.xlu0 %v1719, 96
    %v1723 = vpop.permute.xlu0 %1722
    %v1725 = vmul.f32 %v1720, %v1723
    %v1726 = vmul.f32 %v1707, %v1401
    %v1727 = vadd.f32 %v1725, %v1726
    %v1728 = vpack.c.bf16 %v1727, %v1727
    %1730 = vrot.lane.b32.xlu0 %v1728, 96
    %v1731 = vpop.permute.xlu0 %1730
    %1732 = vrot.lane.b32.xlu0 %v1612, 32
    %v1733 = vpop.permute.xlu0 %1732
    %v1736 = vsel %vm131, %v1731, %v1733
    %v1737 = vsel %vm1435, %v1736, 0
    %1739 = vmatprep.subr.bf16.mxu0 0
    %1740 = vmatpush1.bf16.msra.mxu0 %v1427
    %1741 = vmatprep.subr.bf16.mxu0 0
    %1742 = vmatpush1.bf16.msra.mxu0 %v1428
    %1743 = vmatprep.subr.bf16.mxu0 0
    %1744 = vmatpush1.bf16.msra.mxu0 %v1429
    %1745 = vmatprep.subr.bf16.mxu0 0
    %1746 = vmatpush1.bf16.msra.mxu0 %v1430
    %1747 = vmatprep.subr.bf16.mxu0 0
    %1748 = vmatpush1.bf16.msra.mxu0 0
    %1749 = vmatprep.subr.bf16.mxu0 0
    %1750 = vmatpush1.bf16.msra.mxu0 0
    %1751 = vmatprep.subr.bf16.mxu0 0
    %1752 = vmatpush1.bf16.msra.mxu0 0
    %1753 = vmatprep.subr.bf16.mxu0 0
    %1754 = vmatpush1.bf16.msra.mxu0 0
    %1755 = vmatprep.subr.bf16.mxu0 0
    %1756 = vmatpush1.bf16.msra.mxu0 0
    %1757 = vmatprep.subr.bf16.mxu0 0
    %1758 = vmatpush1.bf16.msra.mxu0 0
    %1759 = vmatprep.subr.bf16.mxu0 0
    %1760 = vmatpush1.bf16.msra.mxu0 0
    %1761 = vmatprep.subr.bf16.mxu0 0
    %1762 = vmatpush1.bf16.msra.mxu0 0
    %1763 = vmatprep.subr.bf16.mxu0 0
    %1764 = vmatpush1.bf16.msra.mxu0 0
    %1765 = vmatprep.subr.bf16.mxu0 0
    %1766 = vmatpush1.bf16.msra.mxu0 0
    %1767 = vmatprep.subr.bf16.mxu0 0
    %1768 = vmatpush1.bf16.msra.mxu0 0
    %1769 = vmatprep.subr.bf16.mxu0 0
    %1770 = vmatpush1.bf16.msra.mxu0 0
    %1771 = vmatprep.mubr.bf16.mxu0 0
    %1772 = vmatmul.mubr.bf16.gmra.mrb[0].mxu0 %v1737
    %v1773 = vpop.f32.mrb[0].mxu0
    %v1774 = vadd.f32 %v67, %v1773
    %v1775 = vpop.f32.mrb[0].mxu0
    %v1776 = vpop.f32.mrb[0].mxu0
    %v1777 = vpop.f32.mrb[0].mxu0
    %1778 = vdwg.mxu0
    %v1779 = vsel %vm1137, %v1774, -inf
    %1780 = vmax.xlane.f32.xlu0 %v1779
    %v1781 = vpop.xlane.xlu0 %1780
    %vm1782 = vcmp.eq.f32.partialorder %v1774, %v1781
    %v1783 = vsel %vm1782, %v1121, 24
    %v1784 = vsel %vm1137, %v1783, 2147483647
    %v1785 = vand.u32 %v1784, 65535
    %v1786 = vshra.s32 %v1784, 16
    %v1787 = vcvt.s32.f32 %v1785
    %v1788 = vcvt.s32.f32 %v1786
    %1789 = vmin.xlane.f32.xlu0 %v1788
    %v1790 = vpop.xlane.xlu0 %1789
    %vm1791 = vcmp.eq.f32.partialorder %v1788, %v1790
    %v1792 = vsel %vm1791, %v1787, inf
    %1793 = vmin.xlane.f32.xlu0 %v1792
    %v1794 = vpop.xlane.xlu0 %1793
    %v1795 = vcvt.f32.s32 %v1794
    %v1796 = vcvt.f32.s32 %v1790
    %v1797 = vshll.u32 %v1796, 16
    %v1798 = vadd.s32 %v1797, %v1795
    %vm1799 = vcmp.eq.s32.totalorder %v1121, %v1798
    %v1800 = vsel %vm1799, 1, 0
    %v1801 = vcvt.s32.f32 %v1800
    %v1802 = vpack.c.bf16 %v1801, %v1801
    %v1803 = vsub.f32 %v1774, %v1781
    %v1804 = vmul.f32 %v1803, 1.442695
    %v1805 = vpow.pop %v1804
    %v1806 = vsel %vm1137, %v1805, 0.0
    %1807 = vadd.xlane.f32.xlu0 %v1806
    %v1808 = vpop.xlane.xlu0 %1807
    %v1809 = vlog2.pop %v1808
    %v1810 = vmul.f32 %v1809, 0.6931472
    %v1811 = vadd.f32 %v1781, %v1810
    %v1812 = vsub.f32 %v1774, %v1811
    %s1813 = scalar_lea.vmem [#allocation3], 8
    %1814 = vst.msk [vmem:[%s1813] sm:$0xf] %vm1137, %v1812
    %v1815 = vsel %vm131, %v1731, 0
    %1817 = vmatprep.subr.bf16.mxu0 0
    %1818 = vmatpush1.bf16.msra.mxu0 %v1118
    %1819 = vmatprep.subr.bf16.mxu0 0
    %1820 = vmatpush1.bf16.msra.mxu0 %v1119
    %1821 = vmatprep.subr.bf16.mxu0 0
    %1822 = vmatpush1.bf16.msra.mxu0 0
    %1823 = vmatprep.subr.bf16.mxu0 0
    %1824 = vmatpush1.bf16.msra.mxu0 0
    %1825 = vmatprep.subr.bf16.mxu0 0
    %1826 = vmatpush1.bf16.msra.mxu0 0
    %1827 = vmatprep.subr.bf16.mxu0 0
    %1828 = vmatpush1.bf16.msra.mxu0 0
    %1829 = vmatprep.subr.bf16.mxu0 0
    %1830 = vmatpush1.bf16.msra.mxu0 0
    %1831 = vmatprep.subr.bf16.mxu0 0
    %1832 = vmatpush1.bf16.msra.mxu0 0
    %1833 = vmatprep.subr.bf16.mxu0 0
    %1834 = vmatpush1.bf16.msra.mxu0 0
    %1835 = vmatprep.subr.bf16.mxu0 0
    %1836 = vmatpush1.bf16.msra.mxu0 0
    %1837 = vmatprep.subr.bf16.mxu0 0
    %1838 = vmatpush1.bf16.msra.mxu0 0
    %1839 = vmatprep.subr.bf16.mxu0 0
    %1840 = vmatpush1.bf16.msra.mxu0 0
    %1841 = vmatprep.subr.bf16.mxu0 0
    %1842 = vmatpush1.bf16.msra.mxu0 0
    %1843 = vmatprep.subr.bf16.mxu0 0
    %1844 = vmatpush1.bf16.msra.mxu0 0
    %1845 = vmatprep.subr.bf16.mxu0 0
    %1846 = vmatpush1.bf16.msra.mxu0 0
    %1847 = vmatprep.subr.bf16.mxu0 0
    %1848 = vmatpush1.bf16.msra.mxu0 0
    %1849 = vmatprep.mubr.bf16.mxu0 0
    %1850 = vmatmul.mubr.bf16.gmra.mrb[0].mxu0 %v1815
    %v1851 = vpop.f32.mrb[0].mxu0
    %v1852 = vadd.f32 0.0, %v1851
    %v1853 = vpop.f32.mrb[0].mxu0
    %v1854 = vpop.f32.mrb[0].mxu0
    %v1855 = vpop.f32.mrb[0].mxu0
    %1856 = vdwg.mxu0
    %v1857 = vsel %vm1136, %v1852, -1e+30
    %v1858 = vsel %vm210, %v1857, -inf
    %1859 = vmax.xlane.f32.xlu0 %v1858
    %v1860 = vpop.xlane.xlu0 %1859
    %v1861 = vsub.f32 %v1857, %v1860
    %v1862 = vmul.f32 %v1861, 1.442695
    %v1863 = vpow.pop %v1862
    %v1864 = vsel %vm210, %v1863, 0.0
    %1865 = vadd.xlane.f32.xlu0 %v1864
    %v1866 = vpop.xlane.xlu0 %1865
    %v1867 = vrcp.pop %v1866
    %v1868 = vmul.f32 %v1863, %v1867
    %v1869 = vpack.c.bf16 %v1868, %v1868
    %v1871 = vsel %vm131, %v1869, 0
    %1873 = vmatprep.subr.bf16.mxu0 0
    %1874 = vmatpush1.bf16.msra.mxu0 %v1084
    %1875 = vmatprep.subr.bf16.mxu0 0
    %1876 = vmatpush1.bf16.msra.mxu0 %v1085
    %1877 = vmatprep.subr.bf16.mxu0 0
    %1878 = vmatpush1.bf16.msra.mxu0 0
    %1879 = vmatprep.subr.bf16.mxu0 0
    %1880 = vmatpush1.bf16.msra.mxu0 0
    %1881 = vmatprep.subr.bf16.mxu0 0
    %1882 = vmatpush1.bf16.msra.mxu0 0
    %1883 = vmatprep.subr.bf16.mxu0 0
    %1884 = vmatpush1.bf16.msra.mxu0 0
    %1885 = vmatprep.subr.bf16.mxu0 0
    %1886 = vmatpush1.bf16.msra.mxu0 0
    %1887 = vmatprep.subr.bf16.mxu0 0
    %1888 = vmatpush1.bf16.msra.mxu0 0
    %1889 = vmatprep.subr.bf16.mxu0 0
    %1890 = vmatpush1.bf16.msra.mxu0 0
    %1891 = vmatprep.subr.bf16.mxu0 0
    %1892 = vmatpush1.bf16.msra.mxu0 0
    %1893 = vmatprep.subr.bf16.mxu0 0
    %1894 = vmatpush1.bf16.msra.mxu0 0
    %1895 = vmatprep.subr.bf16.mxu0 0
    %1896 = vmatpush1.bf16.msra.mxu0 0
    %1897 = vmatprep.subr.bf16.mxu0 0
    %1898 = vmatpush1.bf16.msra.mxu0 0
    %1899 = vmatprep.subr.bf16.mxu0 0
    %1900 = vmatpush1.bf16.msra.mxu0 0
    %1901 = vmatprep.subr.bf16.mxu0 0
    %1902 = vmatpush1.bf16.msra.mxu0 0
    %1903 = vmatprep.subr.bf16.mxu0 0
    %1904 = vmatpush1.bf16.msra.mxu0 0
    %1905 = vmatprep.mubr.bf16.mxu0 0
    %1906 = vmatmul.mubr.bf16.gmra.mrb[0].mxu0 %v1871
    %v1907 = vpop.f32.mrb[0].mxu0
    %v1908 = vadd.f32 0.0, %v1907
    %v1909 = vpop.f32.mrb[0].mxu0
    %v1910 = vpop.f32.mrb[0].mxu0
    %v1911 = vpop.f32.mrb[0].mxu0
    %1912 = vdwg.mxu0
    %v1913 = vpack.c.bf16 %v1908, %v1908
    %1915 = vrot.lane.b32.xlu0 %v1913, 24
    %v1916 = vpop.permute.xlu0 %1915
    %v1919 = vsel %vm1247, %v1802, %v1916
    %v1920 = vsel %vm1272, %v1919, 0
    %1922 = vmatprep.subr.bf16.mxu0 0
    %1923 = vmatpush1.bf16.msra.mxu0 %v1265
    %1924 = vmatprep.subr.bf16.mxu0 0
    %1925 = vmatpush1.bf16.msra.mxu0 %v1266
    %1926 = vmatprep.subr.bf16.mxu0 0
    %1927 = vmatpush1.bf16.msra.mxu0 %v1267
    %1928 = vmatprep.subr.bf16.mxu0 0
    %1929 = vmatpush1.bf16.msra.mxu0 %v1277
    %1930 = vmatprep.subr.bf16.mxu0 0
    %1931 = vmatpush1.bf16.msra.mxu0 0
    %1932 = vmatprep.subr.bf16.mxu0 0
    %1933 = vmatpush1.bf16.msra.mxu0 0
    %1934 = vmatprep.subr.bf16.mxu0 0
    %1935 = vmatpush1.bf16.msra.mxu0 0
    %1936 = vmatprep.subr.bf16.mxu0 0
    %1937 = vmatpush1.bf16.msra.mxu0 0
    %1938 = vmatprep.subr.bf16.mxu0 0
    %1939 = vmatpush1.bf16.msra.mxu0 0
    %1940 = vmatprep.subr.bf16.mxu0 0
    %1941 = vmatpush1.bf16.msra.mxu0 0
    %1942 = vmatprep.subr.bf16.mxu0 0
    %1943 = vmatpush1.bf16.msra.mxu0 0
    %1944 = vmatprep.subr.bf16.mxu0 0
    %1945 = vmatpush1.bf16.msra.mxu0 0
    %1946 = vmatprep.subr.bf16.mxu0 0
    %1947 = vmatpush1.bf16.msra.mxu0 0
    %1948 = vmatprep.subr.bf16.mxu0 0
    %1949 = vmatpush1.bf16.msra.mxu0 0
    %1950 = vmatprep.subr.bf16.mxu0 0
    %1951 = vmatpush1.bf16.msra.mxu0 0
    %1952 = vmatprep.subr.bf16.mxu0 0
    %1953 = vmatpush1.bf16.msra.mxu0 0
    %1954 = vmatprep.mubr.bf16.mxu0 0
    %1955 = vmatmul.mubr.bf16.gmra.mrb[0].mxu0 %v1920
    %v1956 = vpop.f32.mrb[0].mxu0
    %v1957 = vadd.f32 %v59, %v1956
    %v1958 = vpop.f32.mrb[0].mxu0
    %v1959 = vpop.f32.mrb[0].mxu0
    %v1960 = vpop.f32.mrb[0].mxu0
    %1961 = vdwg.mxu0
    %1962 = vmatprep.subr.bf16.mxu0 0
    %1963 = vmatpush1.bf16.msra.mxu0 %v1327
    %1964 = vmatprep.subr.bf16.mxu0 0
    %1965 = vmatpush1.bf16.msra.mxu0 %v1328
    %1966 = vmatprep.subr.bf16.mxu0 0
    %1967 = vmatpush1.bf16.msra.mxu0 0
    %1968 = vmatprep.subr.bf16.mxu0 0
    %1969 = vmatpush1.bf16.msra.mxu0 0
    %1970 = vmatprep.subr.bf16.mxu0 0
    %1971 = vmatpush1.bf16.msra.mxu0 0
    %1972 = vmatprep.subr.bf16.mxu0 0
    %1973 = vmatpush1.bf16.msra.mxu0 0
    %1974 = vmatprep.subr.bf16.mxu0 0
    %1975 = vmatpush1.bf16.msra.mxu0 0
    %1976 = vmatprep.subr.bf16.mxu0 0
    %1977 = vmatpush1.bf16.msra.mxu0 0
    %1978 = vmatprep.subr.bf16.mxu0 0
    %1979 = vmatpush1.bf16.msra.mxu0 0
    %1980 = vmatprep.subr.bf16.mxu0 0
    %1981 = vmatpush1.bf16.msra.mxu0 0
    %1982 = vmatprep.subr.bf16.mxu0 0
    %1983 = vmatpush1.bf16.msra.mxu0 0
    %1984 = vmatprep.subr.bf16.mxu0 0
    %1985 = vmatpush1.bf16.msra.mxu0 0
    %1986 = vmatprep.subr.bf16.mxu0 0
    %1987 = vmatpush1.bf16.msra.mxu0 0
    %1988 = vmatprep.subr.bf16.mxu0 0
    %1989 = vmatpush1.bf16.msra.mxu0 0
    %1990 = vmatprep.subr.bf16.mxu0 0
    %1991 = vmatpush1.bf16.msra.mxu0 0
    %1992 = vmatprep.subr.bf16.mxu0 0
    %1993 = vmatpush1.bf16.msra.mxu0 0
    %1994 = vmatprep.mubr.bf16.mxu0 0
    %1995 = vmatmul.mubr.bf16.gmra.mrb[0].mxu0 %v1815
    %v1996 = vpop.f32.mrb[0].mxu0
    %v1997 = vadd.f32 0.0, %v1996
    %v1998 = vpop.f32.mrb[0].mxu0
    %v1999 = vpop.f32.mrb[0].mxu0
    %v2000 = vpop.f32.mrb[0].mxu0
    %2001 = vdwg.mxu0
    %v2002 = vadd.f32 %v1957, %v1997
    %v2003 = vxor.u32 %v2002, 2147483648
    %v2004 = vmul.f32 %v2003, 1.442695
    %v2005 = vpow.pop %v2004
    %v2006 = vadd.f32 %v2005, 1.0
    %v2007 = vrcp.pop %v2006
    %v2008 = vmul.f32 1.0, %v2007
    %v2009 = vadd.f32 %v1997, %v1380
    %2011 = vrot.lane.b32.xlu0 %v2009, 64
    %v2012 = vpop.permute.xlu0 %2011
    %v2014 = vmul.f32 %v2008, %v2012
    %2016 = vrot.lane.b32.xlu0 %v2014, 64
    %v2017 = vpop.permute.xlu0 %2016
    %v2019 = vadd.f32 %v1957, %v2017
    %v2020 = vtanh.pop %v2019
    %v2021 = vsub.f32 1.0, %v2008
    %2023 = vrot.lane.b32.xlu0 %v2020, 96
    %v2024 = vpop.permute.xlu0 %2023
    %v2026 = vmul.f32 %v2021, %v2024
    %v2027 = vmul.f32 %v2008, %v1727
    %v2028 = vadd.f32 %v2026, %v2027
    %v2029 = vpack.c.bf16 %v2028, %v2028
    %2031 = vrot.lane.b32.xlu0 %v2029, 96
    %v2032 = vpop.permute.xlu0 %2031
    %2033 = vrot.lane.b32.xlu0 %v1913, 32
    %v2034 = vpop.permute.xlu0 %2033
    %v2037 = vsel %vm131, %v2032, %v2034
    %v2038 = vsel %vm1435, %v2037, 0
    %2040 = vmatprep.subr.bf16.mxu0 0
    %2041 = vmatpush1.bf16.msra.mxu0 %v1427
    %2042 = vmatprep.subr.bf16.mxu0 0
    %2043 = vmatpush1.bf16.msra.mxu0 %v1428
    %2044 = vmatprep.subr.bf16.mxu0 0
    %2045 = vmatpush1.bf16.msra.mxu0 %v1429
    %2046 = vmatprep.subr.bf16.mxu0 0
    %2047 = vmatpush1.bf16.msra.mxu0 %v1430
    %2048 = vmatprep.subr.bf16.mxu0 0
    %2049 = vmatpush1.bf16.msra.mxu0 0
    %2050 = vmatprep.subr.bf16.mxu0 0
    %2051 = vmatpush1.bf16.msra.mxu0 0
    %2052 = vmatprep.subr.bf16.mxu0 0
    %2053 = vmatpush1.bf16.msra.mxu0 0
    %2054 = vmatprep.subr.bf16.mxu0 0
    %2055 = vmatpush1.bf16.msra.mxu0 0
    %2056 = vmatprep.subr.bf16.mxu0 0
    %2057 = vmatpush1.bf16.msra.mxu0 0
    %2058 = vmatprep.subr.bf16.mxu0 0
    %2059 = vmatpush1.bf16.msra.mxu0 0
    %2060 = vmatprep.subr.bf16.mxu0 0
    %2061 = vmatpush1.bf16.msra.mxu0 0
    %2062 = vmatprep.subr.bf16.mxu0 0
    %2063 = vmatpush1.bf16.msra.mxu0 0
    %2064 = vmatprep.subr.bf16.mxu0 0
    %2065 = vmatpush1.bf16.msra.mxu0 0
    %2066 = vmatprep.subr.bf16.mxu0 0
    %2067 = vmatpush1.bf16.msra.mxu0 0
    %2068 = vmatprep.subr.bf16.mxu0 0
    %2069 = vmatpush1.bf16.msra.mxu0 0
    %2070 = vmatprep.subr.bf16.mxu0 0
    %2071 = vmatpush1.bf16.msra.mxu0 0
    %2072 = vmatprep.mubr.bf16.mxu0 0
    %2073 = vmatmul.mubr.bf16.gmra.mrb[0].mxu0 %v2038
    %v2074 = vpop.f32.mrb[0].mxu0
    %v2075 = vadd.f32 %v67, %v2074
    %v2076 = vpop.f32.mrb[0].mxu0
    %v2077 = vpop.f32.mrb[0].mxu0
    %v2078 = vpop.f32.mrb[0].mxu0
    %2079 = vdwg.mxu0
    %v2080 = vsel %vm1137, %v2075, -inf
    %2081 = vmax.xlane.f32.xlu0 %v2080
    %v2082 = vpop.xlane.xlu0 %2081
    %vm2083 = vcmp.eq.f32.partialorder %v2075, %v2082
    %v2084 = vsel %vm2083, %v1121, 24
    %v2085 = vsel %vm1137, %v2084, 2147483647
    %v2086 = vand.u32 %v2085, 65535
    %v2087 = vshra.s32 %v2085, 16
    %v2088 = vcvt.s32.f32 %v2086
    %v2089 = vcvt.s32.f32 %v2087
    %2090 = vmin.xlane.f32.xlu0 %v2089
    %v2091 = vpop.xlane.xlu0 %2090
    %vm2092 = vcmp.eq.f32.partialorder %v2089, %v2091
    %v2093 = vsel %vm2092, %v2088, inf
    %2094 = vmin.xlane.f32.xlu0 %v2093
    %v2095 = vpop.xlane.xlu0 %2094
    %v2096 = vcvt.f32.s32 %v2095
    %v2097 = vcvt.f32.s32 %v2091
    %v2098 = vshll.u32 %v2097, 16
    %v2099 = vadd.s32 %v2098, %v2096
    %vm2100 = vcmp.eq.s32.totalorder %v1121, %v2099
    %v2101 = vsel %vm2100, 1, 0
    %v2102 = vcvt.s32.f32 %v2101
    %v2103 = vpack.c.bf16 %v2102, %v2102
    %v2104 = vsub.f32 %v2075, %v2082
    %v2105 = vmul.f32 %v2104, 1.442695
    %v2106 = vpow.pop %v2105
    %v2107 = vsel %vm1137, %v2106, 0.0
    %2108 = vadd.xlane.f32.xlu0 %v2107
    %v2109 = vpop.xlane.xlu0 %2108
    %v2110 = vlog2.pop %v2109
    %v2111 = vmul.f32 %v2110, 0.6931472
    %v2112 = vadd.f32 %v2082, %v2111
    %v2113 = vsub.f32 %v2075, %v2112
    %s2114 = scalar_lea.vmem [#allocation3], 12
    %2115 = vst.msk [vmem:[%s2114] sm:$0xf] %vm1137, %v2113
    %v2116 = vsel %vm131, %v2032, 0
    %2118 = vmatprep.subr.bf16.mxu0 0
    %2119 = vmatpush1.bf16.msra.mxu0 %v1118
    %2120 = vmatprep.subr.bf16.mxu0 0
    %2121 = vmatpush1.bf16.msra.mxu0 %v1119
    %2122 = vmatprep.subr.bf16.mxu0 0
    %2123 = vmatpush1.bf16.msra.mxu0 0
    %2124 = vmatprep.subr.bf16.mxu0 0
    %2125 = vmatpush1.bf16.msra.mxu0 0
    %2126 = vmatprep.subr.bf16.mxu0 0
    %2127 = vmatpush1.bf16.msra.mxu0 0
    %2128 = vmatprep.subr.bf16.mxu0 0
    %2129 = vmatpush1.bf16.msra.mxu0 0
    %2130 = vmatprep.subr.bf16.mxu0 0
    %2131 = vmatpush1.bf16.msra.mxu0 0
    %2132 = vmatprep.subr.bf16.mxu0 0
    %2133 = vmatpush1.bf16.msra.mxu0 0
    %2134 = vmatprep.subr.bf16.mxu0 0
    %2135 = vmatpush1.bf16.msra.mxu0 0
    %2136 = vmatprep.subr.bf16.mxu0 0
    %2137 = vmatpush1.bf16.msra.mxu0 0
    %2138 = vmatprep.subr.bf16.mxu0 0
    %2139 = vmatpush1.bf16.msra.mxu0 0
    %2140 = vmatprep.subr.bf16.mxu0 0
    %2141 = vmatpush1.bf16.msra.mxu0 0
    %2142 = vmatprep.subr.bf16.mxu0 0
    %2143 = vmatpush1.bf16.msra.mxu0 0
    %2144 = vmatprep.subr.bf16.mxu0 0
    %2145 = vmatpush1.bf16.msra.mxu0 0
    %2146 = vmatprep.subr.bf16.mxu0 0
    %2147 = vmatpush1.bf16.msra.mxu0 0
    %2148 = vmatprep.subr.bf16.mxu0 0
    %2149 = vmatpush1.bf16.msra.mxu0 0
    %2150 = vmatprep.mubr.bf16.mxu0 0
    %2151 = vmatmul.mubr.bf16.gmra.mrb[0].mxu0 %v2116
    %v2152 = vpop.f32.mrb[0].mxu0
    %v2153 = vadd.f32 0.0, %v2152
    %v2154 = vpop.f32.mrb[0].mxu0
    %v2155 = vpop.f32.mrb[0].mxu0
    %v2156 = vpop.f32.mrb[0].mxu0
    %2157 = vdwg.mxu0
    %v2158 = vsel %vm1136, %v2153, -1e+30
    %v2159 = vsel %vm210, %v2158, -inf
    %2160 = vmax.xlane.f32.xlu0 %v2159
    %v2161 = vpop.xlane.xlu0 %2160
    %v2162 = vsub.f32 %v2158, %v2161
    %v2163 = vmul.f32 %v2162, 1.442695
    %v2164 = vpow.pop %v2163
    %v2165 = vsel %vm210, %v2164, 0.0
    %2166 = vadd.xlane.f32.xlu0 %v2165
    %v2167 = vpop.xlane.xlu0 %2166
    %v2168 = vrcp.pop %v2167
    %v2169 = vmul.f32 %v2164, %v2168
    %v2170 = vpack.c.bf16 %v2169, %v2169
    %v2172 = vsel %vm131, %v2170, 0
    %2174 = vmatprep.subr.bf16.mxu0 0
    %2175 = vmatpush1.bf16.msra.mxu0 %v1084
    %2176 = vmatprep.subr.bf16.mxu0 0
    %2177 = vmatpush1.bf16.msra.mxu0 %v1085
    %2178 = vmatprep.subr.bf16.mxu0 0
    %2179 = vmatpush1.bf16.msra.mxu0 0
    %2180 = vmatprep.subr.bf16.mxu0 0
    %2181 = vmatpush1.bf16.msra.mxu0 0
    %2182 = vmatprep.subr.bf16.mxu0 0
    %2183 = vmatpush1.bf16.msra.mxu0 0
    %2184 = vmatprep.subr.bf16.mxu0 0
    %2185 = vmatpush1.bf16.msra.mxu0 0
    %2186 = vmatprep.subr.bf16.mxu0 0
    %2187 = vmatpush1.bf16.msra.mxu0 0
    %2188 = vmatprep.subr.bf16.mxu0 0
    %2189 = vmatpush1.bf16.msra.mxu0 0
    %2190 = vmatprep.subr.bf16.mxu0 0
    %2191 = vmatpush1.bf16.msra.mxu0 0
    %2192 = vmatprep.subr.bf16.mxu0 0
    %2193 = vmatpush1.bf16.msra.mxu0 0
    %2194 = vmatprep.subr.bf16.mxu0 0
    %2195 = vmatpush1.bf16.msra.mxu0 0
    %2196 = vmatprep.subr.bf16.mxu0 0
    %2197 = vmatpush1.bf16.msra.mxu0 0
    %2198 = vmatprep.subr.bf16.mxu0 0
    %2199 = vmatpush1.bf16.msra.mxu0 0
    %2200 = vmatprep.subr.bf16.mxu0 0
    %2201 = vmatpush1.bf16.msra.mxu0 0
    %2202 = vmatprep.subr.bf16.mxu0 0
    %2203 = vmatpush1.bf16.msra.mxu0 0
    %2204 = vmatprep.subr.bf16.mxu0 0
    %2205 = vmatpush1.bf16.msra.mxu0 0
    %2206 = vmatprep.mubr.bf16.mxu0 0
    %2207 = vmatmul.mubr.bf16.gmra.mrb[0].mxu0 %v2172
    %v2208 = vpop.f32.mrb[0].mxu0
    %v2209 = vadd.f32 0.0, %v2208
    %v2210 = vpop.f32.mrb[0].mxu0
    %v2211 = vpop.f32.mrb[0].mxu0
    %v2212 = vpop.f32.mrb[0].mxu0
    %2213 = vdwg.mxu0
    %v2214 = vpack.c.bf16 %v2209, %v2209
    %2216 = vrot.lane.b32.xlu0 %v2214, 24
    %v2217 = vpop.permute.xlu0 %2216
    %v2220 = vsel %vm1247, %v2103, %v2217
    %v2221 = vsel %vm1272, %v2220, 0
    %2223 = vmatprep.subr.bf16.mxu0 0
    %2224 = vmatpush1.bf16.msra.mxu0 %v1265
    %2225 = vmatprep.subr.bf16.mxu0 0
    %2226 = vmatpush1.bf16.msra.mxu0 %v1266
    %2227 = vmatprep.subr.bf16.mxu0 0
    %2228 = vmatpush1.bf16.msra.mxu0 %v1267
    %2229 = vmatprep.subr.bf16.mxu0 0
    %2230 = vmatpush1.bf16.msra.mxu0 %v1277
    %2231 = vmatprep.subr.bf16.mxu0 0
    %2232 = vmatpush1.bf16.msra.mxu0 0
    %2233 = vmatprep.subr.bf16.mxu0 0
    %2234 = vmatpush1.bf16.msra.mxu0 0
    %2235 = vmatprep.subr.bf16.mxu0 0
    %2236 = vmatpush1.bf16.msra.mxu0 0
    %2237 = vmatprep.subr.bf16.mxu0 0
    %2238 = vmatpush1.bf16.msra.mxu0 0
    %2239 = vmatprep.subr.bf16.mxu0 0
    %2240 = vmatpush1.bf16.msra.mxu0 0
    %2241 = vmatprep.subr.bf16.mxu0 0
    %2242 = vmatpush1.bf16.msra.mxu0 0
    %2243 = vmatprep.subr.bf16.mxu0 0
    %2244 = vmatpush1.bf16.msra.mxu0 0
    %2245 = vmatprep.subr.bf16.mxu0 0
    %2246 = vmatpush1.bf16.msra.mxu0 0
    %2247 = vmatprep.subr.bf16.mxu0 0
    %2248 = vmatpush1.bf16.msra.mxu0 0
    %2249 = vmatprep.subr.bf16.mxu0 0
    %2250 = vmatpush1.bf16.msra.mxu0 0
    %2251 = vmatprep.subr.bf16.mxu0 0
    %2252 = vmatpush1.bf16.msra.mxu0 0
    %2253 = vmatprep.subr.bf16.mxu0 0
    %2254 = vmatpush1.bf16.msra.mxu0 0
    %2255 = vmatprep.mubr.bf16.mxu0 0
    %2256 = vmatmul.mubr.bf16.gmra.mrb[0].mxu0 %v2221
    %v2257 = vpop.f32.mrb[0].mxu0
    %v2258 = vadd.f32 %v59, %v2257
    %v2259 = vpop.f32.mrb[0].mxu0
    %v2260 = vpop.f32.mrb[0].mxu0
    %v2261 = vpop.f32.mrb[0].mxu0
    %2262 = vdwg.mxu0
    %2263 = vmatprep.subr.bf16.mxu0 0
    %2264 = vmatpush1.bf16.msra.mxu0 %v1327
    %2265 = vmatprep.subr.bf16.mxu0 0
    %2266 = vmatpush1.bf16.msra.mxu0 %v1328
    %2267 = vmatprep.subr.bf16.mxu0 0
    %2268 = vmatpush1.bf16.msra.mxu0 0
    %2269 = vmatprep.subr.bf16.mxu0 0
    %2270 = vmatpush1.bf16.msra.mxu0 0
    %2271 = vmatprep.subr.bf16.mxu0 0
    %2272 = vmatpush1.bf16.msra.mxu0 0
    %2273 = vmatprep.subr.bf16.mxu0 0
    %2274 = vmatpush1.bf16.msra.mxu0 0
    %2275 = vmatprep.subr.bf16.mxu0 0
    %2276 = vmatpush1.bf16.msra.mxu0 0
    %2277 = vmatprep.subr.bf16.mxu0 0
    %2278 = vmatpush1.bf16.msra.mxu0 0
    %2279 = vmatprep.subr.bf16.mxu0 0
    %2280 = vmatpush1.bf16.msra.mxu0 0
    %2281 = vmatprep.subr.bf16.mxu0 0
    %2282 = vmatpush1.bf16.msra.mxu0 0
    %2283 = vmatprep.subr.bf16.mxu0 0
    %2284 = vmatpush1.bf16.msra.mxu0 0
    %2285 = vmatprep.subr.bf16.mxu0 0
    %2286 = vmatpush1.bf16.msra.mxu0 0
    %2287 = vmatprep.subr.bf16.mxu0 0
    %2288 = vmatpush1.bf16.msra.mxu0 0
    %2289 = vmatprep.subr.bf16.mxu0 0
    %2290 = vmatpush1.bf16.msra.mxu0 0
    %2291 = vmatprep.subr.bf16.mxu0 0
    %2292 = vmatpush1.bf16.msra.mxu0 0
    %2293 = vmatprep.subr.bf16.mxu0 0
    %2294 = vmatpush1.bf16.msra.mxu0 0
    %2295 = vmatprep.mubr.bf16.mxu0 0
    %2296 = vmatmul.mubr.bf16.gmra.mrb[0].mxu0 %v2116
    %v2297 = vpop.f32.mrb[0].mxu0
    %v2298 = vadd.f32 0.0, %v2297
    %v2299 = vpop.f32.mrb[0].mxu0
    %v2300 = vpop.f32.mrb[0].mxu0
    %v2301 = vpop.f32.mrb[0].mxu0
    %2302 = vdwg.mxu0
    %v2303 = vadd.f32 %v2258, %v2298
    %v2304 = vxor.u32 %v2303, 2147483648
    %v2305 = vmul.f32 %v2304, 1.442695
    %v2306 = vpow.pop %v2305
    %v2307 = vadd.f32 %v2306, 1.0
    %v2308 = vrcp.pop %v2307
    %v2309 = vmul.f32 1.0, %v2308
    %v2310 = vadd.f32 %v2298, %v1380
    %2312 = vrot.lane.b32.xlu0 %v2310, 64
    %v2313 = vpop.permute.xlu0 %2312
    %v2315 = vmul.f32 %v2309, %v2313
    %2317 = vrot.lane.b32.xlu0 %v2315, 64
    %v2318 = vpop.permute.xlu0 %2317
    %v2320 = vadd.f32 %v2258, %v2318
    %v2321 = vtanh.pop %v2320
    %v2322 = vsub.f32 1.0, %v2309
    %2324 = vrot.lane.b32.xlu0 %v2321, 96
    %v2325 = vpop.permute.xlu0 %2324
    %v2327 = vmul.f32 %v2322, %v2325
    %v2328 = vmul.f32 %v2309, %v2028
    %v2329 = vadd.f32 %v2327, %v2328
    %v2330 = vpack.c.bf16 %v2329, %v2329
    %2332 = vrot.lane.b32.xlu0 %v2330, 96
    %v2333 = vpop.permute.xlu0 %2332
    %2334 = vrot.lane.b32.xlu0 %v2214, 32
    %v2335 = vpop.permute.xlu0 %2334
    %v2338 = vsel %vm131, %v2333, %v2335
    %v2339 = vsel %vm1435, %v2338, 0
    %2341 = vmatprep.subr.bf16.mxu0 0
    %2342 = vmatpush1.bf16.msra.mxu0 %v1427
    %2343 = vmatprep.subr.bf16.mxu0 0
    %2344 = vmatpush1.bf16.msra.mxu0 %v1428
    %2345 = vmatprep.subr.bf16.mxu0 0
    %2346 = vmatpush1.bf16.msra.mxu0 %v1429
    %2347 = vmatprep.subr.bf16.mxu0 0
    %2348 = vmatpush1.bf16.msra.mxu0 %v1430
    %2349 = vmatprep.subr.bf16.mxu0 0
    %2350 = vmatpush1.bf16.msra.mxu0 0
    %2351 = vmatprep.subr.bf16.mxu0 0
    %2352 = vmatpush1.bf16.msra.mxu0 0
    %2353 = vmatprep.subr.bf16.mxu0 0
    %2354 = vmatpush1.bf16.msra.mxu0 0
    %2355 = vmatprep.subr.bf16.mxu0 0
    %2356 = vmatpush1.bf16.msra.mxu0 0
    %2357 = vmatprep.subr.bf16.mxu0 0
    %2358 = vmatpush1.bf16.msra.mxu0 0
    %2359 = vmatprep.subr.bf16.mxu0 0
    %2360 = vmatpush1.bf16.msra.mxu0 0
    %2361 = vmatprep.subr.bf16.mxu0 0
    %2362 = vmatpush1.bf16.msra.mxu0 0
    %2363 = vmatprep.subr.bf16.mxu0 0
    %2364 = vmatpush1.bf16.msra.mxu0 0
    %2365 = vmatprep.subr.bf16.mxu0 0
    %2366 = vmatpush1.bf16.msra.mxu0 0
    %2367 = vmatprep.subr.bf16.mxu0 0
    %2368 = vmatpush1.bf16.msra.mxu0 0
    %2369 = vmatprep.subr.bf16.mxu0 0
    %2370 = vmatpush1.bf16.msra.mxu0 0
    %2371 = vmatprep.subr.bf16.mxu0 0
    %2372 = vmatpush1.bf16.msra.mxu0 0
    %2373 = vmatprep.mubr.bf16.mxu0 0
    %2374 = vmatmul.mubr.bf16.gmra.mrb[0].mxu0 %v2339
    %v2375 = vpop.f32.mrb[0].mxu0
    %v2376 = vadd.f32 %v67, %v2375
    %v2377 = vpop.f32.mrb[0].mxu0
    %v2378 = vpop.f32.mrb[0].mxu0
    %v2379 = vpop.f32.mrb[0].mxu0
    %2380 = vdwg.mxu0
    %s2381 = scalar_lea.vmem %s1, 8
    %v2382 = vld [vmem:[%s2381] sm:$0x3]
    %v2383 = vsel %vm1137, %v2376, -inf
    %2384 = vmax.xlane.f32.xlu0 %v2383
    %v2385 = vpop.xlane.xlu0 %2384
    %v2386 = vsub.f32 %v2376, %v2385
    %v2387 = vmul.f32 %v2386, 1.442695
    %v2388 = vpow.pop %v2387
    %v2389 = vsel %vm1137, %v2388, 0.0
    %2390 = vadd.xlane.f32.xlu0 %v2389
    %v2391 = vpop.xlane.xlu0 %2390
    %v2392 = vlog2.pop %v2391
    %v2393 = vmul.f32 %v2392, 0.6931472
    %v2394 = vadd.f32 %v2385, %v2393
    %v2395 = vsub.f32 %v2376, %v2394
    %s2396 = scalar_lea.vmem [#allocation3], 16
    %2397 = vst.msk [vmem:[%s2396] sm:$0xf] %vm1137, %v2395
    %v2398 = vsel %vm131, %v2333, 0
    %2400 = vmatprep.subr.bf16.mxu0 0
    %2401 = vmatpush1.bf16.msra.mxu0 %v1118
    %2402 = vmatprep.subr.bf16.mxu0 0
    %2403 = vmatpush1.bf16.msra.mxu0 %v1119
    %2404 = vmatprep.subr.bf16.mxu0 0
    %2405 = vmatpush1.bf16.msra.mxu0 0
    %2406 = vmatprep.subr.bf16.mxu0 0
    %2407 = vmatpush1.bf16.msra.mxu0 0
    %2408 = vmatprep.subr.bf16.mxu0 0
    %2409 = vmatpush1.bf16.msra.mxu0 0
    %2410 = vmatprep.subr.bf16.mxu0 0
    %2411 = vmatpush1.bf16.msra.mxu0 0
    %2412 = vmatprep.subr.bf16.mxu0 0
    %2413 = vmatpush1.bf16.msra.mxu0 0
    %2414 = vmatprep.subr.bf16.mxu0 0
    %2415 = vmatpush1.bf16.msra.mxu0 0
    %2416 = vmatprep.subr.bf16.mxu0 0
    %2417 = vmatpush1.bf16.msra.mxu0 0
    %2418 = vmatprep.subr.bf16.mxu0 0
    %2419 = vmatpush1.bf16.msra.mxu0 0
    %2420 = vmatprep.subr.bf16.mxu0 0
    %2421 = vmatpush1.bf16.msra.mxu0 0
    %2422 = vmatprep.subr.bf16.mxu0 0
    %2423 = vmatpush1.bf16.msra.mxu0 0
    %2424 = vmatprep.subr.bf16.mxu0 0
    %2425 = vmatpush1.bf16.msra.mxu0 0
    %2426 = vmatprep.subr.bf16.mxu0 0
    %2427 = vmatpush1.bf16.msra.mxu0 0
    %2428 = vmatprep.subr.bf16.mxu0 0
    %2429 = vmatpush1.bf16.msra.mxu0 0
    %2430 = vmatprep.subr.bf16.mxu0 0
    %2431 = vmatpush1.bf16.msra.mxu0 0
    %2432 = vmatprep.mubr.bf16.mxu0 0
    %2433 = vmatmul.mubr.bf16.gmra.mrb[0].mxu0 %v2398
    %v2434 = vpop.f32.mrb[0].mxu0
    %v2435 = vadd.f32 0.0, %v2434
    %v2436 = vpop.f32.mrb[0].mxu0
    %v2437 = vpop.f32.mrb[0].mxu0
    %v2438 = vpop.f32.mrb[0].mxu0
    %2439 = vdwg.mxu0
    %v2440 = vsel %vm1136, %v2435, -1e+30
    %v2441 = vsel %vm210, %v2440, -inf
    %2442 = vmax.xlane.f32.xlu0 %v2441
    %v2443 = vpop.xlane.xlu0 %2442
    %v2444 = vsub.f32 %v2440, %v2443
    %v2445 = vmul.f32 %v2444, 1.442695
    %v2446 = vpow.pop %v2445
    %v2447 = vsel %vm210, %v2446, 0.0
    %2448 = vadd.xlane.f32.xlu0 %v2447
    %v2449 = vpop.xlane.xlu0 %2448
    %v2450 = vrcp.pop %v2449
    %v2451 = vmul.f32 %v2446, %v2450
    %v2452 = vpack.c.bf16 %v2451, %v2451
    %v2454 = vsel %vm131, %v2452, 0
    %2456 = vmatprep.subr.bf16.mxu0 0
    %2457 = vmatpush1.bf16.msra.mxu0 %v1084
    %2458 = vmatprep.subr.bf16.mxu0 0
    %2459 = vmatpush1.bf16.msra.mxu0 %v1085
    %2460 = vmatprep.subr.bf16.mxu0 0
    %2461 = vmatpush1.bf16.msra.mxu0 0
    %2462 = vmatprep.subr.bf16.mxu0 0
    %2463 = vmatpush1.bf16.msra.mxu0 0
    %2464 = vmatprep.subr.bf16.mxu0 0
    %2465 = vmatpush1.bf16.msra.mxu0 0
    %2466 = vmatprep.subr.bf16.mxu0 0
    %2467 = vmatpush1.bf16.msra.mxu0 0
    %2468 = vmatprep.subr.bf16.mxu0 0
    %2469 = vmatpush1.bf16.msra.mxu0 0
    %2470 = vmatprep.subr.bf16.mxu0 0
    %2471 = vmatpush1.bf16.msra.mxu0 0
    %2472 = vmatprep.subr.bf16.mxu0 0
    %2473 = vmatpush1.bf16.msra.mxu0 0
    %2474 = vmatprep.subr.bf16.mxu0 0
    %2475 = vmatpush1.bf16.msra.mxu0 0
    %2476 = vmatprep.subr.bf16.mxu0 0
    %2477 = vmatpush1.bf16.msra.mxu0 0
    %2478 = vmatprep.subr.bf16.mxu0 0
    %2479 = vmatpush1.bf16.msra.mxu0 0
    %2480 = vmatprep.subr.bf16.mxu0 0
    %2481 = vmatpush1.bf16.msra.mxu0 0
    %2482 = vmatprep.subr.bf16.mxu0 0
    %2483 = vmatpush1.bf16.msra.mxu0 0
    %2484 = vmatprep.subr.bf16.mxu0 0
    %2485 = vmatpush1.bf16.msra.mxu0 0
    %2486 = vmatprep.subr.bf16.mxu0 0
    %2487 = vmatpush1.bf16.msra.mxu0 0
    %2488 = vmatprep.mubr.bf16.mxu0 0
    %2489 = vmatmul.mubr.bf16.gmra.mrb[0].mxu0 %v2454
    %v2490 = vpop.f32.mrb[0].mxu0
    %v2491 = vadd.f32 0.0, %v2490
    %v2492 = vpop.f32.mrb[0].mxu0
    %v2493 = vpop.f32.mrb[0].mxu0
    %v2494 = vpop.f32.mrb[0].mxu0
    %2495 = vdwg.mxu0
    %v2496 = vpack.c.bf16 %v2491, %v2491
    %2498 = vrot.lane.b32.xlu0 %v2496, 24
    %v2499 = vpop.permute.xlu0 %2498
    %v2502 = vsel %vm1247, %v2382, %v2499
    %v2503 = vsel %vm1272, %v2502, 0
    %2505 = vmatprep.subr.bf16.mxu0 0
    %2506 = vmatpush1.bf16.msra.mxu0 %v1265
    %2507 = vmatprep.subr.bf16.mxu0 0
    %2508 = vmatpush1.bf16.msra.mxu0 %v1266
    %2509 = vmatprep.subr.bf16.mxu0 0
    %2510 = vmatpush1.bf16.msra.mxu0 %v1267
    %2511 = vmatprep.subr.bf16.mxu0 0
    %2512 = vmatpush1.bf16.msra.mxu0 %v1277
    %2513 = vmatprep.subr.bf16.mxu0 0
    %2514 = vmatpush1.bf16.msra.mxu0 0
    %2515 = vmatprep.subr.bf16.mxu0 0
    %2516 = vmatpush1.bf16.msra.mxu0 0
    %2517 = vmatprep.subr.bf16.mxu0 0
    %2518 = vmatpush1.bf16.msra.mxu0 0
    %2519 = vmatprep.subr.bf16.mxu0 0
    %2520 = vmatpush1.bf16.msra.mxu0 0
    %2521 = vmatprep.subr.bf16.mxu0 0
    %2522 = vmatpush1.bf16.msra.mxu0 0
    %2523 = vmatprep.subr.bf16.mxu0 0
    %2524 = vmatpush1.bf16.msra.mxu0 0
    %2525 = vmatprep.subr.bf16.mxu0 0
    %2526 = vmatpush1.bf16.msra.mxu0 0
    %2527 = vmatprep.subr.bf16.mxu0 0
    %2528 = vmatpush1.bf16.msra.mxu0 0
    %2529 = vmatprep.subr.bf16.mxu0 0
    %2530 = vmatpush1.bf16.msra.mxu0 0
    %2531 = vmatprep.subr.bf16.mxu0 0
    %2532 = vmatpush1.bf16.msra.mxu0 0
    %2533 = vmatprep.subr.bf16.mxu0 0
    %2534 = vmatpush1.bf16.msra.mxu0 0
    %2535 = vmatprep.subr.bf16.mxu0 0
    %2536 = vmatpush1.bf16.msra.mxu0 0
    %2537 = vmatprep.mubr.bf16.mxu0 0
    %2538 = vmatmul.mubr.bf16.gmra.mrb[0].mxu0 %v2503
    %v2539 = vpop.f32.mrb[0].mxu0
    %v2540 = vadd.f32 %v59, %v2539
    %v2541 = vpop.f32.mrb[0].mxu0
    %v2542 = vpop.f32.mrb[0].mxu0
    %v2543 = vpop.f32.mrb[0].mxu0
    %2544 = vdwg.mxu0
    %2545 = vmatprep.subr.bf16.mxu0 0
    %2546 = vmatpush1.bf16.msra.mxu0 %v1327
    %2547 = vmatprep.subr.bf16.mxu0 0
    %2548 = vmatpush1.bf16.msra.mxu0 %v1328
    %2549 = vmatprep.subr.bf16.mxu0 0
    %2550 = vmatpush1.bf16.msra.mxu0 0
    %2551 = vmatprep.subr.bf16.mxu0 0
    %2552 = vmatpush1.bf16.msra.mxu0 0
    %2553 = vmatprep.subr.bf16.mxu0 0
    %2554 = vmatpush1.bf16.msra.mxu0 0
    %2555 = vmatprep.subr.bf16.mxu0 0
    %2556 = vmatpush1.bf16.msra.mxu0 0
    %2557 = vmatprep.subr.bf16.mxu0 0
    %2558 = vmatpush1.bf16.msra.mxu0 0
    %2559 = vmatprep.subr.bf16.mxu0 0
    %2560 = vmatpush1.bf16.msra.mxu0 0
    %2561 = vmatprep.subr.bf16.mxu0 0
    %2562 = vmatpush1.bf16.msra.mxu0 0
    %2563 = vmatprep.subr.bf16.mxu0 0
    %2564 = vmatpush1.bf16.msra.mxu0 0
    %2565 = vmatprep.subr.bf16.mxu0 0
    %2566 = vmatpush1.bf16.msra.mxu0 0
    %2567 = vmatprep.subr.bf16.mxu0 0
    %2568 = vmatpush1.bf16.msra.mxu0 0
    %2569 = vmatprep.subr.bf16.mxu0 0
    %2570 = vmatpush1.bf16.msra.mxu0 0
    %2571 = vmatprep.subr.bf16.mxu0 0
    %2572 = vmatpush1.bf16.msra.mxu0 0
    %2573 = vmatprep.subr.bf16.mxu0 0
    %2574 = vmatpush1.bf16.msra.mxu0 0
    %2575 = vmatprep.subr.bf16.mxu0 0
    %2576 = vmatpush1.bf16.msra.mxu0 0
    %2577 = vmatprep.mubr.bf16.mxu0 0
    %2578 = vmatmul.mubr.bf16.gmra.mrb[0].mxu0 %v2398
    %v2579 = vpop.f32.mrb[0].mxu0
    %v2580 = vadd.f32 0.0, %v2579
    %v2581 = vpop.f32.mrb[0].mxu0
    %v2582 = vpop.f32.mrb[0].mxu0
    %v2583 = vpop.f32.mrb[0].mxu0
    %2584 = vdwg.mxu0
    %v2585 = vadd.f32 %v2540, %v2580
    %v2586 = vxor.u32 %v2585, 2147483648
    %v2587 = vmul.f32 %v2586, 1.442695
    %v2588 = vpow.pop %v2587
    %v2589 = vadd.f32 %v2588, 1.0
    %v2590 = vrcp.pop %v2589
    %v2591 = vmul.f32 1.0, %v2590
    %v2592 = vadd.f32 %v2580, %v1380
    %2594 = vrot.lane.b32.xlu0 %v2592, 64
    %v2595 = vpop.permute.xlu0 %2594
    %v2597 = vmul.f32 %v2591, %v2595
    %2599 = vrot.lane.b32.xlu0 %v2597, 64
    %v2600 = vpop.permute.xlu0 %2599
    %v2602 = vadd.f32 %v2540, %v2600
    %v2603 = vtanh.pop %v2602
    %v2604 = vsub.f32 1.0, %v2591
    %2606 = vrot.lane.b32.xlu0 %v2603, 96
    %v2607 = vpop.permute.xlu0 %2606
    %v2609 = vmul.f32 %v2604, %v2607
    %v2610 = vmul.f32 %v2591, %v2329
    %v2611 = vadd.f32 %v2609, %v2610
    %v2612 = vpack.c.bf16 %v2611, %v2611
    %2614 = vrot.lane.b32.xlu0 %v2612, 96
    %v2615 = vpop.permute.xlu0 %2614
    %2616 = vrot.lane.b32.xlu0 %v2496, 32
    %v2617 = vpop.permute.xlu0 %2616
    %v2620 = vsel %vm131, %v2615, %v2617
    %v2621 = vsel %vm1435, %v2620, 0
    %2623 = vmatprep.subr.bf16.mxu0 0
    %2624 = vmatpush1.bf16.msra.mxu0 %v1427
    %2625 = vmatprep.subr.bf16.mxu0 0
    %2626 = vmatpush1.bf16.msra.mxu0 %v1428
    %2627 = vmatprep.subr.bf16.mxu0 0
    %2628 = vmatpush1.bf16.msra.mxu0 %v1429
    %2629 = vmatprep.subr.bf16.mxu0 0
    %2630 = vmatpush1.bf16.msra.mxu0 %v1430
    %2631 = vmatprep.subr.bf16.mxu0 0
    %2632 = vmatpush1.bf16.msra.mxu0 0
    %2633 = vmatprep.subr.bf16.mxu0 0
    %2634 = vmatpush1.bf16.msra.mxu0 0
    %2635 = vmatprep.subr.bf16.mxu0 0
    %2636 = vmatpush1.bf16.msra.mxu0 0
    %2637 = vmatprep.subr.bf16.mxu0 0
    %2638 = vmatpush1.bf16.msra.mxu0 0
    %2639 = vmatprep.subr.bf16.mxu0 0
    %2640 = vmatpush1.bf16.msra.mxu0 0
    %2641 = vmatprep.subr.bf16.mxu0 0
    %2642 = vmatpush1.bf16.msra.mxu0 0
    %2643 = vmatprep.subr.bf16.mxu0 0
    %2644 = vmatpush1.bf16.msra.mxu0 0
    %2645 = vmatprep.subr.bf16.mxu0 0
    %2646 = vmatpush1.bf16.msra.mxu0 0
    %2647 = vmatprep.subr.bf16.mxu0 0
    %2648 = vmatpush1.bf16.msra.mxu0 0
    %2649 = vmatprep.subr.bf16.mxu0 0
    %2650 = vmatpush1.bf16.msra.mxu0 0
    %2651 = vmatprep.subr.bf16.mxu0 0
    %2652 = vmatpush1.bf16.msra.mxu0 0
    %2653 = vmatprep.subr.bf16.mxu0 0
    %2654 = vmatpush1.bf16.msra.mxu0 0
    %2655 = vmatprep.mubr.bf16.mxu0 0
    %2656 = vmatmul.mubr.bf16.gmra.mrb[0].mxu0 %v2621
    %v2657 = vpop.f32.mrb[0].mxu0
    %v2658 = vadd.f32 %v67, %v2657
    %v2659 = vpop.f32.mrb[0].mxu0
    %v2660 = vpop.f32.mrb[0].mxu0
    %v2661 = vpop.f32.mrb[0].mxu0
    %2662 = vdwg.mxu0
    %v2663 = vsel %vm1137, %v2658, -inf
    %2664 = vmax.xlane.f32.xlu0 %v2663
    %v2665 = vpop.xlane.xlu0 %2664
    %v2666 = vsub.f32 %v2658, %v2665
    %v2667 = vmul.f32 %v2666, 1.442695
    %v2668 = vpow.pop %v2667
    %v2669 = vsel %vm1137, %v2668, 0.0
    %2670 = vadd.xlane.f32.xlu0 %v2669
    %v2671 = vpop.xlane.xlu0 %2670
    %v2672 = vlog2.pop %v2671
    %v2673 = vmul.f32 %v2672, 0.6931472
    %v2674 = vadd.f32 %v2665, %v2673
    %v2675 = vsub.f32 %v2658, %v2674
    %s2676 = scalar_lea.vmem [#allocation3], 20
    %2677 = vst.msk [vmem:[%s2676] sm:$0xf] %vm1137, %v2675
    // Predicated region
    $region22: #{forward.1} parent=1 // pred_check
      _
    $region23: #{forward.1} parent=1 // pred_check_branch
      %2679 = sbr.rel (0) target = $region25
    $region24: #{forward.1} parent=1 // pred_region
      %s2681 = ssub.s32 384, 384
      %2682 = vsyncadd [#allocation4], %s2681
      %s2683 = sshll.u32 [#allocation3], 4
      %s2684 = int_to_ptr.vmem [resolvable:$true] %s2683
      %2689 = dma.vmem_to_hbm [thread:$0]  %s2684, 384, %s5, [#allocation4], 64, 64, 4
    $region25: #{forward.1} parent=1 // pred_fallthru
      _
    // Predicated region
    $region26: #{forward.1} parent=1 // pred_check
      _
    $region27: #{forward.1} parent=1 // pred_check_branch
      %2691 = sbr.rel (0) target = $region29
    $region28: #{forward.1} parent=1 // pred_region
      %2692 = dma.done [#allocation4], 384
    $region29: #{forward.1} parent=1 // pred_fallthru
      _
    %2693 = vsyncpa [#allocation4], 1

</llo_original>
